<compile_context>
chip_gen: v5e
topology: v5e:2x2
jax: 0.10.0
libtpu: 0.0.40
codegen_flags: <defaults>
</compile_context>

<pallas_src>
import functools

import jax
import jax.numpy as jnp
from jax import lax
from jax.experimental import pallas as pl
from jax.experimental.pallas import tpu as pltpu


def _round_up(x, m):
    return (x + m - 1) // m * m


# ---------------------------------------------------------------------------
# Fused PGD kernel: one batch-row tile per grid step, full num_steps on-chip.
# ---------------------------------------------------------------------------
def _pgd_fused_kernel(img_ref, d1_ref, d2_ref, oh_ref,
                      w_ref, wt_ref, pt_ref, p_ref,
                      adv1_ref, adv2_ref, *,
                      step_size, epsilon, num_steps, k1, k2, k3, mxu_dtype):
    f32 = jnp.float32
    tn = img_ref.shape[0]
    kp = oh_ref.shape[1]

    img = img_ref[...]                                   # (tn, F)
    img2 = jnp.concatenate([img, img], axis=0)           # (2tn, F): both views

    # Hoisted loop-invariant clamp bounds.  clamp(d, -eps, eps) followed by
    # clamp(img + d, 0, 1) - img collapses to one clip against [lo, hi]
    # (the two intervals always overlap for images in [0, 1]).
    lo = jnp.maximum(-epsilon, -img2)
    hi = jnp.minimum(epsilon, 1.0 - img2)

    w = w_ref[...]            # (F, Dp)   mxu_dtype (pre-padded)
    wt = wt_ref[...]          # (Dp, F)   pre-transposed enc_w
    pt = pt_ref[...]          # (Dp, Kp)  pre-transposed concatenated protos
    p = p_ref[...]            # (Kp, Dp)  concatenated protos
    oh = oh_ref[...]          # (tn, Kp)  f32 combined one-hot (pad cols are 0)
    oh2 = jnp.concatenate([oh, oh], axis=0)               # (2tn, Kp)

    # Static per-column masks for the concatenated prototype groups.
    col = lax.broadcasted_iota(jnp.int32, (1, kp), 1)
    k_total = k1 + k2 + k3
    g1 = (col < k1).astype(f32)
    g2 = jnp.logical_and(col >= k1, col < k1 + k2).astype(f32)
    g3 = jnp.logical_and(col >= k1 + k2, col < k_total).astype(f32)
    neg_bias = (col >= k_total).astype(f32) * (-1e30)      # mask padded lanes

    # +1 on the first view (losshere), -1 on the second (losshere1).
    rows = lax.broadcasted_iota(jnp.int32, (2 * tn, 1), 0)
    ce_sign = jnp.where(rows < tn, 1.0, -1.0)

    def mm(a, b):
        return jnp.dot(a.astype(mxu_dtype), b, preferred_element_type=jnp.float32)

    def pgd_step(_, d):
        x = img2 + d                                       # (2tn, F)
        feats = mm(x, w)                                   # (2tn, Dp) f32

        # One lane-dense logits matmul against all three prototype sets.
        logits = mm(feats, pt) + neg_bias                  # (2tn, Kp)
        m = jnp.max(logits, axis=1, keepdims=True)         # per-group softmax is
        e = jnp.exp(logits - m)                            # shift-invariant; pads -> 0
        s1 = jnp.sum(e * g1, axis=1, keepdims=True)
        s2 = jnp.sum(e * g2, axis=1, keepdims=True)
        s3 = jnp.sum(e * g3, axis=1, keepdims=True)
        r1 = 1.0 / jnp.maximum(s1, 1e-30)
        r2 = 1.0 / jnp.maximum(s2, 1e-30)
        r3 = 1.0 / jnp.maximum(s3, 1e-30)
        sm = e * (r1 * g1 + r2 * g2 + r3 * g3)             # per-group softmax, 0 on pads
        # sum_m (softmax_m - onehot_m) @ P_m  in ONE matmul (pad rows of p are 0)
        g_ce = mm(sm - oh2, p)                             # (2tn, Dp)

        # cosine similarity (dim=1, eps=1e-8) between the two views + gradient
        f1 = feats[:tn]
        f2 = feats[tn:]
        dot12 = jnp.sum(f1 * f2, axis=1, keepdims=True)
        n1 = jnp.maximum(jnp.sqrt(jnp.sum(f1 * f1, axis=1, keepdims=True)), 1e-8)
        n2 = jnp.maximum(jnp.sqrt(jnp.sum(f2 * f2, axis=1, keepdims=True)), 1e-8)
        inv12 = 1.0 / (n1 * n2)
        cos = dot12 * inv12
        dcos1 = f2 * inv12 - f1 * (cos / (n1 * n1))
        dcos2 = f1 * inv12 - f2 * (cos / (n2 * n2))

        # losshere  =  CE_total - mean(cos)   -> drives delta[:n] via f1
        # losshere1 = -CE_total - mean(cos)   -> drives delta[n:] via f2
        gf = ce_sign * g_ce - jnp.concatenate([dcos1, dcos2], axis=0)

        gx = mm(gf, wt)                                    # (2tn, F) grad wrt delta
        sgn = jnp.where(gx > 0.0, 1.0, jnp.where(gx < 0.0, -1.0, 0.0))
        return jnp.clip(d + step_size * sgn, lo, hi)

    d0 = jnp.concatenate([d1_ref[...], d2_ref[...]], axis=0)
    d_fin = lax.fori_loop(0, num_steps, pgd_step, d0, unroll=(num_steps <= 4))

    adv1_ref[...] = img + d_fin[:tn]
    adv2_ref[...] = img + d_fin[tn:]


# ---------------------------------------------------------------------------
# Generation-aware VMEM budget / tiling.
# ---------------------------------------------------------------------------
def _vmem_budget():
    cap = 64 * 1024 * 1024                      # safe fallback (v7x per-TC VMEM)
    try:
        info = pltpu.get_tpu_info()
        cap = int(getattr(info, "vmem_capacity_bytes", cap))
    except Exception:
        pass
    limit = max(16 * 1024 * 1024, min(cap - 8 * 1024 * 1024, 100 * 1024 * 1024))
    budget = int(limit * 0.7)                   # headroom for compiler scratch
    return budget, limit


def _choose_tiling(n, feat_p, k_p, d_p, const_elt_bytes):
    budget, vmem_limit = _vmem_budget()
    # Broadcast (constant index_map) blocks are double-buffered by the pipeliner.
    const_bytes = 2 * const_elt_bytes * 2 * (feat_p * d_p + k_p * d_p)
    # Per batch row: double-buffered img/d1/d2/oh inputs + adv outputs (f32)
    # + ~8 live stacked (2 rows) in-kernel (·, feat) tensors + small (·, Dp/Kp).
    per_row = 4 * (26 * feat_p + 10 * k_p + 8 * d_p)
    avail = max(budget - const_bytes, 8 * per_row)
    max_rows = max(8, avail // per_row)

    n8 = _round_up(max(n, 1), 8)
    tn = 8
    while tn * 2 <= max_rows and tn * 2 <= 512 and tn * 2 <= n8:
        tn *= 2
    # v7x megacore: keep >= 2 grid steps over the parallel axis when possible.
    if n8 >= 16 and n8 // tn < 2:
        tn = max(8, tn // 2)
    n_pad = _round_up(n8, tn)
    return tn, n_pad, vmem_limit


def _init_delta(key, n, feat, epsilon):
    # delta = rand_like(imagesr) * eps * 2 - eps, split into the two halves.
    ka, kb = jax.random.split(key)
    d1 = jax.random.uniform(ka, (n, feat), dtype=jnp.float32) * (2.0 * epsilon) - epsilon
    d2 = jax.random.uniform(kb, (n, feat), dtype=jnp.float32) * (2.0 * epsilon) - epsilon
    return d1, d2


# ---------------------------------------------------------------------------
# Wrapper replicating AttackPGD_prototestadv2.forward
# ---------------------------------------------------------------------------
@functools.partial(jax.jit,
                   static_argnames=("step_size", "epsilon", "num_steps", "use_bf16"))
def attack_pgd_prototestadv2(protos1, protos2, protos3, images_org,
                             pseudo_ls1, pseudo_ls2, pseudo_ls3,
                             enc_w, key, *, step_size, epsilon, num_steps,
                             use_bf16=False):
    n, c, h, w_ = images_org.shape
    feat = c * h * w_
    d = enc_w.shape[1]
    k1, k2, k3 = protos1.shape[0], protos2.shape[0], protos3.shape[0]

    feat_p = _round_up(feat, 128)
    d_p = _round_up(d, 128)
    k_p = _round_up(max(k1 + k2 + k3, 1), 128)

    mxu_dtype = jnp.bfloat16 if use_bf16 else jnp.float32
    tn, n_pad, vmem_limit = _choose_tiling(n, feat_p, k_p, d_p,
                                           2 if use_bf16 else 4)

    def pad2(x, rows, cols):
        return jnp.pad(x, ((0, rows - x.shape[0]), (0, cols - x.shape[1])))

    img_flat = images_org.reshape(n, feat).astype(jnp.float32)
    d1, d2 = _init_delta(key, n, feat, epsilon)

    img_p = pad2(img_flat, n_pad, feat_p)
    d1_p = pad2(d1, n_pad, feat_p)
    d2_p = pad2(d2, n_pad, feat_p)

    # Combined one-hot over the concatenated prototype sets (pad columns = 0).
    oh = jnp.concatenate([jax.nn.one_hot(pseudo_ls1, k1, dtype=jnp.float32),
                          jax.nn.one_hot(pseudo_ls2, k2, dtype=jnp.float32),
                          jax.nn.one_hot(pseudo_ls3, k3, dtype=jnp.float32)], axis=1)
    oh_p = pad2(oh, n_pad, k_p)

    # Zero-padded encoder weight / concatenated protos + pre-transposed copies.
    w_pad = pad2(enc_w.astype(jnp.float32), feat_p, d_p)
    p_cat = jnp.concatenate([protos1, protos2, protos3], axis=0).astype(jnp.float32)
    p_pad = pad2(p_cat, k_p, d_p)

    w_c = w_pad.astype(mxu_dtype)                  # (feat_p, d_p)
    wt_c = w_pad.T.astype(mxu_dtype)               # (d_p, feat_p)
    pt_c = p_pad.T.astype(mxu_dtype)               # (d_p, k_p)
    p_c = p_pad.astype(mxu_dtype)                  # (k_p, d_p)

    kernel = functools.partial(
        _pgd_fused_kernel,
        step_size=float(step_size), epsilon=float(epsilon),
        num_steps=int(num_steps), k1=k1, k2=k2, k3=k3, mxu_dtype=mxu_dtype)

    row = lambda i: (i, 0)
    bcast = lambda i: (0, 0)
    call = pl.pallas_call(
        kernel,
        grid=(n_pad // tn,),
        in_specs=[
            pl.BlockSpec((tn, feat_p), row),     # img
            pl.BlockSpec((tn, feat_p), row),     # delta[:n]
            pl.BlockSpec((tn, feat_p), row),     # delta[n:]
            pl.BlockSpec((tn, k_p), row),        # combined one-hot
            pl.BlockSpec((feat_p, d_p), bcast),  # enc_w
            pl.BlockSpec((d_p, feat_p), bcast),  # enc_w^T
            pl.BlockSpec((d_p, k_p), bcast),     # protos_cat^T
            pl.BlockSpec((k_p, d_p), bcast),     # protos_cat
        ],
        out_specs=[pl.BlockSpec((tn, feat_p), row),
                   pl.BlockSpec((tn, feat_p), row)],
        out_shape=[jax.ShapeDtypeStruct((n_pad, feat_p), jnp.float32),
                   jax.ShapeDtypeStruct((n_pad, feat_p), jnp.float32)],
        # delta halves are updated in place (donated to the adv outputs)
        input_output_aliases={1: 0, 2: 1},
        compiler_params=pltpu.CompilerParams(
            dimension_semantics=("parallel",),
            vmem_limit_bytes=int(vmem_limit)),
    )
    adv1_p, adv2_p = call(img_p, d1_p, d2_p, oh_p, w_c, wt_c, pt_c, p_c)
    adv1 = adv1_p[:n, :feat].reshape(n, c, h, w_)
    adv2 = adv2_p[:n, :feat].reshape(n, c, h, w_)
    return adv1, adv2


# ---------------------------------------------------------------------------
# Pure-JAX autodiff reference of the same attack (for the sanity check).
# ---------------------------------------------------------------------------
def _ref_attack(protos1, protos2, protos3, images_org,
                pseudo_ls1, pseudo_ls2, pseudo_ls3, enc_w, key,
                *, step_size, epsilon, num_steps):
    n = images_org.shape[0]
    feat = int(images_org.size) // n
    img_flat = images_org.reshape(n, feat).astype(jnp.float32)
    imagesr = jnp.concatenate([img_flat, img_flat], 0)
    d1, d2 = _init_delta(key, n, feat, epsilon)
    delta = jnp.concatenate([d1, d2], 0)

    protos = (protos1, protos2, protos3)
    labels = (pseudo_ls1, pseudo_ls2, pseudo_ls3)

    def ce(logits, y):
        lse = jax.nn.logsumexp(logits, axis=1)
        pick = jnp.take_along_axis(logits, y[:, None], axis=1)[:, 0]
        return jnp.mean(lse - pick)

    def losses(dlt):
        x1 = img_flat + dlt[:n]
        x2 = img_flat + dlt[n:]
        f1 = x1 @ enc_w
        f2 = x2 @ enc_w
        ce_tot = 0.0
        for p, y in zip(protos, labels):
            ce_tot = ce_tot + ce(f1 @ p.T, y) + ce(f2 @ p.T, y)
        n1 = jnp.maximum(jnp.linalg.norm(f1, axis=1), 1e-8)
        n2 = jnp.maximum(jnp.linalg.norm(f2, axis=1), 1e-8)
        cosm = jnp.mean(jnp.sum(f1 * f2, axis=1) / (n1 * n2))
        return ce_tot - cosm, -ce_tot - cosm

    loss_a = lambda dlt: losses(dlt)[0]
    loss_b = lambda dlt: losses(dlt)[1]

    for _ in range(num_steps):
        ga = jax.grad(loss_a)(delta)
        gb = jax.grad(loss_b)(delta)
        d1n = delta[:n] + step_size * jnp.sign(ga[:n])
        d2n = delta[n:] + step_size * jnp.sign(gb[n:])
        delta = jnp.concatenate([d1n, d2n], 0)
        delta = jnp.clip(delta, -epsilon, epsilon)
        delta = jnp.clip(imagesr + delta, 0.0, 1.0) - imagesr

    adv1 = (img_flat + delta[:n]).reshape(images_org.shape)
    adv2 = (img_flat + delta[n:]).reshape(images_org.shape)
    return adv1, adv2


if __name__ == "__main__":
    key = jax.random.PRNGKey(0)
    k_img, kp1, kp2, kp3, k_w, k_l, k_delta = jax.random.split(key, 7)

    # Small shapes consistent with the module's forward (NCHW images).
    N, C, H, W = 2, 4, 16, 16
    FEAT = C * H * W                 # 1024
    D = 32                           # feature dim of the synthetic encoder
    K1, K2, K3 = 8, 12, 16           # three prototype sets

    images_org = jax.random.uniform(k_img, (N, C, H, W), dtype=jnp.float32)

    def _make_protos(k, kk):
        p = jax.random.normal(k, (kk, D), dtype=jnp.float32)
        return p / jnp.linalg.norm(p, axis=1, keepdims=True)

    protos1 = _make_protos(kp1, K1)
    protos2 = _make_protos(kp2, K2)
    protos3 = _make_protos(kp3, K3)

    kl1, kl2, kl3 = jax.random.split(k_l, 3)
    pseudo_ls1 = jax.random.randint(kl1, (N,), 0, K1)
    pseudo_ls2 = jax.random.randint(kl2, (N,), 0, K2)
    pseudo_ls3 = jax.random.randint(kl3, (N,), 0, K3)

    # Deterministic synthetic linear-encoder weights (backbone is external).
    enc_w = jax.random.normal(k_w, (FEAT, D), dtype=jnp.float32) * (1.0 / FEAT ** 0.5)

    config = dict(step_size=2.0 / 255.0, epsilon=8.0 / 255.0, num_steps=3)
    eps = config["epsilon"]

    # ---- f32 MXU path ------------------------------------------------------
    adv1, adv2 = attack_pgd_prototestadv2(
        protos1, protos2, protos3, images_org,
        pseudo_ls1, pseudo_ls2, pseudo_ls3,
        enc_w, k_delta, use_bf16=False, **config)
    jax.block_until_ready((adv1, adv2))

    # Adversarial images stay in [0, 1] and inside the epsilon ball.
    assert float(jnp.min(adv1)) >= -1e-5 and float(jnp.max(adv1)) <= 1.0 + 1e-5
    assert float(jnp.min(adv2)) >= -1e-5 and float(jnp.max(adv2)) <= 1.0 + 1e-5
    assert float(jnp.max(jnp.abs(adv1 - images_org))) <= eps + 1e-5
    assert float(jnp.max(jnp.abs(adv2 - images_org))) <= eps + 1e-5
    assert float(jnp.mean(jnp.abs(adv1 - images_org))) > 1e-4   # non-trivial attack

    # Numerical check against a pure-JAX autodiff PGD reference.  Differences
    # can only come from matmul-precision-induced gradient-sign flips near
    # zero, so compare as a mismatched-element fraction.
    with jax.default_matmul_precision("highest"):
        ref1, ref2 = _ref_attack(
            protos1, protos2, protos3, images_org,
            pseudo_ls1, pseudo_ls2, pseudo_ls3,
            enc_w, k_delta, **config)
        ref1, ref2 = jax.block_until_ready((ref1, ref2))
    mism1 = float(jnp.mean((jnp.abs(adv1 - ref1) > 1e-4).astype(jnp.float32)))
    mism2 = float(jnp.mean((jnp.abs(adv2 - ref2) > 1e-4).astype(jnp.float32)))
    assert mism1 < 0.10 and mism2 < 0.10, (mism1, mism2)

    # ---- bf16 MXU path (v6e/v7x fast path): constraint checks only ---------
    adv1b, adv2b = attack_pgd_prototestadv2(
        protos1, protos2, protos3, images_org,
        pseudo_ls1, pseudo_ls2, pseudo_ls3,
        enc_w, k_delta, use_bf16=True, **config)
    jax.block_until_ready((adv1b, adv2b))
    assert float(jnp.min(adv1b)) >= -1e-5 and float(jnp.max(adv1b)) <= 1.0 + 1e-5
    assert float(jnp.min(adv2b)) >= -1e-5 and float(jnp.max(adv2b)) <= 1.0 + 1e-5
    assert float(jnp.max(jnp.abs(adv1b - images_org))) <= eps + 1e-5
    assert float(jnp.max(jnp.abs(adv2b - images_org))) <= eps + 1e-5
    assert float(jnp.mean(jnp.abs(adv1b - images_org))) > 1e-4

    print("KERNEL_OK")
</pallas_src>

<mosaic_0001>
module attributes {stable_mosaic.version = 11 : i64} {
  func.func @_pgd_fused_kernel(%arg0: i32, %arg1: memref<8x1024xf32, #tpu.memory_space<vmem>>, %arg2: memref<8x1024xf32, #tpu.memory_space<vmem>>, %arg3: memref<8x1024xf32, #tpu.memory_space<vmem>>, %arg4: memref<8x128xf32, #tpu.memory_space<vmem>>, %arg5: memref<1024x128xf32, #tpu.memory_space<vmem>>, %arg6: memref<128x1024xf32, #tpu.memory_space<vmem>>, %arg7: memref<128x128xf32, #tpu.memory_space<vmem>>, %arg8: memref<128x128xf32, #tpu.memory_space<vmem>>, %arg9: memref<8x1024xf32, #tpu.memory_space<vmem>>, %arg10: memref<8x1024xf32, #tpu.memory_space<vmem>>) attributes {dimension_semantics = [#tpu.dimension_semantics<parallel>], iteration_bounds = array<i64: 1>, scalar_prefetch = 0 : i64, scratch_operands = 0 : i64, tpu.core_type = #tpu.core_type<tc>, window_params = [{transform_indices = @transform_0, window_bounds = array<i64: 8, 1024>}, {transform_indices = @transform_1, window_bounds = array<i64: 8, 1024>}, {transform_indices = @transform_2, window_bounds = array<i64: 8, 1024>}, {transform_indices = @transform_3, window_bounds = array<i64: 8, 128>}, {pipeline_mode = #tpu.pipeline_mode<synchronous>, transform_indices = @transform_4, window_bounds = array<i64: 1024, 128>}, {pipeline_mode = #tpu.pipeline_mode<synchronous>, transform_indices = @transform_5, window_bounds = array<i64: 128, 1024>}, {pipeline_mode = #tpu.pipeline_mode<synchronous>, transform_indices = @transform_6, window_bounds = array<i64: 128, 128>}, {pipeline_mode = #tpu.pipeline_mode<synchronous>, transform_indices = @transform_7, window_bounds = array<i64: 128, 128>}, {transform_indices = @transform_8, window_bounds = array<i64: 8, 1024>}, {transform_indices = @transform_9, window_bounds = array<i64: 8, 1024>}]} {
    %c0 = arith.constant 0 : index
    %c0_0 = arith.constant 0 : index
    %0 = vector.load %arg1[%c0, %c0_0] : memref<8x1024xf32, #tpu.memory_space<vmem>>, vector<8x1024xf32>
    %1 = tpu.concatenate %0, %0 in 0 : vector<8x1024xf32>, vector<8x1024xf32> -> vector<16x1024xf32>
    %cst = arith.constant 0.000000e+00 : f32
    %2 = vector.broadcast %cst : f32 to vector<16x1024xf32>
    %3 = arith.subf %2, %1 : vector<16x1024xf32>
    %cst_1 = arith.constant -0.0313725509 : f32
    %4 = vector.broadcast %cst_1 : f32 to vector<16x1024xf32>
    %5 = arith.maximumf %4, %3 : vector<16x1024xf32>
    %cst_2 = arith.constant 1.000000e+00 : f32
    %6 = vector.broadcast %cst_2 : f32 to vector<16x1024xf32>
    %7 = arith.subf %6, %1 : vector<16x1024xf32>
    %cst_3 = arith.constant 0.0313725509 : f32
    %8 = vector.broadcast %cst_3 : f32 to vector<16x1024xf32>
    %9 = arith.minimumf %8, %7 : vector<16x1024xf32>
    %c0_4 = arith.constant 0 : index
    %c0_5 = arith.constant 0 : index
    %10 = vector.load %arg5[%c0_4, %c0_5] : memref<1024x128xf32, #tpu.memory_space<vmem>>, vector<1024x128xf32>
    %c0_6 = arith.constant 0 : index
    %c0_7 = arith.constant 0 : index
    %11 = vector.load %arg6[%c0_6, %c0_7] : memref<128x1024xf32, #tpu.memory_space<vmem>>, vector<128x1024xf32>
    %c0_8 = arith.constant 0 : index
    %c0_9 = arith.constant 0 : index
    %12 = vector.load %arg7[%c0_8, %c0_9] : memref<128x128xf32, #tpu.memory_space<vmem>>, vector<128x128xf32>
    %c0_10 = arith.constant 0 : index
    %c0_11 = arith.constant 0 : index
    %13 = vector.load %arg8[%c0_10, %c0_11] : memref<128x128xf32, #tpu.memory_space<vmem>>, vector<128x128xf32>
    %c0_12 = arith.constant 0 : index
    %c0_13 = arith.constant 0 : index
    %14 = vector.load %arg4[%c0_12, %c0_13] : memref<8x128xf32, #tpu.memory_space<vmem>>, vector<8x128xf32>
    %15 = tpu.concatenate %14, %14 in 0 : vector<8x128xf32>, vector<8x128xf32> -> vector<16x128xf32>
    %16 = tpu.iota {dimensions = array<i32: 1>} : vector<1x128xi32>
    %c8_i32 = arith.constant 8 : i32
    %17 = vector.broadcast %c8_i32 : i32 to vector<1x128xi32>
    %18 = arith.cmpi slt, %16, %17 : vector<1x128xi32>
    %19 = arith.extui %18 : vector<1x128xi1> to vector<1x128xi32>
    %20 = arith.sitofp %19 : vector<1x128xi32> to vector<1x128xf32>
    %c8_i32_14 = arith.constant 8 : i32
    %21 = vector.broadcast %c8_i32_14 : i32 to vector<1x128xi32>
    %22 = arith.cmpi sge, %16, %21 : vector<1x128xi32>
    %c20_i32 = arith.constant 20 : i32
    %23 = vector.broadcast %c20_i32 : i32 to vector<1x128xi32>
    %24 = arith.cmpi slt, %16, %23 : vector<1x128xi32>
    %25 = arith.andi %22, %24 : vector<1x128xi1>
    %26 = arith.extui %25 : vector<1x128xi1> to vector<1x128xi32>
    %27 = arith.sitofp %26 : vector<1x128xi32> to vector<1x128xf32>
    %c20_i32_15 = arith.constant 20 : i32
    %28 = vector.broadcast %c20_i32_15 : i32 to vector<1x128xi32>
    %29 = arith.cmpi sge, %16, %28 : vector<1x128xi32>
    %c36_i32 = arith.constant 36 : i32
    %30 = vector.broadcast %c36_i32 : i32 to vector<1x128xi32>
    %31 = arith.cmpi slt, %16, %30 : vector<1x128xi32>
    %32 = arith.andi %29, %31 : vector<1x128xi1>
    %33 = arith.extui %32 : vector<1x128xi1> to vector<1x128xi32>
    %34 = arith.sitofp %33 : vector<1x128xi32> to vector<1x128xf32>
    %c36_i32_16 = arith.constant 36 : i32
    %35 = vector.broadcast %c36_i32_16 : i32 to vector<1x128xi32>
    %36 = arith.cmpi sge, %16, %35 : vector<1x128xi32>
    %37 = arith.extui %36 : vector<1x128xi1> to vector<1x128xi32>
    %38 = arith.sitofp %37 : vector<1x128xi32> to vector<1x128xf32>
    %cst_17 = arith.constant -1.000000e+30 : f32
    %39 = vector.broadcast %cst_17 : f32 to vector<1x128xf32>
    %40 = arith.mulf %38, %39 : vector<1x128xf32>
    %41 = tpu.iota {dimensions = array<i32: 0>} : vector<16x1xi32>
    %c8_i32_18 = arith.constant 8 : i32
    %42 = vector.broadcast %c8_i32_18 : i32 to vector<16x1xi32>
    %43 = arith.cmpi slt, %41, %42 : vector<16x1xi32>
    %cst_19 = arith.constant 1.000000e+00 : f32
    %cst_20 = arith.constant -1.000000e+00 : f32
    %44 = vector.broadcast %cst_19 : f32 to vector<16x1xf32>
    %45 = vector.broadcast %cst_20 : f32 to vector<16x1xf32>
    %46 = arith.select %43, %44, %45 : vector<16x1xi1>, vector<16x1xf32>
    %c0_21 = arith.constant 0 : index
    %c0_22 = arith.constant 0 : index
    %47 = vector.load %arg2[%c0_21, %c0_22] : memref<8x1024xf32, #tpu.memory_space<vmem>>, vector<8x1024xf32>
    %c0_23 = arith.constant 0 : index
    %c0_24 = arith.constant 0 : index
    %48 = vector.load %arg3[%c0_23, %c0_24] : memref<8x1024xf32, #tpu.memory_space<vmem>>, vector<8x1024xf32>
    %49 = tpu.concatenate %47, %48 in 0 : vector<8x1024xf32>, vector<8x1024xf32> -> vector<16x1024xf32>
    %c0_i32 = arith.constant 0 : i32
    %50 = arith.addf %1, %49 : vector<16x1024xf32>
    %cst_25 = arith.constant dense<0.000000e+00> : vector<16x128xf32>
    %51 = tpu.matmul %50, %10, %cst_25 {dimension_numbers = #tpu.dot_dimension_numbers<[1], [0], [0], [1], [0, 0, 1, 1], [], []>} : vector<16x1024xf32>, vector<1024x128xf32>, vector<16x128xf32> -> vector<16x128xf32>
    %cst_26 = arith.constant dense<0.000000e+00> : vector<16x128xf32>
    %52 = tpu.matmul %51, %12, %cst_26 {dimension_numbers = #tpu.dot_dimension_numbers<[1], [0], [0], [1], [0, 0, 1, 1], [], []>} : vector<16x128xf32>, vector<128x128xf32>, vector<16x128xf32> -> vector<16x128xf32>
    %53 = vector.broadcast %40 : vector<1x128xf32> to vector<16x128xf32>
    %54 = arith.addf %52, %53 : vector<16x128xf32>
    %cst_27 = arith.constant dense<0xFF800000> : vector<16xf32>
    %55 = vector.multi_reduction <maximumf>, %54, %cst_27 [1] : vector<16x128xf32> to vector<16xf32>
    %56 = vector.shape_cast %55 : vector<16xf32> to vector<16x1xf32>
    %57 = vector.broadcast %56 : vector<16x1xf32> to vector<16x128xf32>
    %58 = arith.subf %54, %57 : vector<16x128xf32>
    %59 = math.exp %58 : vector<16x128xf32>
    %60 = vector.broadcast %20 : vector<1x128xf32> to vector<16x128xf32>
    %61 = arith.mulf %59, %60 : vector<16x128xf32>
    %cst_28 = arith.constant dense<0.000000e+00> : vector<16xf32>
    %62 = vector.multi_reduction <add>, %61, %cst_28 [1] : vector<16x128xf32> to vector<16xf32>
    %63 = vector.shape_cast %62 : vector<16xf32> to vector<16x1xf32>
    %64 = vector.broadcast %27 : vector<1x128xf32> to vector<16x128xf32>
    %65 = arith.mulf %59, %64 : vector<16x128xf32>
    %cst_29 = arith.constant dense<0.000000e+00> : vector<16xf32>
    %66 = vector.multi_reduction <add>, %65, %cst_29 [1] : vector<16x128xf32> to vector<16xf32>
    %67 = vector.shape_cast %66 : vector<16xf32> to vector<16x1xf32>
    %68 = vector.broadcast %34 : vector<1x128xf32> to vector<16x128xf32>
    %69 = arith.mulf %59, %68 : vector<16x128xf32>
    %cst_30 = arith.constant dense<0.000000e+00> : vector<16xf32>
    %70 = vector.multi_reduction <add>, %69, %cst_30 [1] : vector<16x128xf32> to vector<16xf32>
    %71 = vector.shape_cast %70 : vector<16xf32> to vector<16x1xf32>
    %cst_31 = arith.constant 1.000000e-30 : f32
    %72 = vector.broadcast %cst_31 : f32 to vector<16x1xf32>
    %73 = arith.maximumf %63, %72 : vector<16x1xf32>
    %cst_32 = arith.constant 1.000000e+00 : f32
    %74 = vector.broadcast %cst_32 : f32 to vector<16x1xf32>
    %75 = arith.divf %74, %73 : vector<16x1xf32>
    %cst_33 = arith.constant 1.000000e-30 : f32
    %76 = vector.broadcast %cst_33 : f32 to vector<16x1xf32>
    %77 = arith.maximumf %67, %76 : vector<16x1xf32>
    %cst_34 = arith.constant 1.000000e+00 : f32
    %78 = vector.broadcast %cst_34 : f32 to vector<16x1xf32>
    %79 = arith.divf %78, %77 : vector<16x1xf32>
    %cst_35 = arith.constant 1.000000e-30 : f32
    %80 = vector.broadcast %cst_35 : f32 to vector<16x1xf32>
    %81 = arith.maximumf %71, %80 : vector<16x1xf32>
    %cst_36 = arith.constant 1.000000e+00 : f32
    %82 = vector.broadcast %cst_36 : f32 to vector<16x1xf32>
    %83 = arith.divf %82, %81 : vector<16x1xf32>
    %84 = vector.broadcast %75 : vector<16x1xf32> to vector<16x128xf32>
    %85 = vector.broadcast %20 : vector<1x128xf32> to vector<16x128xf32>
    %86 = arith.mulf %84, %85 : vector<16x128xf32>
    %87 = vector.broadcast %79 : vector<16x1xf32> to vector<16x128xf32>
    %88 = vector.broadcast %27 : vector<1x128xf32> to vector<16x128xf32>
    %89 = arith.mulf %87, %88 : vector<16x128xf32>
    %90 = arith.addf %86, %89 : vector<16x128xf32>
    %91 = vector.broadcast %83 : vector<16x1xf32> to vector<16x128xf32>
    %92 = vector.broadcast %34 : vector<1x128xf32> to vector<16x128xf32>
    %93 = arith.mulf %91, %92 : vector<16x128xf32>
    %94 = arith.addf %90, %93 : vector<16x128xf32>
    %95 = arith.mulf %59, %94 : vector<16x128xf32>
    %96 = arith.subf %95, %15 : vector<16x128xf32>
    %cst_37 = arith.constant dense<0.000000e+00> : vector<16x128xf32>
    %97 = tpu.matmul %96, %13, %cst_37 {dimension_numbers = #tpu.dot_dimension_numbers<[1], [0], [0], [1], [0, 0, 1, 1], [], []>} : vector<16x128xf32>, vector<128x128xf32>, vector<16x128xf32> -> vector<16x128xf32>
    %98 = vector.extract_strided_slice %51 {offsets = [0, 0], sizes = [8, 128], strides = [1, 1]} : vector<16x128xf32> to vector<8x128xf32>
    %99 = vector.extract_strided_slice %51 {offsets = [8, 0], sizes = [8, 128], strides = [1, 1]} : vector<16x128xf32> to vector<8x128xf32>
    %100 = arith.mulf %98, %99 : vector<8x128xf32>
    %cst_38 = arith.constant dense<0.000000e+00> : vector<8xf32>
    %101 = vector.multi_reduction <add>, %100, %cst_38 [1] : vector<8x128xf32> to vector<8xf32>
    %102 = vector.shape_cast %101 : vector<8xf32> to vector<8x1xf32>
    %103 = arith.mulf %98, %98 : vector<8x128xf32>
    %cst_39 = arith.constant dense<0.000000e+00> : vector<8xf32>
    %104 = vector.multi_reduction <add>, %103, %cst_39 [1] : vector<8x128xf32> to vector<8xf32>
    %105 = vector.shape_cast %104 : vector<8xf32> to vector<8x1xf32>
    %106 = math.sqrt %105 : vector<8x1xf32>
    %cst_40 = arith.constant 9.99999993E-9 : f32
    %107 = vector.broadcast %cst_40 : f32 to vector<8x1xf32>
    %108 = arith.maximumf %106, %107 : vector<8x1xf32>
    %109 = arith.mulf %99, %99 : vector<8x128xf32>
    %cst_41 = arith.constant dense<0.000000e+00> : vector<8xf32>
    %110 = vector.multi_reduction <add>, %109, %cst_41 [1] : vector<8x128xf32> to vector<8xf32>
    %111 = vector.shape_cast %110 : vector<8xf32> to vector<8x1xf32>
    %112 = math.sqrt %111 : vector<8x1xf32>
    %cst_42 = arith.constant 9.99999993E-9 : f32
    %113 = vector.broadcast %cst_42 : f32 to vector<8x1xf32>
    %114 = arith.maximumf %112, %113 : vector<8x1xf32>
    %115 = arith.mulf %108, %114 : vector<8x1xf32>
    %cst_43 = arith.constant 1.000000e+00 : f32
    %116 = vector.broadcast %cst_43 : f32 to vector<8x1xf32>
    %117 = arith.divf %116, %115 : vector<8x1xf32>
    %118 = arith.mulf %102, %117 : vector<8x1xf32>
    %119 = vector.broadcast %117 : vector<8x1xf32> to vector<8x128xf32>
    %120 = arith.mulf %99, %119 : vector<8x128xf32>
    %121 = arith.mulf %108, %108 : vector<8x1xf32>
    %122 = arith.divf %118, %121 : vector<8x1xf32>
    %123 = vector.broadcast %122 : vector<8x1xf32> to vector<8x128xf32>
    %124 = arith.mulf %98, %123 : vector<8x128xf32>
    %125 = arith.subf %120, %124 : vector<8x128xf32>
    %126 = vector.broadcast %117 : vector<8x1xf32> to vector<8x128xf32>
    %127 = arith.mulf %98, %126 : vector<8x128xf32>
    %128 = arith.mulf %114, %114 : vector<8x1xf32>
    %129 = arith.divf %118, %128 : vector<8x1xf32>
    %130 = vector.broadcast %129 : vector<8x1xf32> to vector<8x128xf32>
    %131 = arith.mulf %99, %130 : vector<8x128xf32>
    %132 = arith.subf %127, %131 : vector<8x128xf32>
    %133 = vector.broadcast %46 : vector<16x1xf32> to vector<16x128xf32>
    %134 = arith.mulf %133, %97 : vector<16x128xf32>
    %135 = tpu.concatenate %125, %132 in 0 : vector<8x128xf32>, vector<8x128xf32> -> vector<16x128xf32>
    %136 = arith.subf %134, %135 : vector<16x128xf32>
    %cst_44 = arith.constant dense<0.000000e+00> : vector<16x1024xf32>
    %137 = tpu.matmul %136, %11, %cst_44 {dimension_numbers = #tpu.dot_dimension_numbers<[1], [0], [0], [1], [0, 0, 1, 1], [], []>} : vector<16x128xf32>, vector<128x1024xf32>, vector<16x1024xf32> -> vector<16x1024xf32>
    %cst_45 = arith.constant 0.000000e+00 : f32
    %138 = vector.broadcast %cst_45 : f32 to vector<16x1024xf32>
    %139 = arith.cmpf ogt, %137, %138 : vector<16x1024xf32>
    %cst_46 = arith.constant 0.000000e+00 : f32
    %140 = vector.broadcast %cst_46 : f32 to vector<16x1024xf32>
    %141 = arith.cmpf olt, %137, %140 : vector<16x1024xf32>
    %cst_47 = arith.constant -1.000000e+00 : f32
    %cst_48 = arith.constant 0.000000e+00 : f32
    %142 = vector.broadcast %cst_47 : f32 to vector<16x1024xf32>
    %143 = vector.broadcast %cst_48 : f32 to vector<16x1024xf32>
    %144 = arith.select %141, %142, %143 : vector<16x1024xi1>, vector<16x1024xf32>
    %cst_49 = arith.constant 1.000000e+00 : f32
    %145 = vector.broadcast %cst_49 : f32 to vector<16x1024xf32>
    %146 = arith.select %139, %145, %144 : vector<16x1024xi1>, vector<16x1024xf32>
    %cst_50 = arith.constant 0.00784313772 : f32
    %147 = vector.broadcast %cst_50 : f32 to vector<16x1024xf32>
    %148 = arith.mulf %147, %146 : vector<16x1024xf32>
    %149 = arith.addf %49, %148 : vector<16x1024xf32>
    %150 = arith.maximumf %5, %149 : vector<16x1024xf32>
    %151 = arith.minimumf %9, %150 : vector<16x1024xf32>
    %c1_i32 = arith.constant 1 : i32
    %152 = arith.addf %1, %151 : vector<16x1024xf32>
    %cst_51 = arith.constant dense<0.000000e+00> : vector<16x128xf32>
    %153 = tpu.matmul %152, %10, %cst_51 {dimension_numbers = #tpu.dot_dimension_numbers<[1], [0], [0], [1], [0, 0, 1, 1], [], []>} : vector<16x1024xf32>, vector<1024x128xf32>, vector<16x128xf32> -> vector<16x128xf32>
    %cst_52 = arith.constant dense<0.000000e+00> : vector<16x128xf32>
    %154 = tpu.matmul %153, %12, %cst_52 {dimension_numbers = #tpu.dot_dimension_numbers<[1], [0], [0], [1], [0, 0, 1, 1], [], []>} : vector<16x128xf32>, vector<128x128xf32>, vector<16x128xf32> -> vector<16x128xf32>
    %155 = vector.broadcast %40 : vector<1x128xf32> to vector<16x128xf32>
    %156 = arith.addf %154, %155 : vector<16x128xf32>
    %cst_53 = arith.constant dense<0xFF800000> : vector<16xf32>
    %157 = vector.multi_reduction <maximumf>, %156, %cst_53 [1] : vector<16x128xf32> to vector<16xf32>
    %158 = vector.shape_cast %157 : vector<16xf32> to vector<16x1xf32>
    %159 = vector.broadcast %158 : vector<16x1xf32> to vector<16x128xf32>
    %160 = arith.subf %156, %159 : vector<16x128xf32>
    %161 = math.exp %160 : vector<16x128xf32>
    %162 = vector.broadcast %20 : vector<1x128xf32> to vector<16x128xf32>
    %163 = arith.mulf %161, %162 : vector<16x128xf32>
    %cst_54 = arith.constant dense<0.000000e+00> : vector<16xf32>
    %164 = vector.multi_reduction <add>, %163, %cst_54 [1] : vector<16x128xf32> to vector<16xf32>
    %165 = vector.shape_cast %164 : vector<16xf32> to vector<16x1xf32>
    %166 = vector.broadcast %27 : vector<1x128xf32> to vector<16x128xf32>
    %167 = arith.mulf %161, %166 : vector<16x128xf32>
    %cst_55 = arith.constant dense<0.000000e+00> : vector<16xf32>
    %168 = vector.multi_reduction <add>, %167, %cst_55 [1] : vector<16x128xf32> to vector<16xf32>
    %169 = vector.shape_cast %168 : vector<16xf32> to vector<16x1xf32>
    %170 = vector.broadcast %34 : vector<1x128xf32> to vector<16x128xf32>
    %171 = arith.mulf %161, %170 : vector<16x128xf32>
    %cst_56 = arith.constant dense<0.000000e+00> : vector<16xf32>
    %172 = vector.multi_reduction <add>, %171, %cst_56 [1] : vector<16x128xf32> to vector<16xf32>
    %173 = vector.shape_cast %172 : vector<16xf32> to vector<16x1xf32>
    %cst_57 = arith.constant 1.000000e-30 : f32
    %174 = vector.broadcast %cst_57 : f32 to vector<16x1xf32>
    %175 = arith.maximumf %165, %174 : vector<16x1xf32>
    %cst_58 = arith.constant 1.000000e+00 : f32
    %176 = vector.broadcast %cst_58 : f32 to vector<16x1xf32>
    %177 = arith.divf %176, %175 : vector<16x1xf32>
    %cst_59 = arith.constant 1.000000e-30 : f32
    %178 = vector.broadcast %cst_59 : f32 to vector<16x1xf32>
    %179 = arith.maximumf %169, %178 : vector<16x1xf32>
    %cst_60 = arith.constant 1.000000e+00 : f32
    %180 = vector.broadcast %cst_60 : f32 to vector<16x1xf32>
    %181 = arith.divf %180, %179 : vector<16x1xf32>
    %cst_61 = arith.constant 1.000000e-30 : f32
    %182 = vector.broadcast %cst_61 : f32 to vector<16x1xf32>
    %183 = arith.maximumf %173, %182 : vector<16x1xf32>
    %cst_62 = arith.constant 1.000000e+00 : f32
    %184 = vector.broadcast %cst_62 : f32 to vector<16x1xf32>
    %185 = arith.divf %184, %183 : vector<16x1xf32>
    %186 = vector.broadcast %177 : vector<16x1xf32> to vector<16x128xf32>
    %187 = vector.broadcast %20 : vector<1x128xf32> to vector<16x128xf32>
    %188 = arith.mulf %186, %187 : vector<16x128xf32>
    %189 = vector.broadcast %181 : vector<16x1xf32> to vector<16x128xf32>
    %190 = vector.broadcast %27 : vector<1x128xf32> to vector<16x128xf32>
    %191 = arith.mulf %189, %190 : vector<16x128xf32>
    %192 = arith.addf %188, %191 : vector<16x128xf32>
    %193 = vector.broadcast %185 : vector<16x1xf32> to vector<16x128xf32>
    %194 = vector.broadcast %34 : vector<1x128xf32> to vector<16x128xf32>
    %195 = arith.mulf %193, %194 : vector<16x128xf32>
    %196 = arith.addf %192, %195 : vector<16x128xf32>
    %197 = arith.mulf %161, %196 : vector<16x128xf32>
    %198 = arith.subf %197, %15 : vector<16x128xf32>
    %cst_63 = arith.constant dense<0.000000e+00> : vector<16x128xf32>
    %199 = tpu.matmul %198, %13, %cst_63 {dimension_numbers = #tpu.dot_dimension_numbers<[1], [0], [0], [1], [0, 0, 1, 1], [], []>} : vector<16x128xf32>, vector<128x128xf32>, vector<16x128xf32> -> vector<16x128xf32>
    %200 = vector.extract_strided_slice %153 {offsets = [0, 0], sizes = [8, 128], strides = [1, 1]} : vector<16x128xf32> to vector<8x128xf32>
    %201 = vector.extract_strided_slice %153 {offsets = [8, 0], sizes = [8, 128], strides = [1, 1]} : vector<16x128xf32> to vector<8x128xf32>
    %202 = arith.mulf %200, %201 : vector<8x128xf32>
    %cst_64 = arith.constant dense<0.000000e+00> : vector<8xf32>
    %203 = vector.multi_reduction <add>, %202, %cst_64 [1] : vector<8x128xf32> to vector<8xf32>
    %204 = vector.shape_cast %203 : vector<8xf32> to vector<8x1xf32>
    %205 = arith.mulf %200, %200 : vector<8x128xf32>
    %cst_65 = arith.constant dense<0.000000e+00> : vector<8xf32>
    %206 = vector.multi_reduction <add>, %205, %cst_65 [1] : vector<8x128xf32> to vector<8xf32>
    %207 = vector.shape_cast %206 : vector<8xf32> to vector<8x1xf32>
    %208 = math.sqrt %207 : vector<8x1xf32>
    %cst_66 = arith.constant 9.99999993E-9 : f32
    %209 = vector.broadcast %cst_66 : f32 to vector<8x1xf32>
    %210 = arith.maximumf %208, %209 : vector<8x1xf32>
    %211 = arith.mulf %201, %201 : vector<8x128xf32>
    %cst_67 = arith.constant dense<0.000000e+00> : vector<8xf32>
    %212 = vector.multi_reduction <add>, %211, %cst_67 [1] : vector<8x128xf32> to vector<8xf32>
    %213 = vector.shape_cast %212 : vector<8xf32> to vector<8x1xf32>
    %214 = math.sqrt %213 : vector<8x1xf32>
    %cst_68 = arith.constant 9.99999993E-9 : f32
    %215 = vector.broadcast %cst_68 : f32 to vector<8x1xf32>
    %216 = arith.maximumf %214, %215 : vector<8x1xf32>
    %217 = arith.mulf %210, %216 : vector<8x1xf32>
    %cst_69 = arith.constant 1.000000e+00 : f32
    %218 = vector.broadcast %cst_69 : f32 to vector<8x1xf32>
    %219 = arith.divf %218, %217 : vector<8x1xf32>
    %220 = arith.mulf %204, %219 : vector<8x1xf32>
    %221 = vector.broadcast %219 : vector<8x1xf32> to vector<8x128xf32>
    %222 = arith.mulf %201, %221 : vector<8x128xf32>
    %223 = arith.mulf %210, %210 : vector<8x1xf32>
    %224 = arith.divf %220, %223 : vector<8x1xf32>
    %225 = vector.broadcast %224 : vector<8x1xf32> to vector<8x128xf32>
    %226 = arith.mulf %200, %225 : vector<8x128xf32>
    %227 = arith.subf %222, %226 : vector<8x128xf32>
    %228 = vector.broadcast %219 : vector<8x1xf32> to vector<8x128xf32>
    %229 = arith.mulf %200, %228 : vector<8x128xf32>
    %230 = arith.mulf %216, %216 : vector<8x1xf32>
    %231 = arith.divf %220, %230 : vector<8x1xf32>
    %232 = vector.broadcast %231 : vector<8x1xf32> to vector<8x128xf32>
    %233 = arith.mulf %201, %232 : vector<8x128xf32>
    %234 = arith.subf %229, %233 : vector<8x128xf32>
    %235 = vector.broadcast %46 : vector<16x1xf32> to vector<16x128xf32>
    %236 = arith.mulf %235, %199 : vector<16x128xf32>
    %237 = tpu.concatenate %227, %234 in 0 : vector<8x128xf32>, vector<8x128xf32> -> vector<16x128xf32>
    %238 = arith.subf %236, %237 : vector<16x128xf32>
    %cst_70 = arith.constant dense<0.000000e+00> : vector<16x1024xf32>
    %239 = tpu.matmul %238, %11, %cst_70 {dimension_numbers = #tpu.dot_dimension_numbers<[1], [0], [0], [1], [0, 0, 1, 1], [], []>} : vector<16x128xf32>, vector<128x1024xf32>, vector<16x1024xf32> -> vector<16x1024xf32>
    %cst_71 = arith.constant 0.000000e+00 : f32
    %240 = vector.broadcast %cst_71 : f32 to vector<16x1024xf32>
    %241 = arith.cmpf ogt, %239, %240 : vector<16x1024xf32>
    %cst_72 = arith.constant 0.000000e+00 : f32
    %242 = vector.broadcast %cst_72 : f32 to vector<16x1024xf32>
    %243 = arith.cmpf olt, %239, %242 : vector<16x1024xf32>
    %cst_73 = arith.constant -1.000000e+00 : f32
    %cst_74 = arith.constant 0.000000e+00 : f32
    %244 = vector.broadcast %cst_73 : f32 to vector<16x1024xf32>
    %245 = vector.broadcast %cst_74 : f32 to vector<16x1024xf32>
    %246 = arith.select %243, %244, %245 : vector<16x1024xi1>, vector<16x1024xf32>
    %cst_75 = arith.constant 1.000000e+00 : f32
    %247 = vector.broadcast %cst_75 : f32 to vector<16x1024xf32>
    %248 = arith.select %241, %247, %246 : vector<16x1024xi1>, vector<16x1024xf32>
    %cst_76 = arith.constant 0.00784313772 : f32
    %249 = vector.broadcast %cst_76 : f32 to vector<16x1024xf32>
    %250 = arith.mulf %249, %248 : vector<16x1024xf32>
    %251 = arith.addf %151, %250 : vector<16x1024xf32>
    %252 = arith.maximumf %5, %251 : vector<16x1024xf32>
    %253 = arith.minimumf %9, %252 : vector<16x1024xf32>
    %c2_i32 = arith.constant 2 : i32
    %254 = arith.addf %1, %253 : vector<16x1024xf32>
    %cst_77 = arith.constant dense<0.000000e+00> : vector<16x128xf32>
    %255 = tpu.matmul %254, %10, %cst_77 {dimension_numbers = #tpu.dot_dimension_numbers<[1], [0], [0], [1], [0, 0, 1, 1], [], []>} : vector<16x1024xf32>, vector<1024x128xf32>, vector<16x128xf32> -> vector<16x128xf32>
    %cst_78 = arith.constant dense<0.000000e+00> : vector<16x128xf32>
    %256 = tpu.matmul %255, %12, %cst_78 {dimension_numbers = #tpu.dot_dimension_numbers<[1], [0], [0], [1], [0, 0, 1, 1], [], []>} : vector<16x128xf32>, vector<128x128xf32>, vector<16x128xf32> -> vector<16x128xf32>
    %257 = vector.broadcast %40 : vector<1x128xf32> to vector<16x128xf32>
    %258 = arith.addf %256, %257 : vector<16x128xf32>
    %cst_79 = arith.constant dense<0xFF800000> : vector<16xf32>
    %259 = vector.multi_reduction <maximumf>, %258, %cst_79 [1] : vector<16x128xf32> to vector<16xf32>
    %260 = vector.shape_cast %259 : vector<16xf32> to vector<16x1xf32>
    %261 = vector.broadcast %260 : vector<16x1xf32> to vector<16x128xf32>
    %262 = arith.subf %258, %261 : vector<16x128xf32>
    %263 = math.exp %262 : vector<16x128xf32>
    %264 = vector.broadcast %20 : vector<1x128xf32> to vector<16x128xf32>
    %265 = arith.mulf %263, %264 : vector<16x128xf32>
    %cst_80 = arith.constant dense<0.000000e+00> : vector<16xf32>
    %266 = vector.multi_reduction <add>, %265, %cst_80 [1] : vector<16x128xf32> to vector<16xf32>
    %267 = vector.shape_cast %266 : vector<16xf32> to vector<16x1xf32>
    %268 = vector.broadcast %27 : vector<1x128xf32> to vector<16x128xf32>
    %269 = arith.mulf %263, %268 : vector<16x128xf32>
    %cst_81 = arith.constant dense<0.000000e+00> : vector<16xf32>
    %270 = vector.multi_reduction <add>, %269, %cst_81 [1] : vector<16x128xf32> to vector<16xf32>
    %271 = vector.shape_cast %270 : vector<16xf32> to vector<16x1xf32>
    %272 = vector.broadcast %34 : vector<1x128xf32> to vector<16x128xf32>
    %273 = arith.mulf %263, %272 : vector<16x128xf32>
    %cst_82 = arith.constant dense<0.000000e+00> : vector<16xf32>
    %274 = vector.multi_reduction <add>, %273, %cst_82 [1] : vector<16x128xf32> to vector<16xf32>
    %275 = vector.shape_cast %274 : vector<16xf32> to vector<16x1xf32>
    %cst_83 = arith.constant 1.000000e-30 : f32
    %276 = vector.broadcast %cst_83 : f32 to vector<16x1xf32>
    %277 = arith.maximumf %267, %276 : vector<16x1xf32>
    %cst_84 = arith.constant 1.000000e+00 : f32
    %278 = vector.broadcast %cst_84 : f32 to vector<16x1xf32>
    %279 = arith.divf %278, %277 : vector<16x1xf32>
    %cst_85 = arith.constant 1.000000e-30 : f32
    %280 = vector.broadcast %cst_85 : f32 to vector<16x1xf32>
    %281 = arith.maximumf %271, %280 : vector<16x1xf32>
    %cst_86 = arith.constant 1.000000e+00 : f32
    %282 = vector.broadcast %cst_86 : f32 to vector<16x1xf32>
    %283 = arith.divf %282, %281 : vector<16x1xf32>
    %cst_87 = arith.constant 1.000000e-30 : f32
    %284 = vector.broadcast %cst_87 : f32 to vector<16x1xf32>
    %285 = arith.maximumf %275, %284 : vector<16x1xf32>
    %cst_88 = arith.constant 1.000000e+00 : f32
    %286 = vector.broadcast %cst_88 : f32 to vector<16x1xf32>
    %287 = arith.divf %286, %285 : vector<16x1xf32>
    %288 = vector.broadcast %279 : vector<16x1xf32> to vector<16x128xf32>
    %289 = vector.broadcast %20 : vector<1x128xf32> to vector<16x128xf32>
    %290 = arith.mulf %288, %289 : vector<16x128xf32>
    %291 = vector.broadcast %283 : vector<16x1xf32> to vector<16x128xf32>
    %292 = vector.broadcast %27 : vector<1x128xf32> to vector<16x128xf32>
    %293 = arith.mulf %291, %292 : vector<16x128xf32>
    %294 = arith.addf %290, %293 : vector<16x128xf32>
    %295 = vector.broadcast %287 : vector<16x1xf32> to vector<16x128xf32>
    %296 = vector.broadcast %34 : vector<1x128xf32> to vector<16x128xf32>
    %297 = arith.mulf %295, %296 : vector<16x128xf32>
    %298 = arith.addf %294, %297 : vector<16x128xf32>
    %299 = arith.mulf %263, %298 : vector<16x128xf32>
    %300 = arith.subf %299, %15 : vector<16x128xf32>
    %cst_89 = arith.constant dense<0.000000e+00> : vector<16x128xf32>
    %301 = tpu.matmul %300, %13, %cst_89 {dimension_numbers = #tpu.dot_dimension_numbers<[1], [0], [0], [1], [0, 0, 1, 1], [], []>} : vector<16x128xf32>, vector<128x128xf32>, vector<16x128xf32> -> vector<16x128xf32>
    %302 = vector.extract_strided_slice %255 {offsets = [0, 0], sizes = [8, 128], strides = [1, 1]} : vector<16x128xf32> to vector<8x128xf32>
    %303 = vector.extract_strided_slice %255 {offsets = [8, 0], sizes = [8, 128], strides = [1, 1]} : vector<16x128xf32> to vector<8x128xf32>
    %304 = arith.mulf %302, %303 : vector<8x128xf32>
    %cst_90 = arith.constant dense<0.000000e+00> : vector<8xf32>
    %305 = vector.multi_reduction <add>, %304, %cst_90 [1] : vector<8x128xf32> to vector<8xf32>
    %306 = vector.shape_cast %305 : vector<8xf32> to vector<8x1xf32>
    %307 = arith.mulf %302, %302 : vector<8x128xf32>
    %cst_91 = arith.constant dense<0.000000e+00> : vector<8xf32>
    %308 = vector.multi_reduction <add>, %307, %cst_91 [1] : vector<8x128xf32> to vector<8xf32>
    %309 = vector.shape_cast %308 : vector<8xf32> to vector<8x1xf32>
    %310 = math.sqrt %309 : vector<8x1xf32>
    %cst_92 = arith.constant 9.99999993E-9 : f32
    %311 = vector.broadcast %cst_92 : f32 to vector<8x1xf32>
    %312 = arith.maximumf %310, %311 : vector<8x1xf32>
    %313 = arith.mulf %303, %303 : vector<8x128xf32>
    %cst_93 = arith.constant dense<0.000000e+00> : vector<8xf32>
    %314 = vector.multi_reduction <add>, %313, %cst_93 [1] : vector<8x128xf32> to vector<8xf32>
    %315 = vector.shape_cast %314 : vector<8xf32> to vector<8x1xf32>
    %316 = math.sqrt %315 : vector<8x1xf32>
    %cst_94 = arith.constant 9.99999993E-9 : f32
    %317 = vector.broadcast %cst_94 : f32 to vector<8x1xf32>
    %318 = arith.maximumf %316, %317 : vector<8x1xf32>
    %319 = arith.mulf %312, %318 : vector<8x1xf32>
    %cst_95 = arith.constant 1.000000e+00 : f32
    %320 = vector.broadcast %cst_95 : f32 to vector<8x1xf32>
    %321 = arith.divf %320, %319 : vector<8x1xf32>
    %322 = arith.mulf %306, %321 : vector<8x1xf32>
    %323 = vector.broadcast %321 : vector<8x1xf32> to vector<8x128xf32>
    %324 = arith.mulf %303, %323 : vector<8x128xf32>
    %325 = arith.mulf %312, %312 : vector<8x1xf32>
    %326 = arith.divf %322, %325 : vector<8x1xf32>
    %327 = vector.broadcast %326 : vector<8x1xf32> to vector<8x128xf32>
    %328 = arith.mulf %302, %327 : vector<8x128xf32>
    %329 = arith.subf %324, %328 : vector<8x128xf32>
    %330 = vector.broadcast %321 : vector<8x1xf32> to vector<8x128xf32>
    %331 = arith.mulf %302, %330 : vector<8x128xf32>
    %332 = arith.mulf %318, %318 : vector<8x1xf32>
    %333 = arith.divf %322, %332 : vector<8x1xf32>
    %334 = vector.broadcast %333 : vector<8x1xf32> to vector<8x128xf32>
    %335 = arith.mulf %303, %334 : vector<8x128xf32>
    %336 = arith.subf %331, %335 : vector<8x128xf32>
    %337 = vector.broadcast %46 : vector<16x1xf32> to vector<16x128xf32>
    %338 = arith.mulf %337, %301 : vector<16x128xf32>
    %339 = tpu.concatenate %329, %336 in 0 : vector<8x128xf32>, vector<8x128xf32> -> vector<16x128xf32>
    %340 = arith.subf %338, %339 : vector<16x128xf32>
    %cst_96 = arith.constant dense<0.000000e+00> : vector<16x1024xf32>
    %341 = tpu.matmul %340, %11, %cst_96 {dimension_numbers = #tpu.dot_dimension_numbers<[1], [0], [0], [1], [0, 0, 1, 1], [], []>} : vector<16x128xf32>, vector<128x1024xf32>, vector<16x1024xf32> -> vector<16x1024xf32>
    %cst_97 = arith.constant 0.000000e+00 : f32
    %342 = vector.broadcast %cst_97 : f32 to vector<16x1024xf32>
    %343 = arith.cmpf ogt, %341, %342 : vector<16x1024xf32>
    %cst_98 = arith.constant 0.000000e+00 : f32
    %344 = vector.broadcast %cst_98 : f32 to vector<16x1024xf32>
    %345 = arith.cmpf olt, %341, %344 : vector<16x1024xf32>
    %cst_99 = arith.constant -1.000000e+00 : f32
    %cst_100 = arith.constant 0.000000e+00 : f32
    %346 = vector.broadcast %cst_99 : f32 to vector<16x1024xf32>
    %347 = vector.broadcast %cst_100 : f32 to vector<16x1024xf32>
    %348 = arith.select %345, %346, %347 : vector<16x1024xi1>, vector<16x1024xf32>
    %cst_101 = arith.constant 1.000000e+00 : f32
    %349 = vector.broadcast %cst_101 : f32 to vector<16x1024xf32>
    %350 = arith.select %343, %349, %348 : vector<16x1024xi1>, vector<16x1024xf32>
    %cst_102 = arith.constant 0.00784313772 : f32
    %351 = vector.broadcast %cst_102 : f32 to vector<16x1024xf32>
    %352 = arith.mulf %351, %350 : vector<16x1024xf32>
    %353 = arith.addf %253, %352 : vector<16x1024xf32>
    %354 = arith.maximumf %5, %353 : vector<16x1024xf32>
    %355 = arith.minimumf %9, %354 : vector<16x1024xf32>
    %356 = vector.extract_strided_slice %355 {offsets = [0, 0], sizes = [8, 1024], strides = [1, 1]} : vector<16x1024xf32> to vector<8x1024xf32>
    %357 = arith.addf %0, %356 : vector<8x1024xf32>
    %c0_103 = arith.constant 0 : index
    %c0_104 = arith.constant 0 : index
    %358 = vector.load %arg9[%c0_103, %c0_104] : memref<8x1024xf32, #tpu.memory_space<vmem>>, vector<8x1024xf32>
    tpu.vector_store %arg9[%c0_103, %c0_104], %357 {strides = array<i32>} : memref<8x1024xf32, #tpu.memory_space<vmem>>, vector<8x1024xf32>,
    %359 = vector.extract_strided_slice %355 {offsets = [8, 0], sizes = [8, 1024], strides = [1, 1]} : vector<16x1024xf32> to vector<8x1024xf32>
    %360 = arith.addf %0, %359 : vector<8x1024xf32>
    %c0_105 = arith.constant 0 : index
    %c0_106 = arith.constant 0 : index
    %361 = vector.load %arg10[%c0_105, %c0_106] : memref<8x1024xf32, #tpu.memory_space<vmem>>, vector<8x1024xf32>
    tpu.vector_store %arg10[%c0_105, %c0_106], %360 {strides = array<i32>} : memref<8x1024xf32, #tpu.memory_space<vmem>>, vector<8x1024xf32>,
    return
  }
  func.func @transform_0(%arg0: i32) -> (i32, i32) {
    %c0_i32 = arith.constant 0 : i32
    %c0_i32_0 = arith.constant 0 : i32
    return %arg0, %c0_i32 : i32, i32
  }
  func.func @transform_1(%arg0: i32) -> (i32, i32) {
    %c0_i32 = arith.constant 0 : i32
    %c0_i32_0 = arith.constant 0 : i32
    return %arg0, %c0_i32 : i32, i32
  }
  func.func @transform_2(%arg0: i32) -> (i32, i32) {
    %c0_i32 = arith.constant 0 : i32
    %c0_i32_0 = arith.constant 0 : i32
    return %arg0, %c0_i32 : i32, i32
  }
  func.func @transform_3(%arg0: i32) -> (i32, i32) {
    %c0_i32 = arith.constant 0 : i32
    %c0_i32_0 = arith.constant 0 : i32
    return %arg0, %c0_i32 : i32, i32
  }
  func.func @transform_4(%arg0: i32) -> (i32, i32) {
    %c0_i32 = arith.constant 0 : i32
    %c0_i32_0 = arith.constant 0 : i32
    %c0_i32_1 = arith.constant 0 : i32
    return %c0_i32, %c0_i32_0 : i32, i32
  }
  func.func @transform_5(%arg0: i32) -> (i32, i32) {
    %c0_i32 = arith.constant 0 : i32
    %c0_i32_0 = arith.constant 0 : i32
    %c0_i32_1 = arith.constant 0 : i32
    return %c0_i32, %c0_i32_0 : i32, i32
  }
  func.func @transform_6(%arg0: i32) -> (i32, i32) {
    %c0_i32 = arith.constant 0 : i32
    %c0_i32_0 = arith.constant 0 : i32
    %c0_i32_1 = arith.constant 0 : i32
    return %c0_i32, %c0_i32_0 : i32, i32
  }
  func.func @transform_7(%arg0: i32) -> (i32, i32) {
    %c0_i32 = arith.constant 0 : i32
    %c0_i32_0 = arith.constant 0 : i32
    %c0_i32_1 = arith.constant 0 : i32
    return %c0_i32, %c0_i32_0 : i32, i32
  }
  func.func @transform_8(%arg0: i32) -> (i32, i32) {
    %c0_i32 = arith.constant 0 : i32
    %c0_i32_0 = arith.constant 0 : i32
    return %arg0, %c0_i32 : i32, i32
  }
  func.func @transform_9(%arg0: i32) -> (i32, i32) {
    %c0_i32 = arith.constant 0 : i32
    %c0_i32_0 = arith.constant 0 : i32
    return %arg0, %c0_i32 : i32, i32
  }
}

</mosaic_0001>

<llo_original>
// kernel: attack_pgd_prototestadv2.1
$region0: #{attack_pgd_prototestadv2.1}
  #allocation0 [shape = 'u32[]', space=smem, size = 0x4, offset = 0x4, fixed_abs, tag = 'smem constant byte address 0x4 - core index']
  #allocation1 [shape = 'u32[72,128]{1,0:T(1,128)}', space=vmem, size = 0x9000, scoped, tag = 'internal scratch']
  %s0 = inlined_call_operand.vmem [shape: f32[8,1024], index: 0, kind: input, shape index: {}]
  %s1 = inlined_call_operand.vmem [shape: f32[8,1024], index: 1, kind: input, shape index: {}, may-alias: {1,8}]
  %s2 = inlined_call_operand.vmem [shape: f32[8,1024], index: 2, kind: input, shape index: {}, may-alias: {2,9}]
  %s3 = inlined_call_operand.vmem [shape: f32[8,128], index: 3, kind: input, shape index: {}]
  %s4 = inlined_call_operand.vmem [shape: f32[1024,128], index: 4, kind: input, shape index: {}]
  %s5 = inlined_call_operand.vmem [shape: f32[128,1024], index: 5, kind: input, shape index: {}]
  %s6 = inlined_call_operand.vmem [shape: f32[128,128], index: 6, kind: input, shape index: {}]
  %s7 = inlined_call_operand.vmem [shape: f32[128,128], index: 7, kind: input, shape index: {}]
  %s8 = inlined_call_operand.vmem [shape: f32[8,1024], index: 8, kind: output, shape index: {0}, may-alias: {1,8}]
  %s9 = inlined_call_operand.vmem [shape: f32[8,1024], index: 9, kind: output, shape index: {1}, may-alias: {2,9}]
  %10 = xla_tuple %s8, %s9
  %s11 = sld [smem:[#allocation0]]
  $region50: #{attack_pgd_prototestadv2.1} parent=0
    _
  %s13 = ssub.s32 1, %s11
  %s14 = scalar_select 0, %s13, %s11
  // Predicated region
  $region2: #{attack_pgd_prototestadv2.1} parent=0 // pred_check
    _
  $region3: #{attack_pgd_prototestadv2.1} parent=0 // pred_check_branch
    %16 = sbr.rel (0) target = $region5
  $region4: #{attack_pgd_prototestadv2.1} parent=0 // pred_region
    _
  $region5: #{attack_pgd_prototestadv2.1} parent=0 // pred_fallthru
    _
  // Predicated region
  $region6: #{attack_pgd_prototestadv2.1} parent=0 // pred_check
    _
  $region7: #{attack_pgd_prototestadv2.1} parent=0 // pred_check_branch
    %18 = sbr.rel (0) target = $region9
  $region8: #{attack_pgd_prototestadv2.1} parent=0 // pred_region
    _
  $region9: #{attack_pgd_prototestadv2.1} parent=0 // pred_fallthru
    _
  // Predicated region
  $region10: #{attack_pgd_prototestadv2.1} parent=0 // pred_check
    _
  $region11: #{attack_pgd_prototestadv2.1} parent=0 // pred_check_branch
    %20 = sbr.rel (0) target = $region13
  $region12: #{attack_pgd_prototestadv2.1} parent=0 // pred_region
    _
  $region13: #{attack_pgd_prototestadv2.1} parent=0 // pred_fallthru
    _
  // Predicated region
  $region14: #{attack_pgd_prototestadv2.1} parent=0 // pred_check
    _
  $region15: #{attack_pgd_prototestadv2.1} parent=0 // pred_check_branch
    %22 = sbr.rel (0) target = $region17
  $region16: #{attack_pgd_prototestadv2.1} parent=0 // pred_region
    _
  $region17: #{attack_pgd_prototestadv2.1} parent=0 // pred_fallthru
    _
  // Predicated region
  $region18: #{attack_pgd_prototestadv2.1} parent=0 // pred_check
    _
  $region19: #{attack_pgd_prototestadv2.1} parent=0 // pred_check_branch
    %24 = sbr.rel (0) target = $region21
  $region20: #{attack_pgd_prototestadv2.1} parent=0 // pred_region
    _
  $region21: #{attack_pgd_prototestadv2.1} parent=0 // pred_fallthru
    _
  // Predicated region
  $region22: #{attack_pgd_prototestadv2.1} parent=0 // pred_check
    _
  $region23: #{attack_pgd_prototestadv2.1} parent=0 // pred_check_branch
    %26 = sbr.rel (0) target = $region25
  $region24: #{attack_pgd_prototestadv2.1} parent=0 // pred_region
    _
  $region25: #{attack_pgd_prototestadv2.1} parent=0 // pred_fallthru
    _
  // Predicated region
  $region26: #{attack_pgd_prototestadv2.1} parent=0 // pred_check
    _
  $region27: #{attack_pgd_prototestadv2.1} parent=0 // pred_check_branch
    %28 = sbr.rel (0) target = $region29
  $region28: #{attack_pgd_prototestadv2.1} parent=0 // pred_region
    _
  $region29: #{attack_pgd_prototestadv2.1} parent=0 // pred_fallthru
    _
  // Predicated region
  $region30: #{attack_pgd_prototestadv2.1} parent=0 // pred_check
    _
  $region31: #{attack_pgd_prototestadv2.1} parent=0 // pred_check_branch
    %30 = sbr.rel (0) target = $region33
  $region32: #{attack_pgd_prototestadv2.1} parent=0 // pred_region
    _
  $region33: #{attack_pgd_prototestadv2.1} parent=0 // pred_fallthru
    _
  %v31 = vld [vmem:[%s0] sm:$0xff]
  %v32 = vld [vmem:[%s0 + $0x8] sm:$0xff]
  %v33 = vld [vmem:[%s0 + $0x10] sm:$0xff]
  %v34 = vld [vmem:[%s0 + $0x18] sm:$0xff]
  %v35 = vld [vmem:[%s0 + $0x20] sm:$0xff]
  %v36 = vld [vmem:[%s0 + $0x28] sm:$0xff]
  %v37 = vld [vmem:[%s0 + $0x30] sm:$0xff]
  %v38 = vld [vmem:[%s0 + $0x38] sm:$0xff]
  %v39 = vsub.f32 0.0, %v31
  %v40 = vsub.f32 0.0, %v32
  %v41 = vsub.f32 0.0, %v33
  %v42 = vsub.f32 0.0, %v34
  %v43 = vsub.f32 0.0, %v35
  %v44 = vsub.f32 0.0, %v36
  %v45 = vsub.f32 0.0, %v37
  %v46 = vsub.f32 0.0, %v38
  %v47 = vmax.f32 %v39, -0.03137255
  %v48 = vmax.f32 %v40, -0.03137255
  %v49 = vmax.f32 %v41, -0.03137255
  %v50 = vmax.f32 %v42, -0.03137255
  %v51 = vmax.f32 %v43, -0.03137255
  %v52 = vmax.f32 %v44, -0.03137255
  %v53 = vmax.f32 %v45, -0.03137255
  %v54 = vmax.f32 %v46, -0.03137255
  %v55 = vsub.f32 1.0, %v31
  %v56 = vsub.f32 1.0, %v32
  %v57 = vsub.f32 1.0, %v33
  %v58 = vsub.f32 1.0, %v34
  %v59 = vsub.f32 1.0, %v35
  %v60 = vsub.f32 1.0, %v36
  %v61 = vsub.f32 1.0, %v37
  %v62 = vsub.f32 1.0, %v38
  %v63 = vmin.f32 %v55, 0.03137255
  %v64 = vmin.f32 %v56, 0.03137255
  %v65 = vmin.f32 %v57, 0.03137255
  %v66 = vmin.f32 %v58, 0.03137255
  %v67 = vmin.f32 %v59, 0.03137255
  %v68 = vmin.f32 %v60, 0.03137255
  %v69 = vmin.f32 %v61, 0.03137255
  %v70 = vmin.f32 %v62, 0.03137255
  %v71 = vld [vmem:[%s4] sm:$0xff]
  %v72 = vld [vmem:[%s4 + $0x8] sm:$0xff]
  %v73 = vld [vmem:[%s4 + $0x10] sm:$0xff]
  %v74 = vld [vmem:[%s4 + $0x18] sm:$0xff]
  %v75 = vld [vmem:[%s4 + $0x20] sm:$0xff]
  %v76 = vld [vmem:[%s4 + $0x28] sm:$0xff]
  %v77 = vld [vmem:[%s4 + $0x30] sm:$0xff]
  %v78 = vld [vmem:[%s4 + $0x38] sm:$0xff]
  %v79 = vld [vmem:[%s4 + $0x40] sm:$0xff]
  %v80 = vld [vmem:[%s4 + $0x48] sm:$0xff]
  %v81 = vld [vmem:[%s4 + $0x50] sm:$0xff]
  %v82 = vld [vmem:[%s4 + $0x58] sm:$0xff]
  %v83 = vld [vmem:[%s4 + $0x60] sm:$0xff]
  %v84 = vld [vmem:[%s4 + $0x68] sm:$0xff]
  %v85 = vld [vmem:[%s4 + $0x70] sm:$0xff]
  %v86 = vld [vmem:[%s4 + $0x78] sm:$0xff]
  %v87 = vld [vmem:[%s4 + $0x80] sm:$0xff]
  %v88 = vld [vmem:[%s4 + $0x88] sm:$0xff]
  %v89 = vld [vmem:[%s4 + $0x90] sm:$0xff]
  %v90 = vld [vmem:[%s4 + $0x98] sm:$0xff]
  %v91 = vld [vmem:[%s4 + $0xa0] sm:$0xff]
  %v92 = vld [vmem:[%s4 + $0xa8] sm:$0xff]
  %v93 = vld [vmem:[%s4 + $0xb0] sm:$0xff]
  %v94 = vld [vmem:[%s4 + $0xb8] sm:$0xff]
  %v95 = vld [vmem:[%s4 + $0xc0] sm:$0xff]
  %v96 = vld [vmem:[%s4 + $0xc8] sm:$0xff]
  %v97 = vld [vmem:[%s4 + $0xd0] sm:$0xff]
  %v98 = vld [vmem:[%s4 + $0xd8] sm:$0xff]
  %v99 = vld [vmem:[%s4 + $0xe0] sm:$0xff]
  %v100 = vld [vmem:[%s4 + $0xe8] sm:$0xff]
  %v101 = vld [vmem:[%s4 + $0xf0] sm:$0xff]
  %v102 = vld [vmem:[%s4 + $0xf8] sm:$0xff]
  %v103 = vld [vmem:[%s4 + $0x100] sm:$0xff]
  %v104 = vld [vmem:[%s4 + $0x108] sm:$0xff]
  %v105 = vld [vmem:[%s4 + $0x110] sm:$0xff]
  %v106 = vld [vmem:[%s4 + $0x118] sm:$0xff]
  %v107 = vld [vmem:[%s4 + $0x120] sm:$0xff]
  %v108 = vld [vmem:[%s4 + $0x128] sm:$0xff]
  %v109 = vld [vmem:[%s4 + $0x130] sm:$0xff]
  %v110 = vld [vmem:[%s4 + $0x138] sm:$0xff]
  %v111 = vld [vmem:[%s4 + $0x140] sm:$0xff]
  %v112 = vld [vmem:[%s4 + $0x148] sm:$0xff]
  %v113 = vld [vmem:[%s4 + $0x150] sm:$0xff]
  %v114 = vld [vmem:[%s4 + $0x158] sm:$0xff]
  %v115 = vld [vmem:[%s4 + $0x160] sm:$0xff]
  %v116 = vld [vmem:[%s4 + $0x168] sm:$0xff]
  %v117 = vld [vmem:[%s4 + $0x170] sm:$0xff]
  %v118 = vld [vmem:[%s4 + $0x178] sm:$0xff]
  %v119 = vld [vmem:[%s4 + $0x180] sm:$0xff]
  %v120 = vld [vmem:[%s4 + $0x188] sm:$0xff]
  %v121 = vld [vmem:[%s4 + $0x190] sm:$0xff]
  %v122 = vld [vmem:[%s4 + $0x198] sm:$0xff]
  %v123 = vld [vmem:[%s4 + $0x1a0] sm:$0xff]
  %v124 = vld [vmem:[%s4 + $0x1a8] sm:$0xff]
  %v125 = vld [vmem:[%s4 + $0x1b0] sm:$0xff]
  %v126 = vld [vmem:[%s4 + $0x1b8] sm:$0xff]
  %v127 = vld [vmem:[%s4 + $0x1c0] sm:$0xff]
  %v128 = vld [vmem:[%s4 + $0x1c8] sm:$0xff]
  %v129 = vld [vmem:[%s4 + $0x1d0] sm:$0xff]
  %v130 = vld [vmem:[%s4 + $0x1d8] sm:$0xff]
  %v131 = vld [vmem:[%s4 + $0x1e0] sm:$0xff]
  %v132 = vld [vmem:[%s4 + $0x1e8] sm:$0xff]
  %v133 = vld [vmem:[%s4 + $0x1f0] sm:$0xff]
  %v134 = vld [vmem:[%s4 + $0x1f8] sm:$0xff]
  %v135 = vld [vmem:[%s4 + $0x200] sm:$0xff]
  %v136 = vld [vmem:[%s4 + $0x208] sm:$0xff]
  %v137 = vld [vmem:[%s4 + $0x210] sm:$0xff]
  %v138 = vld [vmem:[%s4 + $0x218] sm:$0xff]
  %v139 = vld [vmem:[%s4 + $0x220] sm:$0xff]
  %v140 = vld [vmem:[%s4 + $0x228] sm:$0xff]
  %v141 = vld [vmem:[%s4 + $0x230] sm:$0xff]
  %v142 = vld [vmem:[%s4 + $0x238] sm:$0xff]
  %v143 = vld [vmem:[%s4 + $0x240] sm:$0xff]
  %v144 = vld [vmem:[%s4 + $0x248] sm:$0xff]
  %v145 = vld [vmem:[%s4 + $0x250] sm:$0xff]
  %v146 = vld [vmem:[%s4 + $0x258] sm:$0xff]
  %v147 = vld [vmem:[%s4 + $0x260] sm:$0xff]
  %v148 = vld [vmem:[%s4 + $0x268] sm:$0xff]
  %v149 = vld [vmem:[%s4 + $0x270] sm:$0xff]
  %v150 = vld [vmem:[%s4 + $0x278] sm:$0xff]
  %v151 = vld [vmem:[%s4 + $0x280] sm:$0xff]
  %v152 = vld [vmem:[%s4 + $0x288] sm:$0xff]
  %v153 = vld [vmem:[%s4 + $0x290] sm:$0xff]
  %v154 = vld [vmem:[%s4 + $0x298] sm:$0xff]
  %v155 = vld [vmem:[%s4 + $0x2a0] sm:$0xff]
  %v156 = vld [vmem:[%s4 + $0x2a8] sm:$0xff]
  %v157 = vld [vmem:[%s4 + $0x2b0] sm:$0xff]
  %v158 = vld [vmem:[%s4 + $0x2b8] sm:$0xff]
  %v159 = vld [vmem:[%s4 + $0x2c0] sm:$0xff]
  %v160 = vld [vmem:[%s4 + $0x2c8] sm:$0xff]
  %v161 = vld [vmem:[%s4 + $0x2d0] sm:$0xff]
  %v162 = vld [vmem:[%s4 + $0x2d8] sm:$0xff]
  %v163 = vld [vmem:[%s4 + $0x2e0] sm:$0xff]
  %v164 = vld [vmem:[%s4 + $0x2e8] sm:$0xff]
  %v165 = vld [vmem:[%s4 + $0x2f0] sm:$0xff]
  %v166 = vld [vmem:[%s4 + $0x2f8] sm:$0xff]
  %v167 = vld [vmem:[%s4 + $0x300] sm:$0xff]
  %v168 = vld [vmem:[%s4 + $0x308] sm:$0xff]
  %v169 = vld [vmem:[%s4 + $0x310] sm:$0xff]
  %v170 = vld [vmem:[%s4 + $0x318] sm:$0xff]
  %v171 = vld [vmem:[%s4 + $0x320] sm:$0xff]
  %v172 = vld [vmem:[%s4 + $0x328] sm:$0xff]
  %v173 = vld [vmem:[%s4 + $0x330] sm:$0xff]
  %v174 = vld [vmem:[%s4 + $0x338] sm:$0xff]
  %v175 = vld [vmem:[%s4 + $0x340] sm:$0xff]
  %v176 = vld [vmem:[%s4 + $0x348] sm:$0xff]
  %v177 = vld [vmem:[%s4 + $0x350] sm:$0xff]
  %v178 = vld [vmem:[%s4 + $0x358] sm:$0xff]
  %v179 = vld [vmem:[%s4 + $0x360] sm:$0xff]
  %v180 = vld [vmem:[%s4 + $0x368] sm:$0xff]
  %v181 = vld [vmem:[%s4 + $0x370] sm:$0xff]
  %v182 = vld [vmem:[%s4 + $0x378] sm:$0xff]
  %v183 = vld [vmem:[%s4 + $0x380] sm:$0xff]
  %v184 = vld [vmem:[%s4 + $0x388] sm:$0xff]
  %v185 = vld [vmem:[%s4 + $0x390] sm:$0xff]
  %v186 = vld [vmem:[%s4 + $0x398] sm:$0xff]
  %v187 = vld [vmem:[%s4 + $0x3a0] sm:$0xff]
  %v188 = vld [vmem:[%s4 + $0x3a8] sm:$0xff]
  %v189 = vld [vmem:[%s4 + $0x3b0] sm:$0xff]
  %v190 = vld [vmem:[%s4 + $0x3b8] sm:$0xff]
  %v191 = vld [vmem:[%s4 + $0x3c0] sm:$0xff]
  %v192 = vld [vmem:[%s4 + $0x3c8] sm:$0xff]
  %v193 = vld [vmem:[%s4 + $0x3d0] sm:$0xff]
  %v194 = vld [vmem:[%s4 + $0x3d8] sm:$0xff]
  %v195 = vld [vmem:[%s4 + $0x3e0] sm:$0xff]
  %v196 = vld [vmem:[%s4 + $0x3e8] sm:$0xff]
  %v197 = vld [vmem:[%s4 + $0x3f0] sm:$0xff]
  %v198 = vld [vmem:[%s4 + $0x3f8] sm:$0xff]
  %v199 = vld [vmem:[%s5] sm:$0xff]
  %v200 = vld [vmem:[%s5 + $0x8] sm:$0xff]
  %v201 = vld [vmem:[%s5 + $0x10] sm:$0xff]
  %v202 = vld [vmem:[%s5 + $0x18] sm:$0xff]
  %v203 = vld [vmem:[%s5 + $0x20] sm:$0xff]
  %v204 = vld [vmem:[%s5 + $0x28] sm:$0xff]
  %v205 = vld [vmem:[%s5 + $0x30] sm:$0xff]
  %v206 = vld [vmem:[%s5 + $0x38] sm:$0xff]
  %v207 = vld [vmem:[%s5 + $0x40] sm:$0xff]
  %v208 = vld [vmem:[%s5 + $0x48] sm:$0xff]
  %v209 = vld [vmem:[%s5 + $0x50] sm:$0xff]
  %v210 = vld [vmem:[%s5 + $0x58] sm:$0xff]
  %v211 = vld [vmem:[%s5 + $0x60] sm:$0xff]
  %v212 = vld [vmem:[%s5 + $0x68] sm:$0xff]
  %v213 = vld [vmem:[%s5 + $0x70] sm:$0xff]
  %v214 = vld [vmem:[%s5 + $0x78] sm:$0xff]
  %v215 = vld [vmem:[%s5 + $0x80] sm:$0xff]
  %v216 = vld [vmem:[%s5 + $0x88] sm:$0xff]
  %v217 = vld [vmem:[%s5 + $0x90] sm:$0xff]
  %v218 = vld [vmem:[%s5 + $0x98] sm:$0xff]
  %v219 = vld [vmem:[%s5 + $0xa0] sm:$0xff]
  %v220 = vld [vmem:[%s5 + $0xa8] sm:$0xff]
  %v221 = vld [vmem:[%s5 + $0xb0] sm:$0xff]
  %v222 = vld [vmem:[%s5 + $0xb8] sm:$0xff]
  %v223 = vld [vmem:[%s5 + $0xc0] sm:$0xff]
  %v224 = vld [vmem:[%s5 + $0xc8] sm:$0xff]
  %v225 = vld [vmem:[%s5 + $0xd0] sm:$0xff]
  %v226 = vld [vmem:[%s5 + $0xd8] sm:$0xff]
  %v227 = vld [vmem:[%s5 + $0xe0] sm:$0xff]
  %v228 = vld [vmem:[%s5 + $0xe8] sm:$0xff]
  %v229 = vld [vmem:[%s5 + $0xf0] sm:$0xff]
  %v230 = vld [vmem:[%s5 + $0xf8] sm:$0xff]
  %v231 = vld [vmem:[%s5 + $0x100] sm:$0xff]
  %v232 = vld [vmem:[%s5 + $0x108] sm:$0xff]
  %v233 = vld [vmem:[%s5 + $0x110] sm:$0xff]
  %v234 = vld [vmem:[%s5 + $0x118] sm:$0xff]
  %v235 = vld [vmem:[%s5 + $0x120] sm:$0xff]
  %v236 = vld [vmem:[%s5 + $0x128] sm:$0xff]
  %v237 = vld [vmem:[%s5 + $0x130] sm:$0xff]
  %v238 = vld [vmem:[%s5 + $0x138] sm:$0xff]
  %v239 = vld [vmem:[%s5 + $0x140] sm:$0xff]
  %v240 = vld [vmem:[%s5 + $0x148] sm:$0xff]
  %v241 = vld [vmem:[%s5 + $0x150] sm:$0xff]
  %v242 = vld [vmem:[%s5 + $0x158] sm:$0xff]
  %v243 = vld [vmem:[%s5 + $0x160] sm:$0xff]
  %v244 = vld [vmem:[%s5 + $0x168] sm:$0xff]
  %v245 = vld [vmem:[%s5 + $0x170] sm:$0xff]
  %v246 = vld [vmem:[%s5 + $0x178] sm:$0xff]
  %v247 = vld [vmem:[%s5 + $0x180] sm:$0xff]
  %v248 = vld [vmem:[%s5 + $0x188] sm:$0xff]
  %v249 = vld [vmem:[%s5 + $0x190] sm:$0xff]
  %v250 = vld [vmem:[%s5 + $0x198] sm:$0xff]
  %v251 = vld [vmem:[%s5 + $0x1a0] sm:$0xff]
  %v252 = vld [vmem:[%s5 + $0x1a8] sm:$0xff]
  %v253 = vld [vmem:[%s5 + $0x1b0] sm:$0xff]
  %v254 = vld [vmem:[%s5 + $0x1b8] sm:$0xff]
  %v255 = vld [vmem:[%s5 + $0x1c0] sm:$0xff]
  %v256 = vld [vmem:[%s5 + $0x1c8] sm:$0xff]
  %v257 = vld [vmem:[%s5 + $0x1d0] sm:$0xff]
  %v258 = vld [vmem:[%s5 + $0x1d8] sm:$0xff]
  %v259 = vld [vmem:[%s5 + $0x1e0] sm:$0xff]
  %v260 = vld [vmem:[%s5 + $0x1e8] sm:$0xff]
  %v261 = vld [vmem:[%s5 + $0x1f0] sm:$0xff]
  %v262 = vld [vmem:[%s5 + $0x1f8] sm:$0xff]
  %v263 = vld [vmem:[%s5 + $0x200] sm:$0xff]
  %v264 = vld [vmem:[%s5 + $0x208] sm:$0xff]
  %v265 = vld [vmem:[%s5 + $0x210] sm:$0xff]
  %v266 = vld [vmem:[%s5 + $0x218] sm:$0xff]
  %v267 = vld [vmem:[%s5 + $0x220] sm:$0xff]
  %v268 = vld [vmem:[%s5 + $0x228] sm:$0xff]
  %v269 = vld [vmem:[%s5 + $0x230] sm:$0xff]
  %v270 = vld [vmem:[%s5 + $0x238] sm:$0xff]
  %v271 = vld [vmem:[%s5 + $0x240] sm:$0xff]
  %v272 = vld [vmem:[%s5 + $0x248] sm:$0xff]
  %v273 = vld [vmem:[%s5 + $0x250] sm:$0xff]
  %v274 = vld [vmem:[%s5 + $0x258] sm:$0xff]
  %v275 = vld [vmem:[%s5 + $0x260] sm:$0xff]
  %v276 = vld [vmem:[%s5 + $0x268] sm:$0xff]
  %v277 = vld [vmem:[%s5 + $0x270] sm:$0xff]
  %v278 = vld [vmem:[%s5 + $0x278] sm:$0xff]
  %v279 = vld [vmem:[%s5 + $0x280] sm:$0xff]
  %v280 = vld [vmem:[%s5 + $0x288] sm:$0xff]
  %v281 = vld [vmem:[%s5 + $0x290] sm:$0xff]
  %v282 = vld [vmem:[%s5 + $0x298] sm:$0xff]
  %v283 = vld [vmem:[%s5 + $0x2a0] sm:$0xff]
  %v284 = vld [vmem:[%s5 + $0x2a8] sm:$0xff]
  %v285 = vld [vmem:[%s5 + $0x2b0] sm:$0xff]
  %v286 = vld [vmem:[%s5 + $0x2b8] sm:$0xff]
  %v287 = vld [vmem:[%s5 + $0x2c0] sm:$0xff]
  %v288 = vld [vmem:[%s5 + $0x2c8] sm:$0xff]
  %v289 = vld [vmem:[%s5 + $0x2d0] sm:$0xff]
  %v290 = vld [vmem:[%s5 + $0x2d8] sm:$0xff]
  %v291 = vld [vmem:[%s5 + $0x2e0] sm:$0xff]
  %v292 = vld [vmem:[%s5 + $0x2e8] sm:$0xff]
  %v293 = vld [vmem:[%s5 + $0x2f0] sm:$0xff]
  %v294 = vld [vmem:[%s5 + $0x2f8] sm:$0xff]
  %v295 = vld [vmem:[%s5 + $0x300] sm:$0xff]
  %v296 = vld [vmem:[%s5 + $0x308] sm:$0xff]
  %v297 = vld [vmem:[%s5 + $0x310] sm:$0xff]
  %v298 = vld [vmem:[%s5 + $0x318] sm:$0xff]
  %v299 = vld [vmem:[%s5 + $0x320] sm:$0xff]
  %v300 = vld [vmem:[%s5 + $0x328] sm:$0xff]
  %v301 = vld [vmem:[%s5 + $0x330] sm:$0xff]
  %v302 = vld [vmem:[%s5 + $0x338] sm:$0xff]
  %v303 = vld [vmem:[%s5 + $0x340] sm:$0xff]
  %v304 = vld [vmem:[%s5 + $0x348] sm:$0xff]
  %v305 = vld [vmem:[%s5 + $0x350] sm:$0xff]
  %v306 = vld [vmem:[%s5 + $0x358] sm:$0xff]
  %v307 = vld [vmem:[%s5 + $0x360] sm:$0xff]
  %v308 = vld [vmem:[%s5 + $0x368] sm:$0xff]
  %v309 = vld [vmem:[%s5 + $0x370] sm:$0xff]
  %v310 = vld [vmem:[%s5 + $0x378] sm:$0xff]
  %v311 = vld [vmem:[%s5 + $0x380] sm:$0xff]
  %v312 = vld [vmem:[%s5 + $0x388] sm:$0xff]
  %v313 = vld [vmem:[%s5 + $0x390] sm:$0xff]
  %v314 = vld [vmem:[%s5 + $0x398] sm:$0xff]
  %v315 = vld [vmem:[%s5 + $0x3a0] sm:$0xff]
  %v316 = vld [vmem:[%s5 + $0x3a8] sm:$0xff]
  %v317 = vld [vmem:[%s5 + $0x3b0] sm:$0xff]
  %v318 = vld [vmem:[%s5 + $0x3b8] sm:$0xff]
  %v319 = vld [vmem:[%s5 + $0x3c0] sm:$0xff]
  %v320 = vld [vmem:[%s5 + $0x3c8] sm:$0xff]
  %v321 = vld [vmem:[%s5 + $0x3d0] sm:$0xff]
  %v322 = vld [vmem:[%s5 + $0x3d8] sm:$0xff]
  %v323 = vld [vmem:[%s5 + $0x3e0] sm:$0xff]
  %v324 = vld [vmem:[%s5 + $0x3e8] sm:$0xff]
  %v325 = vld [vmem:[%s5 + $0x3f0] sm:$0xff]
  %v326 = vld [vmem:[%s5 + $0x3f8] sm:$0xff]
  %v327 = vld [vmem:[%s6] sm:$0xff]
  %v328 = vld [vmem:[%s6 + $0x8] sm:$0xff]
  %v329 = vld [vmem:[%s6 + $0x10] sm:$0xff]
  %v330 = vld [vmem:[%s6 + $0x18] sm:$0xff]
  %v331 = vld [vmem:[%s6 + $0x20] sm:$0xff]
  %v332 = vld [vmem:[%s6 + $0x28] sm:$0xff]
  %v333 = vld [vmem:[%s6 + $0x30] sm:$0xff]
  %v334 = vld [vmem:[%s6 + $0x38] sm:$0xff]
  %v335 = vld [vmem:[%s6 + $0x40] sm:$0xff]
  %v336 = vld [vmem:[%s6 + $0x48] sm:$0xff]
  %v337 = vld [vmem:[%s6 + $0x50] sm:$0xff]
  %v338 = vld [vmem:[%s6 + $0x58] sm:$0xff]
  %v339 = vld [vmem:[%s6 + $0x60] sm:$0xff]
  %v340 = vld [vmem:[%s6 + $0x68] sm:$0xff]
  %v341 = vld [vmem:[%s6 + $0x70] sm:$0xff]
  %v342 = vld [vmem:[%s6 + $0x78] sm:$0xff]
  %v343 = vld [vmem:[%s7] sm:$0xff]
  %v344 = vld [vmem:[%s7 + $0x8] sm:$0xff]
  %v345 = vld [vmem:[%s7 + $0x10] sm:$0xff]
  %v346 = vld [vmem:[%s7 + $0x18] sm:$0xff]
  %v347 = vld [vmem:[%s7 + $0x20] sm:$0xff]
  %v348 = vld [vmem:[%s7 + $0x28] sm:$0xff]
  %v349 = vld [vmem:[%s7 + $0x30] sm:$0xff]
  %v350 = vld [vmem:[%s7 + $0x38] sm:$0xff]
  %v351 = vld [vmem:[%s7 + $0x40] sm:$0xff]
  %v352 = vld [vmem:[%s7 + $0x48] sm:$0xff]
  %v353 = vld [vmem:[%s7 + $0x50] sm:$0xff]
  %v354 = vld [vmem:[%s7 + $0x58] sm:$0xff]
  %v355 = vld [vmem:[%s7 + $0x60] sm:$0xff]
  %v356 = vld [vmem:[%s7 + $0x68] sm:$0xff]
  %v357 = vld [vmem:[%s7 + $0x70] sm:$0xff]
  %v358 = vld [vmem:[%s7 + $0x78] sm:$0xff]
  %v359 = vld [vmem:[%s3] sm:$0xff]
  %v360 = vlaneseq
  %v361 = vand.u32 %v360, 127
  %vm362 = vcmp.lt.s32.totalorder %v361, 8
  %v363 = vsel %vm362, 1, 0
  %v364 = vcvt.s32.f32 %v363
  %vm365 = vcmp.ge.s32.totalorder %v361, 8
  %vm366 = vcmp.lt.s32.totalorder %v361, 20
  %vm367 = vmand %vm365, %vm366
  %v368 = vsel %vm367, 1, 0
  %v369 = vcvt.s32.f32 %v368
  %vm370 = vcmp.ge.s32.totalorder %v361, 20
  %vm371 = vcmp.lt.s32.totalorder %v361, 36
  %vm372 = vmand %vm370, %vm371
  %v373 = vsel %vm372, 1, 0
  %v374 = vcvt.s32.f32 %v373
  %vm375 = vcmp.ge.s32.totalorder %v361, 36
  %v376 = vsel %vm375, 1, 0
  %v377 = vcvt.s32.f32 %v376
  %v378 = vmul.f32 %v377, -1e+30
  %v379 = vlaneseq
  %v380 = vshrl.u32 %v379, 7
  %v381 = vadd.s32 %v380, 8
  %vm382 = vcmp.lt.s32.totalorder %v380, 8
  %vm383 = vcmp.lt.s32.totalorder %v381, 8
  %v384 = vsel %vm382, 1.0, -1.0
  %v385 = vsel %vm383, 1.0, -1.0
  %v386 = vld [vmem:[%s1] sm:$0xff]
  %v387 = vld [vmem:[%s1 + $0x8] sm:$0xff]
  %v388 = vld [vmem:[%s1 + $0x10] sm:$0xff]
  %v389 = vld [vmem:[%s1 + $0x18] sm:$0xff]
  %v390 = vld [vmem:[%s1 + $0x20] sm:$0xff]
  %v391 = vld [vmem:[%s1 + $0x28] sm:$0xff]
  %v392 = vld [vmem:[%s1 + $0x30] sm:$0xff]
  %v393 = vld [vmem:[%s1 + $0x38] sm:$0xff]
  %v394 = vld [vmem:[%s2] sm:$0xff]
  %v395 = vld [vmem:[%s2 + $0x8] sm:$0xff]
  %v396 = vld [vmem:[%s2 + $0x10] sm:$0xff]
  %v397 = vld [vmem:[%s2 + $0x18] sm:$0xff]
  %v398 = vld [vmem:[%s2 + $0x20] sm:$0xff]
  %v399 = vld [vmem:[%s2 + $0x28] sm:$0xff]
  %v400 = vld [vmem:[%s2 + $0x30] sm:$0xff]
  %v401 = vld [vmem:[%s2 + $0x38] sm:$0xff]
  %v402 = vadd.f32 %v31, %v386
  %v403 = vadd.f32 %v32, %v387
  %v404 = vadd.f32 %v33, %v388
  %v405 = vadd.f32 %v34, %v389
  %v406 = vadd.f32 %v35, %v390
  %v407 = vadd.f32 %v36, %v391
  %v408 = vadd.f32 %v37, %v392
  %v409 = vadd.f32 %v38, %v393
  %v410 = vadd.f32 %v31, %v394
  %v411 = vadd.f32 %v32, %v395
  %v412 = vadd.f32 %v33, %v396
  %v413 = vadd.f32 %v34, %v397
  %v414 = vadd.f32 %v35, %v398
  %v415 = vadd.f32 %v36, %v399
  %v416 = vadd.f32 %v37, %v400
  %v417 = vadd.f32 %v38, %v401
  %418 = vmatpush.msra.mxu0 %v86
  %419 = vmatpush.msra.mxu0 %v85
  %420 = vmatpush.msra.mxu0 %v84
  %421 = vmatpush.msra.mxu0 %v83
  %422 = vmatpush.msra.mxu0 %v82
  %423 = vmatpush.msra.mxu0 %v81
  %424 = vmatpush.msra.mxu0 %v80
  %425 = vmatpush.msra.mxu0 %v79
  %426 = vmatpush.msra.mxu0 %v78
  %427 = vmatpush.msra.mxu0 %v77
  %428 = vmatpush.msra.mxu0 %v76
  %429 = vmatpush.msra.mxu0 %v75
  %430 = vmatpush.msra.mxu0 %v74
  %431 = vmatpush.msra.mxu0 %v73
  %432 = vmatpush.msra.mxu0 %v72
  %433 = vmatpush.msra.mxu0 %v71
  %434 = vmatmul.f32.gmra.mxu0 %v402
  %v435 = vpop.f32.mrf.mxu0
  %v436 = vadd.f32 0.0, %v435
  %437 = vmatmul.f32.gmra.mxu0 %v410
  %v438 = vpop.f32.mrf.mxu0
  %v439 = vadd.f32 0.0, %v438
  %440 = vdwg.mxu0
  %441 = vmatpush.msra.mxu0 %v102
  %442 = vmatpush.msra.mxu0 %v101
  %443 = vmatpush.msra.mxu0 %v100
  %444 = vmatpush.msra.mxu0 %v99
  %445 = vmatpush.msra.mxu0 %v98
  %446 = vmatpush.msra.mxu0 %v97
  %447 = vmatpush.msra.mxu0 %v96
  %448 = vmatpush.msra.mxu0 %v95
  %449 = vmatpush.msra.mxu0 %v94
  %450 = vmatpush.msra.mxu0 %v93
  %451 = vmatpush.msra.mxu0 %v92
  %452 = vmatpush.msra.mxu0 %v91
  %453 = vmatpush.msra.mxu0 %v90
  %454 = vmatpush.msra.mxu0 %v89
  %455 = vmatpush.msra.mxu0 %v88
  %456 = vmatpush.msra.mxu0 %v87
  %457 = vmatmul.f32.gmra.mxu0 %v403
  %v458 = vpop.f32.mrf.mxu0
  %v459 = vadd.f32 %v436, %v458
  %460 = vmatmul.f32.gmra.mxu0 %v411
  %v461 = vpop.f32.mrf.mxu0
  %v462 = vadd.f32 %v439, %v461
  %463 = vdwg.mxu0
  %464 = vmatpush.msra.mxu0 %v118
  %465 = vmatpush.msra.mxu0 %v117
  %466 = vmatpush.msra.mxu0 %v116
  %467 = vmatpush.msra.mxu0 %v115
  %468 = vmatpush.msra.mxu0 %v114
  %469 = vmatpush.msra.mxu0 %v113
  %470 = vmatpush.msra.mxu0 %v112
  %471 = vmatpush.msra.mxu0 %v111
  %472 = vmatpush.msra.mxu0 %v110
  %473 = vmatpush.msra.mxu0 %v109
  %474 = vmatpush.msra.mxu0 %v108
  %475 = vmatpush.msra.mxu0 %v107
  %476 = vmatpush.msra.mxu0 %v106
  %477 = vmatpush.msra.mxu0 %v105
  %478 = vmatpush.msra.mxu0 %v104
  %479 = vmatpush.msra.mxu0 %v103
  %480 = vmatmul.f32.gmra.mxu0 %v404
  %v481 = vpop.f32.mrf.mxu0
  %v482 = vadd.f32 %v459, %v481
  %483 = vmatmul.f32.gmra.mxu0 %v412
  %v484 = vpop.f32.mrf.mxu0
  %v485 = vadd.f32 %v462, %v484
  %486 = vdwg.mxu0
  %487 = vmatpush.msra.mxu0 %v134
  %488 = vmatpush.msra.mxu0 %v133
  %489 = vmatpush.msra.mxu0 %v132
  %490 = vmatpush.msra.mxu0 %v131
  %491 = vmatpush.msra.mxu0 %v130
  %492 = vmatpush.msra.mxu0 %v129
  %493 = vmatpush.msra.mxu0 %v128
  %494 = vmatpush.msra.mxu0 %v127
  %495 = vmatpush.msra.mxu0 %v126
  %496 = vmatpush.msra.mxu0 %v125
  %497 = vmatpush.msra.mxu0 %v124
  %498 = vmatpush.msra.mxu0 %v123
  %499 = vmatpush.msra.mxu0 %v122
  %500 = vmatpush.msra.mxu0 %v121
  %501 = vmatpush.msra.mxu0 %v120
  %502 = vmatpush.msra.mxu0 %v119
  %503 = vmatmul.f32.gmra.mxu0 %v405
  %v504 = vpop.f32.mrf.mxu0
  %v505 = vadd.f32 %v482, %v504
  %506 = vmatmul.f32.gmra.mxu0 %v413
  %v507 = vpop.f32.mrf.mxu0
  %v508 = vadd.f32 %v485, %v507
  %509 = vdwg.mxu0
  %510 = vmatpush.msra.mxu0 %v150
  %511 = vmatpush.msra.mxu0 %v149
  %512 = vmatpush.msra.mxu0 %v148
  %513 = vmatpush.msra.mxu0 %v147
  %514 = vmatpush.msra.mxu0 %v146
  %515 = vmatpush.msra.mxu0 %v145
  %516 = vmatpush.msra.mxu0 %v144
  %517 = vmatpush.msra.mxu0 %v143
  %518 = vmatpush.msra.mxu0 %v142
  %519 = vmatpush.msra.mxu0 %v141
  %520 = vmatpush.msra.mxu0 %v140
  %521 = vmatpush.msra.mxu0 %v139
  %522 = vmatpush.msra.mxu0 %v138
  %523 = vmatpush.msra.mxu0 %v137
  %524 = vmatpush.msra.mxu0 %v136
  %525 = vmatpush.msra.mxu0 %v135
  %526 = vmatmul.f32.gmra.mxu0 %v406
  %v527 = vpop.f32.mrf.mxu0
  %v528 = vadd.f32 %v505, %v527
  %529 = vmatmul.f32.gmra.mxu0 %v414
  %v530 = vpop.f32.mrf.mxu0
  %v531 = vadd.f32 %v508, %v530
  %532 = vdwg.mxu0
  %533 = vmatpush.msra.mxu0 %v166
  %534 = vmatpush.msra.mxu0 %v165
  %535 = vmatpush.msra.mxu0 %v164
  %536 = vmatpush.msra.mxu0 %v163
  %537 = vmatpush.msra.mxu0 %v162
  %538 = vmatpush.msra.mxu0 %v161
  %539 = vmatpush.msra.mxu0 %v160
  %540 = vmatpush.msra.mxu0 %v159
  %541 = vmatpush.msra.mxu0 %v158
  %542 = vmatpush.msra.mxu0 %v157
  %543 = vmatpush.msra.mxu0 %v156
  %544 = vmatpush.msra.mxu0 %v155
  %545 = vmatpush.msra.mxu0 %v154
  %546 = vmatpush.msra.mxu0 %v153
  %547 = vmatpush.msra.mxu0 %v152
  %548 = vmatpush.msra.mxu0 %v151
  %549 = vmatmul.f32.gmra.mxu0 %v407
  %v550 = vpop.f32.mrf.mxu0
  %v551 = vadd.f32 %v528, %v550
  %552 = vmatmul.f32.gmra.mxu0 %v415
  %v553 = vpop.f32.mrf.mxu0
  %v554 = vadd.f32 %v531, %v553
  %555 = vdwg.mxu0
  %556 = vmatpush.msra.mxu0 %v182
  %557 = vmatpush.msra.mxu0 %v181
  %558 = vmatpush.msra.mxu0 %v180
  %559 = vmatpush.msra.mxu0 %v179
  %560 = vmatpush.msra.mxu0 %v178
  %561 = vmatpush.msra.mxu0 %v177
  %562 = vmatpush.msra.mxu0 %v176
  %563 = vmatpush.msra.mxu0 %v175
  %564 = vmatpush.msra.mxu0 %v174
  %565 = vmatpush.msra.mxu0 %v173
  %566 = vmatpush.msra.mxu0 %v172
  %567 = vmatpush.msra.mxu0 %v171
  %568 = vmatpush.msra.mxu0 %v170
  %569 = vmatpush.msra.mxu0 %v169
  %570 = vmatpush.msra.mxu0 %v168
  %571 = vmatpush.msra.mxu0 %v167
  %572 = vmatmul.f32.gmra.mxu0 %v408
  %v573 = vpop.f32.mrf.mxu0
  %v574 = vadd.f32 %v551, %v573
  %575 = vmatmul.f32.gmra.mxu0 %v416
  %v576 = vpop.f32.mrf.mxu0
  %v577 = vadd.f32 %v554, %v576
  %578 = vdwg.mxu0
  %579 = vmatpush.msra.mxu0 %v198
  %580 = vmatpush.msra.mxu0 %v197
  %581 = vmatpush.msra.mxu0 %v196
  %582 = vmatpush.msra.mxu0 %v195
  %583 = vmatpush.msra.mxu0 %v194
  %584 = vmatpush.msra.mxu0 %v193
  %585 = vmatpush.msra.mxu0 %v192
  %586 = vmatpush.msra.mxu0 %v191
  %587 = vmatpush.msra.mxu0 %v190
  %588 = vmatpush.msra.mxu0 %v189
  %589 = vmatpush.msra.mxu0 %v188
  %590 = vmatpush.msra.mxu0 %v187
  %591 = vmatpush.msra.mxu0 %v186
  %592 = vmatpush.msra.mxu0 %v185
  %593 = vmatpush.msra.mxu0 %v184
  %594 = vmatpush.msra.mxu0 %v183
  %595 = vmatmul.f32.gmra.mxu0 %v409
  %v596 = vpop.f32.mrf.mxu0
  %v597 = vadd.f32 %v574, %v596
  %598 = vmatmul.f32.gmra.mxu0 %v417
  %v599 = vpop.f32.mrf.mxu0
  %v600 = vadd.f32 %v577, %v599
  %601 = vdwg.mxu0
  %602 = vmatpush.msra.mxu0 %v342
  %603 = vmatpush.msra.mxu0 %v341
  %604 = vmatpush.msra.mxu0 %v340
  %605 = vmatpush.msra.mxu0 %v339
  %606 = vmatpush.msra.mxu0 %v338
  %607 = vmatpush.msra.mxu0 %v337
  %608 = vmatpush.msra.mxu0 %v336
  %609 = vmatpush.msra.mxu0 %v335
  %610 = vmatpush.msra.mxu0 %v334
  %611 = vmatpush.msra.mxu0 %v333
  %612 = vmatpush.msra.mxu0 %v332
  %613 = vmatpush.msra.mxu0 %v331
  %614 = vmatpush.msra.mxu0 %v330
  %615 = vmatpush.msra.mxu0 %v329
  %616 = vmatpush.msra.mxu0 %v328
  %617 = vmatpush.msra.mxu0 %v327
  %618 = vmatmul.f32.gmra.mxu0 %v597
  %v619 = vpop.f32.mrf.mxu0
  %v620 = vadd.f32 %v378, %v619
  %621 = vmatmul.f32.gmra.mxu0 %v600
  %v622 = vpop.f32.mrf.mxu0
  %v623 = vadd.f32 %v378, %v622
  %624 = vdwg.mxu0
  %625 = vmax.xlane.f32.xlu0 %v620
  %v626 = vpop.xlane.xlu0 %625
  %627 = vmax.xlane.f32.xlu0 %v623
  %v628 = vpop.xlane.xlu0 %627
  %v629 = vsub.f32 %v620, %v626
  %v630 = vsub.f32 %v623, %v628
  %v631 = vmul.f32 %v629, 1.442695
  %v632 = vpow.pop %v631
  %v633 = vmul.f32 %v630, 1.442695
  %v634 = vpow.pop %v633
  %v635 = vmul.f32 %v632, %v364
  %v636 = vmul.f32 %v634, %v364
  %637 = vadd.xlane.f32.xlu0 %v635
  %v638 = vpop.xlane.xlu0 %637
  %639 = vadd.xlane.f32.xlu0 %v636
  %v640 = vpop.xlane.xlu0 %639
  %v641 = vmul.f32 %v632, %v369
  %v642 = vmul.f32 %v634, %v369
  %643 = vadd.xlane.f32.xlu0 %v641
  %v644 = vpop.xlane.xlu0 %643
  %645 = vadd.xlane.f32.xlu0 %v642
  %v646 = vpop.xlane.xlu0 %645
  %v647 = vmul.f32 %v632, %v374
  %v648 = vmul.f32 %v634, %v374
  %649 = vadd.xlane.f32.xlu0 %v647
  %v650 = vpop.xlane.xlu0 %649
  %651 = vadd.xlane.f32.xlu0 %v648
  %v652 = vpop.xlane.xlu0 %651
  %v653 = vmax.f32 %v638, 1e-30
  %v654 = vmax.f32 %v640, 1e-30
  %v655 = vrcp.pop %v653
  %v656 = vmul.f32 %v653, %v655
  %v657 = vsub.f32 1.0, %v656
  %v658 = vmul.f32 %v655, %v657
  %v659 = vadd.f32 %v655, %v658
  %vm660 = vweird.f32 %v653
  %vm661 = vweird.f32 %v655
  %vm662 = vmor %vm660, %vm661
  %v663 = vsel %vm662, %v655, %v659
  %v664 = vand.u32 2147483647, %v653
  %vm665 = vcmp.eq.f32.partialorder %v664, 8.507059e+37
  %v666 = vand.u32 %v653, 2147483648
  %v667 = vor.u32 1.1754944e-38, %v666
  %v668 = vsel %vm665, %v667, %v663
  %v669 = vmul.f32 1.0, %v668
  %v670 = vrcp.pop %v654
  %v671 = vmul.f32 %v654, %v670
  %v672 = vsub.f32 1.0, %v671
  %v673 = vmul.f32 %v670, %v672
  %v674 = vadd.f32 %v670, %v673
  %vm675 = vweird.f32 %v654
  %vm676 = vweird.f32 %v670
  %vm677 = vmor %vm675, %vm676
  %v678 = vsel %vm677, %v670, %v674
  %v679 = vand.u32 2147483647, %v654
  %vm680 = vcmp.eq.f32.partialorder %v679, 8.507059e+37
  %v681 = vand.u32 %v654, 2147483648
  %v682 = vor.u32 1.1754944e-38, %v681
  %v683 = vsel %vm680, %v682, %v678
  %v684 = vmul.f32 1.0, %v683
  %v685 = vmax.f32 %v644, 1e-30
  %v686 = vmax.f32 %v646, 1e-30
  %v687 = vrcp.pop %v685
  %v688 = vmul.f32 %v685, %v687
  %v689 = vsub.f32 1.0, %v688
  %v690 = vmul.f32 %v687, %v689
  %v691 = vadd.f32 %v687, %v690
  %vm692 = vweird.f32 %v685
  %vm693 = vweird.f32 %v687
  %vm694 = vmor %vm692, %vm693
  %v695 = vsel %vm694, %v687, %v691
  %v696 = vand.u32 2147483647, %v685
  %vm697 = vcmp.eq.f32.partialorder %v696, 8.507059e+37
  %v698 = vand.u32 %v685, 2147483648
  %v699 = vor.u32 1.1754944e-38, %v698
  %v700 = vsel %vm697, %v699, %v695
  %v701 = vmul.f32 1.0, %v700
  %v702 = vrcp.pop %v686
  %v703 = vmul.f32 %v686, %v702
  %v704 = vsub.f32 1.0, %v703
  %v705 = vmul.f32 %v702, %v704
  %v706 = vadd.f32 %v702, %v705
  %vm707 = vweird.f32 %v686
  %vm708 = vweird.f32 %v702
  %vm709 = vmor %vm707, %vm708
  %v710 = vsel %vm709, %v702, %v706
  %v711 = vand.u32 2147483647, %v686
  %vm712 = vcmp.eq.f32.partialorder %v711, 8.507059e+37
  %v713 = vand.u32 %v686, 2147483648
  %v714 = vor.u32 1.1754944e-38, %v713
  %v715 = vsel %vm712, %v714, %v710
  %v716 = vmul.f32 1.0, %v715
  %v717 = vmax.f32 %v650, 1e-30
  %v718 = vmax.f32 %v652, 1e-30
  %v719 = vrcp.pop %v717
  %v720 = vmul.f32 %v717, %v719
  %v721 = vsub.f32 1.0, %v720
  %v722 = vmul.f32 %v719, %v721
  %v723 = vadd.f32 %v719, %v722
  %vm724 = vweird.f32 %v717
  %vm725 = vweird.f32 %v719
  %vm726 = vmor %vm724, %vm725
  %v727 = vsel %vm726, %v719, %v723
  %v728 = vand.u32 2147483647, %v717
  %vm729 = vcmp.eq.f32.partialorder %v728, 8.507059e+37
  %v730 = vand.u32 %v717, 2147483648
  %v731 = vor.u32 1.1754944e-38, %v730
  %v732 = vsel %vm729, %v731, %v727
  %v733 = vmul.f32 1.0, %v732
  %v734 = vrcp.pop %v718
  %v735 = vmul.f32 %v718, %v734
  %v736 = vsub.f32 1.0, %v735
  %v737 = vmul.f32 %v734, %v736
  %v738 = vadd.f32 %v734, %v737
  %vm739 = vweird.f32 %v718
  %vm740 = vweird.f32 %v734
  %vm741 = vmor %vm739, %vm740
  %v742 = vsel %vm741, %v734, %v738
  %v743 = vand.u32 2147483647, %v718
  %vm744 = vcmp.eq.f32.partialorder %v743, 8.507059e+37
  %v745 = vand.u32 %v718, 2147483648
  %v746 = vor.u32 1.1754944e-38, %v745
  %v747 = vsel %vm744, %v746, %v742
  %v748 = vmul.f32 1.0, %v747
  %v749 = vmul.f32 %v669, %v364
  %v750 = vmul.f32 %v684, %v364
  %v751 = vmul.f32 %v701, %v369
  %v752 = vmul.f32 %v716, %v369
  %v753 = vadd.f32 %v749, %v751
  %v754 = vadd.f32 %v750, %v752
  %v755 = vmul.f32 %v733, %v374
  %v756 = vmul.f32 %v748, %v374
  %v757 = vadd.f32 %v753, %v755
  %v758 = vadd.f32 %v754, %v756
  %v759 = vmul.f32 %v632, %v757
  %v760 = vmul.f32 %v634, %v758
  %v761 = vsub.f32 %v759, %v359
  %v762 = vsub.f32 %v760, %v359
  %763 = vmatpush.msra.mxu0 %v358
  %764 = vmatpush.msra.mxu0 %v357
  %765 = vmatpush.msra.mxu0 %v356
  %766 = vmatpush.msra.mxu0 %v355
  %767 = vmatpush.msra.mxu0 %v354
  %768 = vmatpush.msra.mxu0 %v353
  %769 = vmatpush.msra.mxu0 %v352
  %770 = vmatpush.msra.mxu0 %v351
  %771 = vmatpush.msra.mxu0 %v350
  %772 = vmatpush.msra.mxu0 %v349
  %773 = vmatpush.msra.mxu0 %v348
  %774 = vmatpush.msra.mxu0 %v347
  %775 = vmatpush.msra.mxu0 %v346
  %776 = vmatpush.msra.mxu0 %v345
  %777 = vmatpush.msra.mxu0 %v344
  %778 = vmatpush.msra.mxu0 %v343
  %779 = vmatmul.f32.gmra.mxu0 %v761
  %v780 = vpop.f32.mrf.mxu0
  %v781 = vadd.f32 0.0, %v780
  %782 = vmatmul.f32.gmra.mxu0 %v762
  %v783 = vpop.f32.mrf.mxu0
  %v784 = vadd.f32 0.0, %v783
  %785 = vdwg.mxu0
  %v786 = vmul.f32 %v597, %v600
  %787 = vadd.xlane.f32.xlu0 %v786
  %v788 = vpop.xlane.xlu0 %787
  %v789 = vmul.f32 %v597, %v597
  %790 = vadd.xlane.f32.xlu0 %v789
  %v791 = vpop.xlane.xlu0 %790
  %v792 = vrsqrt.pop %v791
  %v793 = vmul.f32 %v792, %v791
  %v794 = vmul.f32 %v793, %v792
  %v795 = vmul.f32 0.5, %v794
  %v796 = vsub.f32 1.5, %v795
  %v797 = vmul.f32 %v792, %v796
  %v798 = vmul.f32 %v791, %v797
  %vm799 = vcmp.eq.f32.partialorder %v791, inf
  %v800 = vsel %vm799, %v791, %v798
  %vm801 = vcmp.eq.f32.partialorder %v791, 0.0
  %v802 = vand.u32 %v791, 2147483648
  %v803 = vsel %vm801, %v802, %v800
  %v804 = vmax.f32 %v803, 1e-08
  %v805 = vmul.f32 %v600, %v600
  %806 = vadd.xlane.f32.xlu0 %v805
  %v807 = vpop.xlane.xlu0 %806
  %v808 = vrsqrt.pop %v807
  %v809 = vmul.f32 %v808, %v807
  %v810 = vmul.f32 %v809, %v808
  %v811 = vmul.f32 0.5, %v810
  %v812 = vsub.f32 1.5, %v811
  %v813 = vmul.f32 %v808, %v812
  %v814 = vmul.f32 %v807, %v813
  %vm815 = vcmp.eq.f32.partialorder %v807, inf
  %v816 = vsel %vm815, %v807, %v814
  %vm817 = vcmp.eq.f32.partialorder %v807, 0.0
  %v818 = vand.u32 %v807, 2147483648
  %v819 = vsel %vm817, %v818, %v816
  %v820 = vmax.f32 %v819, 1e-08
  %v821 = vmul.f32 %v804, %v820
  %v822 = vrcp.pop %v821
  %v823 = vmul.f32 %v821, %v822
  %v824 = vsub.f32 1.0, %v823
  %v825 = vmul.f32 %v822, %v824
  %v826 = vadd.f32 %v822, %v825
  %vm827 = vweird.f32 %v821
  %vm828 = vweird.f32 %v822
  %vm829 = vmor %vm827, %vm828
  %v830 = vsel %vm829, %v822, %v826
  %v831 = vand.u32 2147483647, %v821
  %vm832 = vcmp.eq.f32.partialorder %v831, 8.507059e+37
  %v833 = vand.u32 %v821, 2147483648
  %v834 = vor.u32 1.1754944e-38, %v833
  %v835 = vsel %vm832, %v834, %v830
  %v836 = vmul.f32 1.0, %v835
  %v837 = vmul.f32 %v788, %v836
  %v838 = vmul.f32 %v600, %v836
  %v839 = vmul.f32 %v804, %v804
  %v840 = vrcp.pop %v839
  %v841 = vmul.f32 %v839, %v840
  %v842 = vsub.f32 1.0, %v841
  %v843 = vmul.f32 %v840, %v842
  %v844 = vadd.f32 %v840, %v843
  %vm845 = vweird.f32 %v839
  %vm846 = vweird.f32 %v840
  %vm847 = vmor %vm845, %vm846
  %v848 = vsel %vm847, %v840, %v844
  %v849 = vand.u32 2147483647, %v839
  %vm850 = vcmp.eq.f32.partialorder %v849, 8.507059e+37
  %v851 = vand.u32 %v839, 2147483648
  %v852 = vor.u32 1.1754944e-38, %v851
  %v853 = vsel %vm850, %v852, %v848
  %v854 = vmul.f32 %v837, %v853
  %v855 = vmul.f32 %v597, %v854
  %v856 = vsub.f32 %v838, %v855
  %v857 = vmul.f32 %v597, %v836
  %v858 = vmul.f32 %v820, %v820
  %v859 = vrcp.pop %v858
  %v860 = vmul.f32 %v858, %v859
  %v861 = vsub.f32 1.0, %v860
  %v862 = vmul.f32 %v859, %v861
  %v863 = vadd.f32 %v859, %v862
  %vm864 = vweird.f32 %v858
  %vm865 = vweird.f32 %v859
  %vm866 = vmor %vm864, %vm865
  %v867 = vsel %vm866, %v859, %v863
  %v868 = vand.u32 2147483647, %v858
  %vm869 = vcmp.eq.f32.partialorder %v868, 8.507059e+37
  %v870 = vand.u32 %v858, 2147483648
  %v871 = vor.u32 1.1754944e-38, %v870
  %v872 = vsel %vm869, %v871, %v867
  %v873 = vmul.f32 %v837, %v872
  %v874 = vmul.f32 %v600, %v873
  %v875 = vsub.f32 %v857, %v874
  %v876 = vmul.f32 %v384, %v781
  %v877 = vmul.f32 %v385, %v784
  %v878 = vsub.f32 %v876, %v856
  %v879 = vsub.f32 %v877, %v875
  %880 = vmatpush.msra.mxu0 %v319
  %881 = vmatpush.msra.mxu0 %v311
  %882 = vmatpush.msra.mxu0 %v303
  %883 = vmatpush.msra.mxu0 %v295
  %884 = vmatpush.msra.mxu0 %v287
  %885 = vmatpush.msra.mxu0 %v279
  %886 = vmatpush.msra.mxu0 %v271
  %887 = vmatpush.msra.mxu0 %v263
  %888 = vmatpush.msra.mxu0 %v255
  %889 = vmatpush.msra.mxu0 %v247
  %890 = vmatpush.msra.mxu0 %v239
  %891 = vmatpush.msra.mxu0 %v231
  %892 = vmatpush.msra.mxu0 %v223
  %893 = vmatpush.msra.mxu0 %v215
  %894 = vmatpush.msra.mxu0 %v207
  %895 = vmatpush.msra.mxu0 %v199
  %896 = vmatmul.f32.gmra.mxu0 %v878
  %v897 = vpop.f32.mrf.mxu0
  %v898 = vadd.f32 0.0, %v897
  %899 = vmatmul.f32.gmra.mxu0 %v879
  %v900 = vpop.f32.mrf.mxu0
  %v901 = vadd.f32 0.0, %v900
  %902 = vdwg.mxu0
  %903 = vmatpush.msra.mxu0 %v320
  %904 = vmatpush.msra.mxu0 %v312
  %905 = vmatpush.msra.mxu0 %v304
  %906 = vmatpush.msra.mxu0 %v296
  %907 = vmatpush.msra.mxu0 %v288
  %908 = vmatpush.msra.mxu0 %v280
  %909 = vmatpush.msra.mxu0 %v272
  %910 = vmatpush.msra.mxu0 %v264
  %911 = vmatpush.msra.mxu0 %v256
  %912 = vmatpush.msra.mxu0 %v248
  %913 = vmatpush.msra.mxu0 %v240
  %914 = vmatpush.msra.mxu0 %v232
  %915 = vmatpush.msra.mxu0 %v224
  %916 = vmatpush.msra.mxu0 %v216
  %917 = vmatpush.msra.mxu0 %v208
  %918 = vmatpush.msra.mxu0 %v200
  %919 = vmatmul.f32.gmra.mxu0 %v878
  %v920 = vpop.f32.mrf.mxu0
  %v921 = vadd.f32 0.0, %v920
  %922 = vmatmul.f32.gmra.mxu0 %v879
  %v923 = vpop.f32.mrf.mxu0
  %v924 = vadd.f32 0.0, %v923
  %925 = vdwg.mxu0
  %926 = vmatpush.msra.mxu0 %v321
  %927 = vmatpush.msra.mxu0 %v313
  %928 = vmatpush.msra.mxu0 %v305
  %929 = vmatpush.msra.mxu0 %v297
  %930 = vmatpush.msra.mxu0 %v289
  %931 = vmatpush.msra.mxu0 %v281
  %932 = vmatpush.msra.mxu0 %v273
  %933 = vmatpush.msra.mxu0 %v265
  %934 = vmatpush.msra.mxu0 %v257
  %935 = vmatpush.msra.mxu0 %v249
  %936 = vmatpush.msra.mxu0 %v241
  %937 = vmatpush.msra.mxu0 %v233
  %938 = vmatpush.msra.mxu0 %v225
  %939 = vmatpush.msra.mxu0 %v217
  %940 = vmatpush.msra.mxu0 %v209
  %941 = vmatpush.msra.mxu0 %v201
  %942 = vmatmul.f32.gmra.mxu0 %v878
  %v943 = vpop.f32.mrf.mxu0
  %v944 = vadd.f32 0.0, %v943
  %945 = vmatmul.f32.gmra.mxu0 %v879
  %v946 = vpop.f32.mrf.mxu0
  %v947 = vadd.f32 0.0, %v946
  %948 = vdwg.mxu0
  %949 = vmatpush.msra.mxu0 %v322
  %950 = vmatpush.msra.mxu0 %v314
  %951 = vmatpush.msra.mxu0 %v306
  %952 = vmatpush.msra.mxu0 %v298
  %953 = vmatpush.msra.mxu0 %v290
  %954 = vmatpush.msra.mxu0 %v282
  %955 = vmatpush.msra.mxu0 %v274
  %956 = vmatpush.msra.mxu0 %v266
  %957 = vmatpush.msra.mxu0 %v258
  %958 = vmatpush.msra.mxu0 %v250
  %959 = vmatpush.msra.mxu0 %v242
  %960 = vmatpush.msra.mxu0 %v234
  %961 = vmatpush.msra.mxu0 %v226
  %962 = vmatpush.msra.mxu0 %v218
  %963 = vmatpush.msra.mxu0 %v210
  %964 = vmatpush.msra.mxu0 %v202
  %965 = vmatmul.f32.gmra.mxu0 %v878
  %v966 = vpop.f32.mrf.mxu0
  %v967 = vadd.f32 0.0, %v966
  %968 = vmatmul.f32.gmra.mxu0 %v879
  %v969 = vpop.f32.mrf.mxu0
  %v970 = vadd.f32 0.0, %v969
  %971 = vdwg.mxu0
  %972 = vmatpush.msra.mxu0 %v323
  %973 = vmatpush.msra.mxu0 %v315
  %974 = vmatpush.msra.mxu0 %v307
  %975 = vmatpush.msra.mxu0 %v299
  %976 = vmatpush.msra.mxu0 %v291
  %977 = vmatpush.msra.mxu0 %v283
  %978 = vmatpush.msra.mxu0 %v275
  %979 = vmatpush.msra.mxu0 %v267
  %980 = vmatpush.msra.mxu0 %v259
  %981 = vmatpush.msra.mxu0 %v251
  %982 = vmatpush.msra.mxu0 %v243
  %983 = vmatpush.msra.mxu0 %v235
  %984 = vmatpush.msra.mxu0 %v227
  %985 = vmatpush.msra.mxu0 %v219
  %986 = vmatpush.msra.mxu0 %v211
  %987 = vmatpush.msra.mxu0 %v203
  %988 = vmatmul.f32.gmra.mxu0 %v878
  %v989 = vpop.f32.mrf.mxu0
  %v990 = vadd.f32 0.0, %v989
  %991 = vmatmul.f32.gmra.mxu0 %v879
  %v992 = vpop.f32.mrf.mxu0
  %v993 = vadd.f32 0.0, %v992
  %994 = vdwg.mxu0
  %995 = vmatpush.msra.mxu0 %v324
  %996 = vmatpush.msra.mxu0 %v316
  %997 = vmatpush.msra.mxu0 %v308
  %998 = vmatpush.msra.mxu0 %v300
  %999 = vmatpush.msra.mxu0 %v292
  %1000 = vmatpush.msra.mxu0 %v284
  %1001 = vmatpush.msra.mxu0 %v276
  %1002 = vmatpush.msra.mxu0 %v268
  %1003 = vmatpush.msra.mxu0 %v260
  %1004 = vmatpush.msra.mxu0 %v252
  %1005 = vmatpush.msra.mxu0 %v244
  %1006 = vmatpush.msra.mxu0 %v236
  %1007 = vmatpush.msra.mxu0 %v228
  %1008 = vmatpush.msra.mxu0 %v220
  %1009 = vmatpush.msra.mxu0 %v212
  %1010 = vmatpush.msra.mxu0 %v204
  %1011 = vmatmul.f32.gmra.mxu0 %v878
  %v1012 = vpop.f32.mrf.mxu0
  %v1013 = vadd.f32 0.0, %v1012
  %1014 = vmatmul.f32.gmra.mxu0 %v879
  %v1015 = vpop.f32.mrf.mxu0
  %v1016 = vadd.f32 0.0, %v1015
  %1017 = vdwg.mxu0
  %1018 = vmatpush.msra.mxu0 %v325
  %1019 = vmatpush.msra.mxu0 %v317
  %1020 = vmatpush.msra.mxu0 %v309
  %1021 = vmatpush.msra.mxu0 %v301
  %1022 = vmatpush.msra.mxu0 %v293
  %1023 = vmatpush.msra.mxu0 %v285
  %1024 = vmatpush.msra.mxu0 %v277
  %1025 = vmatpush.msra.mxu0 %v269
  %1026 = vmatpush.msra.mxu0 %v261
  %1027 = vmatpush.msra.mxu0 %v253
  %1028 = vmatpush.msra.mxu0 %v245
  %1029 = vmatpush.msra.mxu0 %v237
  %1030 = vmatpush.msra.mxu0 %v229
  %1031 = vmatpush.msra.mxu0 %v221
  %1032 = vmatpush.msra.mxu0 %v213
  %1033 = vmatpush.msra.mxu0 %v205
  %1034 = vmatmul.f32.gmra.mxu0 %v878
  %v1035 = vpop.f32.mrf.mxu0
  %v1036 = vadd.f32 0.0, %v1035
  %1037 = vmatmul.f32.gmra.mxu0 %v879
  %v1038 = vpop.f32.mrf.mxu0
  %v1039 = vadd.f32 0.0, %v1038
  %1040 = vdwg.mxu0
  %1041 = vmatpush.msra.mxu0 %v326
  %1042 = vmatpush.msra.mxu0 %v318
  %1043 = vmatpush.msra.mxu0 %v310
  %1044 = vmatpush.msra.mxu0 %v302
  %1045 = vmatpush.msra.mxu0 %v294
  %1046 = vmatpush.msra.mxu0 %v286
  %1047 = vmatpush.msra.mxu0 %v278
  %1048 = vmatpush.msra.mxu0 %v270
  %1049 = vmatpush.msra.mxu0 %v262
  %1050 = vmatpush.msra.mxu0 %v254
  %1051 = vmatpush.msra.mxu0 %v246
  %1052 = vmatpush.msra.mxu0 %v238
  %1053 = vmatpush.msra.mxu0 %v230
  %1054 = vmatpush.msra.mxu0 %v222
  %1055 = vmatpush.msra.mxu0 %v214
  %1056 = vmatpush.msra.mxu0 %v206
  %1057 = vmatmul.f32.gmra.mxu0 %v878
  %v1058 = vpop.f32.mrf.mxu0
  %v1059 = vadd.f32 0.0, %v1058
  %1060 = vmatmul.f32.gmra.mxu0 %v879
  %v1061 = vpop.f32.mrf.mxu0
  %v1062 = vadd.f32 0.0, %v1061
  %1063 = vdwg.mxu0
  %vm1064 = vcmp.gt.f32.partialorder %v898, 0.0
  %vm1065 = vcmp.gt.f32.partialorder %v921, 0.0
  %vm1066 = vcmp.gt.f32.partialorder %v944, 0.0
  %vm1067 = vcmp.gt.f32.partialorder %v967, 0.0
  %vm1068 = vcmp.gt.f32.partialorder %v990, 0.0
  %vm1069 = vcmp.gt.f32.partialorder %v1013, 0.0
  %vm1070 = vcmp.gt.f32.partialorder %v1036, 0.0
  %vm1071 = vcmp.gt.f32.partialorder %v1059, 0.0
  %vm1072 = vcmp.gt.f32.partialorder %v901, 0.0
  %vm1073 = vcmp.gt.f32.partialorder %v924, 0.0
  %vm1074 = vcmp.gt.f32.partialorder %v947, 0.0
  %vm1075 = vcmp.gt.f32.partialorder %v970, 0.0
  %vm1076 = vcmp.gt.f32.partialorder %v993, 0.0
  %vm1077 = vcmp.gt.f32.partialorder %v1016, 0.0
  %vm1078 = vcmp.gt.f32.partialorder %v1039, 0.0
  %vm1079 = vcmp.gt.f32.partialorder %v1062, 0.0
  %vm1080 = vcmp.lt.f32.partialorder %v898, 0.0
  %vm1081 = vcmp.lt.f32.partialorder %v921, 0.0
  %vm1082 = vcmp.lt.f32.partialorder %v944, 0.0
  %vm1083 = vcmp.lt.f32.partialorder %v967, 0.0
  %vm1084 = vcmp.lt.f32.partialorder %v990, 0.0
  %vm1085 = vcmp.lt.f32.partialorder %v1013, 0.0
  %vm1086 = vcmp.lt.f32.partialorder %v1036, 0.0
  %vm1087 = vcmp.lt.f32.partialorder %v1059, 0.0
  %vm1088 = vcmp.lt.f32.partialorder %v901, 0.0
  %vm1089 = vcmp.lt.f32.partialorder %v924, 0.0
  %vm1090 = vcmp.lt.f32.partialorder %v947, 0.0
  %vm1091 = vcmp.lt.f32.partialorder %v970, 0.0
  %vm1092 = vcmp.lt.f32.partialorder %v993, 0.0
  %vm1093 = vcmp.lt.f32.partialorder %v1016, 0.0
  %vm1094 = vcmp.lt.f32.partialorder %v1039, 0.0
  %vm1095 = vcmp.lt.f32.partialorder %v1062, 0.0
  %v1096 = vsel %vm1080, -1.0, 0.0
  %v1097 = vsel %vm1081, -1.0, 0.0
  %v1098 = vsel %vm1082, -1.0, 0.0
  %v1099 = vsel %vm1083, -1.0, 0.0
  %v1100 = vsel %vm1084, -1.0, 0.0
  %v1101 = vsel %vm1085, -1.0, 0.0
  %v1102 = vsel %vm1086, -1.0, 0.0
  %v1103 = vsel %vm1087, -1.0, 0.0
  %v1104 = vsel %vm1088, -1.0, 0.0
  %v1105 = vsel %vm1089, -1.0, 0.0
  %v1106 = vsel %vm1090, -1.0, 0.0
  %v1107 = vsel %vm1091, -1.0, 0.0
  %v1108 = vsel %vm1092, -1.0, 0.0
  %v1109 = vsel %vm1093, -1.0, 0.0
  %v1110 = vsel %vm1094, -1.0, 0.0
  %v1111 = vsel %vm1095, -1.0, 0.0
  %v1112 = vsel %vm1064, 1.0, %v1096
  %v1113 = vsel %vm1065, 1.0, %v1097
  %v1114 = vsel %vm1066, 1.0, %v1098
  %v1115 = vsel %vm1067, 1.0, %v1099
  %v1116 = vsel %vm1068, 1.0, %v1100
  %v1117 = vsel %vm1069, 1.0, %v1101
  %v1118 = vsel %vm1070, 1.0, %v1102
  %v1119 = vsel %vm1071, 1.0, %v1103
  %v1120 = vsel %vm1072, 1.0, %v1104
  %v1121 = vsel %vm1073, 1.0, %v1105
  %v1122 = vsel %vm1074, 1.0, %v1106
  %v1123 = vsel %vm1075, 1.0, %v1107
  %v1124 = vsel %vm1076, 1.0, %v1108
  %v1125 = vsel %vm1077, 1.0, %v1109
  %v1126 = vsel %vm1078, 1.0, %v1110
  %v1127 = vsel %vm1079, 1.0, %v1111
  %v1128 = vmul.f32 %v1112, 0.007843138
  %v1129 = vmul.f32 %v1113, 0.007843138
  %v1130 = vmul.f32 %v1114, 0.007843138
  %v1131 = vmul.f32 %v1115, 0.007843138
  %v1132 = vmul.f32 %v1116, 0.007843138
  %v1133 = vmul.f32 %v1117, 0.007843138
  %v1134 = vmul.f32 %v1118, 0.007843138
  %v1135 = vmul.f32 %v1119, 0.007843138
  %v1136 = vmul.f32 %v1120, 0.007843138
  %v1137 = vmul.f32 %v1121, 0.007843138
  %v1138 = vmul.f32 %v1122, 0.007843138
  %v1139 = vmul.f32 %v1123, 0.007843138
  %v1140 = vmul.f32 %v1124, 0.007843138
  %v1141 = vmul.f32 %v1125, 0.007843138
  %v1142 = vmul.f32 %v1126, 0.007843138
  %v1143 = vmul.f32 %v1127, 0.007843138
  %v1144 = vadd.f32 %v386, %v1128
  %v1145 = vadd.f32 %v387, %v1129
  %v1146 = vadd.f32 %v388, %v1130
  %v1147 = vadd.f32 %v389, %v1131
  %v1148 = vadd.f32 %v390, %v1132
  %v1149 = vadd.f32 %v391, %v1133
  %v1150 = vadd.f32 %v392, %v1134
  %v1151 = vadd.f32 %v393, %v1135
  %v1152 = vadd.f32 %v394, %v1136
  %v1153 = vadd.f32 %v395, %v1137
  %v1154 = vadd.f32 %v396, %v1138
  %v1155 = vadd.f32 %v397, %v1139
  %v1156 = vadd.f32 %v398, %v1140
  %v1157 = vadd.f32 %v399, %v1141
  %v1158 = vadd.f32 %v400, %v1142
  %v1159 = vadd.f32 %v401, %v1143
  %v1160 = vmax.f32 %v47, %v1144
  %v1161 = vmax.f32 %v48, %v1145
  %v1162 = vmax.f32 %v49, %v1146
  %v1163 = vmax.f32 %v50, %v1147
  %v1164 = vmax.f32 %v51, %v1148
  %v1165 = vmax.f32 %v52, %v1149
  %v1166 = vmax.f32 %v53, %v1150
  %v1167 = vmax.f32 %v54, %v1151
  %v1168 = vmax.f32 %v47, %v1152
  %v1169 = vmax.f32 %v48, %v1153
  %v1170 = vmax.f32 %v49, %v1154
  %v1171 = vmax.f32 %v50, %v1155
  %v1172 = vmax.f32 %v51, %v1156
  %v1173 = vmax.f32 %v52, %v1157
  %v1174 = vmax.f32 %v53, %v1158
  %v1175 = vmax.f32 %v54, %v1159
  %v1176 = vmin.f32 %v63, %v1160
  %v1177 = vmin.f32 %v64, %v1161
  %v1178 = vmin.f32 %v65, %v1162
  %v1179 = vmin.f32 %v66, %v1163
  %v1180 = vmin.f32 %v67, %v1164
  %v1181 = vmin.f32 %v68, %v1165
  %v1182 = vmin.f32 %v69, %v1166
  %v1183 = vmin.f32 %v70, %v1167
  %v1184 = vmin.f32 %v63, %v1168
  %v1185 = vmin.f32 %v64, %v1169
  %v1186 = vmin.f32 %v65, %v1170
  %v1187 = vmin.f32 %v66, %v1171
  %v1188 = vmin.f32 %v67, %v1172
  %v1189 = vmin.f32 %v68, %v1173
  %v1190 = vmin.f32 %v69, %v1174
  %v1191 = vmin.f32 %v70, %v1175
  %v1192 = vadd.f32 %v31, %v1176
  %v1193 = vadd.f32 %v32, %v1177
  %v1194 = vadd.f32 %v33, %v1178
  %v1195 = vadd.f32 %v34, %v1179
  %v1196 = vadd.f32 %v35, %v1180
  %v1197 = vadd.f32 %v36, %v1181
  %v1198 = vadd.f32 %v37, %v1182
  %v1199 = vadd.f32 %v38, %v1183
  %v1200 = vadd.f32 %v31, %v1184
  %v1201 = vadd.f32 %v32, %v1185
  %v1202 = vadd.f32 %v33, %v1186
  %v1203 = vadd.f32 %v34, %v1187
  %v1204 = vadd.f32 %v35, %v1188
  %v1205 = vadd.f32 %v36, %v1189
  %v1206 = vadd.f32 %v37, %v1190
  %v1207 = vadd.f32 %v38, %v1191
  %1208 = vmatpush.msra.mxu0 %v86
  %1209 = vmatpush.msra.mxu0 %v85
  %1210 = vmatpush.msra.mxu0 %v84
  %1211 = vmatpush.msra.mxu0 %v83
  %1212 = vmatpush.msra.mxu0 %v82
  %1213 = vmatpush.msra.mxu0 %v81
  %1214 = vmatpush.msra.mxu0 %v80
  %1215 = vmatpush.msra.mxu0 %v79
  %1216 = vmatpush.msra.mxu0 %v78
  %1217 = vmatpush.msra.mxu0 %v77
  %1218 = vmatpush.msra.mxu0 %v76
  %1219 = vmatpush.msra.mxu0 %v75
  %1220 = vmatpush.msra.mxu0 %v74
  %1221 = vmatpush.msra.mxu0 %v73
  %1222 = vmatpush.msra.mxu0 %v72
  %1223 = vmatpush.msra.mxu0 %v71
  %1224 = vmatmul.f32.gmra.mxu0 %v1192
  %v1225 = vpop.f32.mrf.mxu0
  %v1226 = vadd.f32 0.0, %v1225
  %1227 = vmatmul.f32.gmra.mxu0 %v1200
  %v1228 = vpop.f32.mrf.mxu0
  %v1229 = vadd.f32 0.0, %v1228
  %1230 = vdwg.mxu0
  %1231 = vmatpush.msra.mxu0 %v102
  %1232 = vmatpush.msra.mxu0 %v101
  %1233 = vmatpush.msra.mxu0 %v100
  %1234 = vmatpush.msra.mxu0 %v99
  %1235 = vmatpush.msra.mxu0 %v98
  %1236 = vmatpush.msra.mxu0 %v97
  %1237 = vmatpush.msra.mxu0 %v96
  %1238 = vmatpush.msra.mxu0 %v95
  %1239 = vmatpush.msra.mxu0 %v94
  %1240 = vmatpush.msra.mxu0 %v93
  %1241 = vmatpush.msra.mxu0 %v92
  %1242 = vmatpush.msra.mxu0 %v91
  %1243 = vmatpush.msra.mxu0 %v90
  %1244 = vmatpush.msra.mxu0 %v89
  %1245 = vmatpush.msra.mxu0 %v88
  %1246 = vmatpush.msra.mxu0 %v87
  %1247 = vmatmul.f32.gmra.mxu0 %v1193
  %v1248 = vpop.f32.mrf.mxu0
  %v1249 = vadd.f32 %v1226, %v1248
  %1250 = vmatmul.f32.gmra.mxu0 %v1201
  %v1251 = vpop.f32.mrf.mxu0
  %v1252 = vadd.f32 %v1229, %v1251
  %1253 = vdwg.mxu0
  %1254 = vmatpush.msra.mxu0 %v118
  %1255 = vmatpush.msra.mxu0 %v117
  %1256 = vmatpush.msra.mxu0 %v116
  %1257 = vmatpush.msra.mxu0 %v115
  %1258 = vmatpush.msra.mxu0 %v114
  %1259 = vmatpush.msra.mxu0 %v113
  %1260 = vmatpush.msra.mxu0 %v112
  %1261 = vmatpush.msra.mxu0 %v111
  %1262 = vmatpush.msra.mxu0 %v110
  %1263 = vmatpush.msra.mxu0 %v109
  %1264 = vmatpush.msra.mxu0 %v108
  %1265 = vmatpush.msra.mxu0 %v107
  %1266 = vmatpush.msra.mxu0 %v106
  %1267 = vmatpush.msra.mxu0 %v105
  %1268 = vmatpush.msra.mxu0 %v104
  %1269 = vmatpush.msra.mxu0 %v103
  %1270 = vmatmul.f32.gmra.mxu0 %v1194
  %v1271 = vpop.f32.mrf.mxu0
  %v1272 = vadd.f32 %v1249, %v1271
  %1273 = vmatmul.f32.gmra.mxu0 %v1202
  %v1274 = vpop.f32.mrf.mxu0
  %v1275 = vadd.f32 %v1252, %v1274
  %1276 = vdwg.mxu0
  %1277 = vmatpush.msra.mxu0 %v134
  %1278 = vmatpush.msra.mxu0 %v133
  %1279 = vmatpush.msra.mxu0 %v132
  %1280 = vmatpush.msra.mxu0 %v131
  %1281 = vmatpush.msra.mxu0 %v130
  %1282 = vmatpush.msra.mxu0 %v129
  %1283 = vmatpush.msra.mxu0 %v128
  %1284 = vmatpush.msra.mxu0 %v127
  %1285 = vmatpush.msra.mxu0 %v126
  %1286 = vmatpush.msra.mxu0 %v125
  %1287 = vmatpush.msra.mxu0 %v124
  %1288 = vmatpush.msra.mxu0 %v123
  %1289 = vmatpush.msra.mxu0 %v122
  %1290 = vmatpush.msra.mxu0 %v121
  %1291 = vmatpush.msra.mxu0 %v120
  %1292 = vmatpush.msra.mxu0 %v119
  %1293 = vmatmul.f32.gmra.mxu0 %v1195
  %v1294 = vpop.f32.mrf.mxu0
  %v1295 = vadd.f32 %v1272, %v1294
  %1296 = vmatmul.f32.gmra.mxu0 %v1203
  %v1297 = vpop.f32.mrf.mxu0
  %v1298 = vadd.f32 %v1275, %v1297
  %1299 = vdwg.mxu0
  %1300 = vmatpush.msra.mxu0 %v150
  %1301 = vmatpush.msra.mxu0 %v149
  %1302 = vmatpush.msra.mxu0 %v148
  %1303 = vmatpush.msra.mxu0 %v147
  %1304 = vmatpush.msra.mxu0 %v146
  %1305 = vmatpush.msra.mxu0 %v145
  %1306 = vmatpush.msra.mxu0 %v144
  %1307 = vmatpush.msra.mxu0 %v143
  %1308 = vmatpush.msra.mxu0 %v142
  %1309 = vmatpush.msra.mxu0 %v141
  %1310 = vmatpush.msra.mxu0 %v140
  %1311 = vmatpush.msra.mxu0 %v139
  %1312 = vmatpush.msra.mxu0 %v138
  %1313 = vmatpush.msra.mxu0 %v137
  %1314 = vmatpush.msra.mxu0 %v136
  %1315 = vmatpush.msra.mxu0 %v135
  %1316 = vmatmul.f32.gmra.mxu0 %v1196
  %v1317 = vpop.f32.mrf.mxu0
  %v1318 = vadd.f32 %v1295, %v1317
  %1319 = vmatmul.f32.gmra.mxu0 %v1204
  %v1320 = vpop.f32.mrf.mxu0
  %v1321 = vadd.f32 %v1298, %v1320
  %1322 = vdwg.mxu0
  %1323 = vmatpush.msra.mxu0 %v166
  %1324 = vmatpush.msra.mxu0 %v165
  %1325 = vmatpush.msra.mxu0 %v164
  %1326 = vmatpush.msra.mxu0 %v163
  %1327 = vmatpush.msra.mxu0 %v162
  %1328 = vmatpush.msra.mxu0 %v161
  %1329 = vmatpush.msra.mxu0 %v160
  %1330 = vmatpush.msra.mxu0 %v159
  %1331 = vmatpush.msra.mxu0 %v158
  %1332 = vmatpush.msra.mxu0 %v157
  %1333 = vmatpush.msra.mxu0 %v156
  %1334 = vmatpush.msra.mxu0 %v155
  %1335 = vmatpush.msra.mxu0 %v154
  %1336 = vmatpush.msra.mxu0 %v153
  %1337 = vmatpush.msra.mxu0 %v152
  %1338 = vmatpush.msra.mxu0 %v151
  %1339 = vmatmul.f32.gmra.mxu0 %v1197
  %v1340 = vpop.f32.mrf.mxu0
  %v1341 = vadd.f32 %v1318, %v1340
  %1342 = vmatmul.f32.gmra.mxu0 %v1205
  %v1343 = vpop.f32.mrf.mxu0
  %v1344 = vadd.f32 %v1321, %v1343
  %1345 = vdwg.mxu0
  %1346 = vmatpush.msra.mxu0 %v182
  %1347 = vmatpush.msra.mxu0 %v181
  %1348 = vmatpush.msra.mxu0 %v180
  %1349 = vmatpush.msra.mxu0 %v179
  %1350 = vmatpush.msra.mxu0 %v178
  %1351 = vmatpush.msra.mxu0 %v177
  %1352 = vmatpush.msra.mxu0 %v176
  %1353 = vmatpush.msra.mxu0 %v175
  %1354 = vmatpush.msra.mxu0 %v174
  %1355 = vmatpush.msra.mxu0 %v173
  %1356 = vmatpush.msra.mxu0 %v172
  %1357 = vmatpush.msra.mxu0 %v171
  %1358 = vmatpush.msra.mxu0 %v170
  %1359 = vmatpush.msra.mxu0 %v169
  %1360 = vmatpush.msra.mxu0 %v168
  %1361 = vmatpush.msra.mxu0 %v167
  %1362 = vmatmul.f32.gmra.mxu0 %v1198
  %v1363 = vpop.f32.mrf.mxu0
  %v1364 = vadd.f32 %v1341, %v1363
  %1365 = vmatmul.f32.gmra.mxu0 %v1206
  %v1366 = vpop.f32.mrf.mxu0
  %v1367 = vadd.f32 %v1344, %v1366
  %1368 = vdwg.mxu0
  %1369 = vmatpush.msra.mxu0 %v198
  %1370 = vmatpush.msra.mxu0 %v197
  %1371 = vmatpush.msra.mxu0 %v196
  %1372 = vmatpush.msra.mxu0 %v195
  %1373 = vmatpush.msra.mxu0 %v194
  %1374 = vmatpush.msra.mxu0 %v193
  %1375 = vmatpush.msra.mxu0 %v192
  %1376 = vmatpush.msra.mxu0 %v191
  %1377 = vmatpush.msra.mxu0 %v190
  %1378 = vmatpush.msra.mxu0 %v189
  %1379 = vmatpush.msra.mxu0 %v188
  %1380 = vmatpush.msra.mxu0 %v187
  %1381 = vmatpush.msra.mxu0 %v186
  %1382 = vmatpush.msra.mxu0 %v185
  %1383 = vmatpush.msra.mxu0 %v184
  %1384 = vmatpush.msra.mxu0 %v183
  %1385 = vmatmul.f32.gmra.mxu0 %v1199
  %v1386 = vpop.f32.mrf.mxu0
  %v1387 = vadd.f32 %v1364, %v1386
  %1388 = vmatmul.f32.gmra.mxu0 %v1207
  %v1389 = vpop.f32.mrf.mxu0
  %v1390 = vadd.f32 %v1367, %v1389
  %1391 = vdwg.mxu0
  %1392 = vmatpush.msra.mxu0 %v342
  %1393 = vmatpush.msra.mxu0 %v341
  %1394 = vmatpush.msra.mxu0 %v340
  %1395 = vmatpush.msra.mxu0 %v339
  %1396 = vmatpush.msra.mxu0 %v338
  %1397 = vmatpush.msra.mxu0 %v337
  %1398 = vmatpush.msra.mxu0 %v336
  %1399 = vmatpush.msra.mxu0 %v335
  %1400 = vmatpush.msra.mxu0 %v334
  %1401 = vmatpush.msra.mxu0 %v333
  %1402 = vmatpush.msra.mxu0 %v332
  %1403 = vmatpush.msra.mxu0 %v331
  %1404 = vmatpush.msra.mxu0 %v330
  %1405 = vmatpush.msra.mxu0 %v329
  %1406 = vmatpush.msra.mxu0 %v328
  %1407 = vmatpush.msra.mxu0 %v327
  %1408 = vmatmul.f32.gmra.mxu0 %v1387
  %v1409 = vpop.f32.mrf.mxu0
  %v1410 = vadd.f32 %v378, %v1409
  %1411 = vmatmul.f32.gmra.mxu0 %v1390
  %v1412 = vpop.f32.mrf.mxu0
  %v1413 = vadd.f32 %v378, %v1412
  %1414 = vdwg.mxu0
  %1415 = vmax.xlane.f32.xlu0 %v1410
  %v1416 = vpop.xlane.xlu0 %1415
  %1417 = vmax.xlane.f32.xlu0 %v1413
  %v1418 = vpop.xlane.xlu0 %1417
  %v1419 = vsub.f32 %v1410, %v1416
  %v1420 = vsub.f32 %v1413, %v1418
  %v1421 = vmul.f32 %v1419, 1.442695
  %v1422 = vpow.pop %v1421
  %v1423 = vmul.f32 %v1420, 1.442695
  %v1424 = vpow.pop %v1423
  %v1425 = vmul.f32 %v1422, %v364
  %v1426 = vmul.f32 %v1424, %v364
  %1427 = vadd.xlane.f32.xlu0 %v1425
  %v1428 = vpop.xlane.xlu0 %1427
  %1429 = vadd.xlane.f32.xlu0 %v1426
  %v1430 = vpop.xlane.xlu0 %1429
  %v1431 = vmul.f32 %v1422, %v369
  %v1432 = vmul.f32 %v1424, %v369
  %1433 = vadd.xlane.f32.xlu0 %v1431
  %v1434 = vpop.xlane.xlu0 %1433
  %1435 = vadd.xlane.f32.xlu0 %v1432
  %v1436 = vpop.xlane.xlu0 %1435
  %v1437 = vmul.f32 %v1422, %v374
  %v1438 = vmul.f32 %v1424, %v374
  %1439 = vadd.xlane.f32.xlu0 %v1437
  %v1440 = vpop.xlane.xlu0 %1439
  %1441 = vadd.xlane.f32.xlu0 %v1438
  %v1442 = vpop.xlane.xlu0 %1441
  %v1443 = vmax.f32 %v1428, 1e-30
  %v1444 = vmax.f32 %v1430, 1e-30
  %v1445 = vrcp.pop %v1443
  %v1446 = vmul.f32 %v1443, %v1445
  %v1447 = vsub.f32 1.0, %v1446
  %v1448 = vmul.f32 %v1445, %v1447
  %v1449 = vadd.f32 %v1445, %v1448
  %vm1450 = vweird.f32 %v1443
  %vm1451 = vweird.f32 %v1445
  %vm1452 = vmor %vm1450, %vm1451
  %v1453 = vsel %vm1452, %v1445, %v1449
  %v1454 = vand.u32 2147483647, %v1443
  %vm1455 = vcmp.eq.f32.partialorder %v1454, 8.507059e+37
  %v1456 = vand.u32 %v1443, 2147483648
  %v1457 = vor.u32 1.1754944e-38, %v1456
  %v1458 = vsel %vm1455, %v1457, %v1453
  %v1459 = vmul.f32 1.0, %v1458
  %v1460 = vrcp.pop %v1444
  %v1461 = vmul.f32 %v1444, %v1460
  %v1462 = vsub.f32 1.0, %v1461
  %v1463 = vmul.f32 %v1460, %v1462
  %v1464 = vadd.f32 %v1460, %v1463
  %vm1465 = vweird.f32 %v1444
  %vm1466 = vweird.f32 %v1460
  %vm1467 = vmor %vm1465, %vm1466
  %v1468 = vsel %vm1467, %v1460, %v1464
  %v1469 = vand.u32 2147483647, %v1444
  %vm1470 = vcmp.eq.f32.partialorder %v1469, 8.507059e+37
  %v1471 = vand.u32 %v1444, 2147483648
  %v1472 = vor.u32 1.1754944e-38, %v1471
  %v1473 = vsel %vm1470, %v1472, %v1468
  %v1474 = vmul.f32 1.0, %v1473
  %v1475 = vmax.f32 %v1434, 1e-30
  %v1476 = vmax.f32 %v1436, 1e-30
  %v1477 = vrcp.pop %v1475
  %v1478 = vmul.f32 %v1475, %v1477
  %v1479 = vsub.f32 1.0, %v1478
  %v1480 = vmul.f32 %v1477, %v1479
  %v1481 = vadd.f32 %v1477, %v1480
  %vm1482 = vweird.f32 %v1475
  %vm1483 = vweird.f32 %v1477
  %vm1484 = vmor %vm1482, %vm1483
  %v1485 = vsel %vm1484, %v1477, %v1481
  %v1486 = vand.u32 2147483647, %v1475
  %vm1487 = vcmp.eq.f32.partialorder %v1486, 8.507059e+37
  %v1488 = vand.u32 %v1475, 2147483648
  %v1489 = vor.u32 1.1754944e-38, %v1488
  %v1490 = vsel %vm1487, %v1489, %v1485
  %v1491 = vmul.f32 1.0, %v1490
  %v1492 = vrcp.pop %v1476
  %v1493 = vmul.f32 %v1476, %v1492
  %v1494 = vsub.f32 1.0, %v1493
  %v1495 = vmul.f32 %v1492, %v1494
  %v1496 = vadd.f32 %v1492, %v1495
  %vm1497 = vweird.f32 %v1476
  %vm1498 = vweird.f32 %v1492
  %vm1499 = vmor %vm1497, %vm1498
  %v1500 = vsel %vm1499, %v1492, %v1496
  %v1501 = vand.u32 2147483647, %v1476
  %vm1502 = vcmp.eq.f32.partialorder %v1501, 8.507059e+37
  %v1503 = vand.u32 %v1476, 2147483648
  %v1504 = vor.u32 1.1754944e-38, %v1503
  %v1505 = vsel %vm1502, %v1504, %v1500
  %v1506 = vmul.f32 1.0, %v1505
  %v1507 = vmax.f32 %v1440, 1e-30
  %v1508 = vmax.f32 %v1442, 1e-30
  %v1509 = vrcp.pop %v1507
  %v1510 = vmul.f32 %v1507, %v1509
  %v1511 = vsub.f32 1.0, %v1510
  %v1512 = vmul.f32 %v1509, %v1511
  %v1513 = vadd.f32 %v1509, %v1512
  %vm1514 = vweird.f32 %v1507
  %vm1515 = vweird.f32 %v1509
  %vm1516 = vmor %vm1514, %vm1515
  %v1517 = vsel %vm1516, %v1509, %v1513
  %v1518 = vand.u32 2147483647, %v1507
  %vm1519 = vcmp.eq.f32.partialorder %v1518, 8.507059e+37
  %v1520 = vand.u32 %v1507, 2147483648
  %v1521 = vor.u32 1.1754944e-38, %v1520
  %v1522 = vsel %vm1519, %v1521, %v1517
  %v1523 = vmul.f32 1.0, %v1522
  %v1524 = vrcp.pop %v1508
  %v1525 = vmul.f32 %v1508, %v1524
  %v1526 = vsub.f32 1.0, %v1525
  %v1527 = vmul.f32 %v1524, %v1526
  %v1528 = vadd.f32 %v1524, %v1527
  %vm1529 = vweird.f32 %v1508
  %vm1530 = vweird.f32 %v1524
  %vm1531 = vmor %vm1529, %vm1530
  %v1532 = vsel %vm1531, %v1524, %v1528
  %v1533 = vand.u32 2147483647, %v1508
  %vm1534 = vcmp.eq.f32.partialorder %v1533, 8.507059e+37
  %v1535 = vand.u32 %v1508, 2147483648
  %v1536 = vor.u32 1.1754944e-38, %v1535
  %v1537 = vsel %vm1534, %v1536, %v1532
  %v1538 = vmul.f32 1.0, %v1537
  %v1539 = vmul.f32 %v1459, %v364
  %v1540 = vmul.f32 %v1474, %v364
  %v1541 = vmul.f32 %v1491, %v369
  %v1542 = vmul.f32 %v1506, %v369
  %v1543 = vadd.f32 %v1539, %v1541
  %v1544 = vadd.f32 %v1540, %v1542
  %v1545 = vmul.f32 %v1523, %v374
  %v1546 = vmul.f32 %v1538, %v374
  %v1547 = vadd.f32 %v1543, %v1545
  %v1548 = vadd.f32 %v1544, %v1546
  %v1549 = vmul.f32 %v1422, %v1547
  %v1550 = vmul.f32 %v1424, %v1548
  %v1551 = vsub.f32 %v1549, %v359
  %v1552 = vsub.f32 %v1550, %v359
  %1553 = vmatpush.msra.mxu0 %v358
  %1554 = vmatpush.msra.mxu0 %v357
  %1555 = vmatpush.msra.mxu0 %v356
  %1556 = vmatpush.msra.mxu0 %v355
  %1557 = vmatpush.msra.mxu0 %v354
  %1558 = vmatpush.msra.mxu0 %v353
  %1559 = vmatpush.msra.mxu0 %v352
  %1560 = vmatpush.msra.mxu0 %v351
  %1561 = vmatpush.msra.mxu0 %v350
  %1562 = vmatpush.msra.mxu0 %v349
  %1563 = vmatpush.msra.mxu0 %v348
  %1564 = vmatpush.msra.mxu0 %v347
  %1565 = vmatpush.msra.mxu0 %v346
  %1566 = vmatpush.msra.mxu0 %v345
  %1567 = vmatpush.msra.mxu0 %v344
  %1568 = vmatpush.msra.mxu0 %v343
  %1569 = vmatmul.f32.gmra.mxu0 %v1551
  %v1570 = vpop.f32.mrf.mxu0
  %v1571 = vadd.f32 0.0, %v1570
  %1572 = vmatmul.f32.gmra.mxu0 %v1552
  %v1573 = vpop.f32.mrf.mxu0
  %v1574 = vadd.f32 0.0, %v1573
  %1575 = vdwg.mxu0
  %v1576 = vmul.f32 %v1387, %v1390
  %1577 = vadd.xlane.f32.xlu0 %v1576
  %v1578 = vpop.xlane.xlu0 %1577
  %v1579 = vmul.f32 %v1387, %v1387
  %1580 = vadd.xlane.f32.xlu0 %v1579
  %v1581 = vpop.xlane.xlu0 %1580
  %v1582 = vrsqrt.pop %v1581
  %v1583 = vmul.f32 %v1582, %v1581
  %v1584 = vmul.f32 %v1583, %v1582
  %v1585 = vmul.f32 0.5, %v1584
  %v1586 = vsub.f32 1.5, %v1585
  %v1587 = vmul.f32 %v1582, %v1586
  %v1588 = vmul.f32 %v1581, %v1587
  %vm1589 = vcmp.eq.f32.partialorder %v1581, inf
  %v1590 = vsel %vm1589, %v1581, %v1588
  %vm1591 = vcmp.eq.f32.partialorder %v1581, 0.0
  %v1592 = vand.u32 %v1581, 2147483648
  %v1593 = vsel %vm1591, %v1592, %v1590
  %v1594 = vmax.f32 %v1593, 1e-08
  %v1595 = vmul.f32 %v1390, %v1390
  %1596 = vadd.xlane.f32.xlu0 %v1595
  %v1597 = vpop.xlane.xlu0 %1596
  %v1598 = vrsqrt.pop %v1597
  %v1599 = vmul.f32 %v1598, %v1597
  %v1600 = vmul.f32 %v1599, %v1598
  %v1601 = vmul.f32 0.5, %v1600
  %v1602 = vsub.f32 1.5, %v1601
  %v1603 = vmul.f32 %v1598, %v1602
  %v1604 = vmul.f32 %v1597, %v1603
  %vm1605 = vcmp.eq.f32.partialorder %v1597, inf
  %v1606 = vsel %vm1605, %v1597, %v1604
  %vm1607 = vcmp.eq.f32.partialorder %v1597, 0.0
  %v1608 = vand.u32 %v1597, 2147483648
  %v1609 = vsel %vm1607, %v1608, %v1606
  %v1610 = vmax.f32 %v1609, 1e-08
  %v1611 = vmul.f32 %v1594, %v1610
  %v1612 = vrcp.pop %v1611
  %v1613 = vmul.f32 %v1611, %v1612
  %v1614 = vsub.f32 1.0, %v1613
  %v1615 = vmul.f32 %v1612, %v1614
  %v1616 = vadd.f32 %v1612, %v1615
  %vm1617 = vweird.f32 %v1611
  %vm1618 = vweird.f32 %v1612
  %vm1619 = vmor %vm1617, %vm1618
  %v1620 = vsel %vm1619, %v1612, %v1616
  %v1621 = vand.u32 2147483647, %v1611
  %vm1622 = vcmp.eq.f32.partialorder %v1621, 8.507059e+37
  %v1623 = vand.u32 %v1611, 2147483648
  %v1624 = vor.u32 1.1754944e-38, %v1623
  %v1625 = vsel %vm1622, %v1624, %v1620
  %v1626 = vmul.f32 1.0, %v1625
  %v1627 = vmul.f32 %v1578, %v1626
  %v1628 = vmul.f32 %v1390, %v1626
  %v1629 = vmul.f32 %v1594, %v1594
  %v1630 = vrcp.pop %v1629
  %v1631 = vmul.f32 %v1629, %v1630
  %v1632 = vsub.f32 1.0, %v1631
  %v1633 = vmul.f32 %v1630, %v1632
  %v1634 = vadd.f32 %v1630, %v1633
  %vm1635 = vweird.f32 %v1629
  %vm1636 = vweird.f32 %v1630
  %vm1637 = vmor %vm1635, %vm1636
  %v1638 = vsel %vm1637, %v1630, %v1634
  %v1639 = vand.u32 2147483647, %v1629
  %vm1640 = vcmp.eq.f32.partialorder %v1639, 8.507059e+37
  %v1641 = vand.u32 %v1629, 2147483648
  %v1642 = vor.u32 1.1754944e-38, %v1641
  %v1643 = vsel %vm1640, %v1642, %v1638
  %v1644 = vmul.f32 %v1627, %v1643
  %v1645 = vmul.f32 %v1387, %v1644
  %v1646 = vsub.f32 %v1628, %v1645
  %v1647 = vmul.f32 %v1387, %v1626
  %v1648 = vmul.f32 %v1610, %v1610
  %v1649 = vrcp.pop %v1648
  %v1650 = vmul.f32 %v1648, %v1649
  %v1651 = vsub.f32 1.0, %v1650
  %v1652 = vmul.f32 %v1649, %v1651
  %v1653 = vadd.f32 %v1649, %v1652
  %vm1654 = vweird.f32 %v1648
  %vm1655 = vweird.f32 %v1649
  %vm1656 = vmor %vm1654, %vm1655
  %v1657 = vsel %vm1656, %v1649, %v1653
  %v1658 = vand.u32 2147483647, %v1648
  %vm1659 = vcmp.eq.f32.partialorder %v1658, 8.507059e+37
  %v1660 = vand.u32 %v1648, 2147483648
  %v1661 = vor.u32 1.1754944e-38, %v1660
  %v1662 = vsel %vm1659, %v1661, %v1657
  %v1663 = vmul.f32 %v1627, %v1662
  %v1664 = vmul.f32 %v1390, %v1663
  %v1665 = vsub.f32 %v1647, %v1664
  %v1666 = vmul.f32 %v384, %v1571
  %v1667 = vmul.f32 %v385, %v1574
  %v1668 = vsub.f32 %v1666, %v1646
  %v1669 = vsub.f32 %v1667, %v1665
  %1670 = vmatpush.msra.mxu0 %v319
  %1671 = vmatpush.msra.mxu0 %v311
  %1672 = vmatpush.msra.mxu0 %v303
  %1673 = vmatpush.msra.mxu0 %v295
  %1674 = vmatpush.msra.mxu0 %v287
  %1675 = vmatpush.msra.mxu0 %v279
  %1676 = vmatpush.msra.mxu0 %v271
  %1677 = vmatpush.msra.mxu0 %v263
  %1678 = vmatpush.msra.mxu0 %v255
  %1679 = vmatpush.msra.mxu0 %v247
  %1680 = vmatpush.msra.mxu0 %v239
  %1681 = vmatpush.msra.mxu0 %v231
  %1682 = vmatpush.msra.mxu0 %v223
  %1683 = vmatpush.msra.mxu0 %v215
  %1684 = vmatpush.msra.mxu0 %v207
  %1685 = vmatpush.msra.mxu0 %v199
  %1686 = vmatmul.f32.gmra.mxu0 %v1668
  %v1687 = vpop.f32.mrf.mxu0
  %v1688 = vadd.f32 0.0, %v1687
  %1689 = vmatmul.f32.gmra.mxu0 %v1669
  %v1690 = vpop.f32.mrf.mxu0
  %v1691 = vadd.f32 0.0, %v1690
  %1692 = vdwg.mxu0
  %1693 = vmatpush.msra.mxu0 %v320
  %1694 = vmatpush.msra.mxu0 %v312
  %1695 = vmatpush.msra.mxu0 %v304
  %1696 = vmatpush.msra.mxu0 %v296
  %1697 = vmatpush.msra.mxu0 %v288
  %1698 = vmatpush.msra.mxu0 %v280
  %1699 = vmatpush.msra.mxu0 %v272
  %1700 = vmatpush.msra.mxu0 %v264
  %1701 = vmatpush.msra.mxu0 %v256
  %1702 = vmatpush.msra.mxu0 %v248
  %1703 = vmatpush.msra.mxu0 %v240
  %1704 = vmatpush.msra.mxu0 %v232
  %1705 = vmatpush.msra.mxu0 %v224
  %1706 = vmatpush.msra.mxu0 %v216
  %1707 = vmatpush.msra.mxu0 %v208
  %1708 = vmatpush.msra.mxu0 %v200
  %1709 = vmatmul.f32.gmra.mxu0 %v1668
  %v1710 = vpop.f32.mrf.mxu0
  %v1711 = vadd.f32 0.0, %v1710
  %1712 = vmatmul.f32.gmra.mxu0 %v1669
  %v1713 = vpop.f32.mrf.mxu0
  %v1714 = vadd.f32 0.0, %v1713
  %1715 = vdwg.mxu0
  %1716 = vmatpush.msra.mxu0 %v321
  %1717 = vmatpush.msra.mxu0 %v313
  %1718 = vmatpush.msra.mxu0 %v305
  %1719 = vmatpush.msra.mxu0 %v297
  %1720 = vmatpush.msra.mxu0 %v289
  %1721 = vmatpush.msra.mxu0 %v281
  %1722 = vmatpush.msra.mxu0 %v273
  %1723 = vmatpush.msra.mxu0 %v265
  %1724 = vmatpush.msra.mxu0 %v257
  %1725 = vmatpush.msra.mxu0 %v249
  %1726 = vmatpush.msra.mxu0 %v241
  %1727 = vmatpush.msra.mxu0 %v233
  %1728 = vmatpush.msra.mxu0 %v225
  %1729 = vmatpush.msra.mxu0 %v217
  %1730 = vmatpush.msra.mxu0 %v209
  %1731 = vmatpush.msra.mxu0 %v201
  %1732 = vmatmul.f32.gmra.mxu0 %v1668
  %v1733 = vpop.f32.mrf.mxu0
  %v1734 = vadd.f32 0.0, %v1733
  %1735 = vmatmul.f32.gmra.mxu0 %v1669
  %v1736 = vpop.f32.mrf.mxu0
  %v1737 = vadd.f32 0.0, %v1736
  %1738 = vdwg.mxu0
  %1739 = vmatpush.msra.mxu0 %v322
  %1740 = vmatpush.msra.mxu0 %v314
  %1741 = vmatpush.msra.mxu0 %v306
  %1742 = vmatpush.msra.mxu0 %v298
  %1743 = vmatpush.msra.mxu0 %v290
  %1744 = vmatpush.msra.mxu0 %v282
  %1745 = vmatpush.msra.mxu0 %v274
  %1746 = vmatpush.msra.mxu0 %v266
  %1747 = vmatpush.msra.mxu0 %v258
  %1748 = vmatpush.msra.mxu0 %v250
  %1749 = vmatpush.msra.mxu0 %v242
  %1750 = vmatpush.msra.mxu0 %v234
  %1751 = vmatpush.msra.mxu0 %v226
  %1752 = vmatpush.msra.mxu0 %v218
  %1753 = vmatpush.msra.mxu0 %v210
  %1754 = vmatpush.msra.mxu0 %v202
  %1755 = vmatmul.f32.gmra.mxu0 %v1668
  %v1756 = vpop.f32.mrf.mxu0
  %v1757 = vadd.f32 0.0, %v1756
  %1758 = vmatmul.f32.gmra.mxu0 %v1669
  %v1759 = vpop.f32.mrf.mxu0
  %v1760 = vadd.f32 0.0, %v1759
  %1761 = vdwg.mxu0
  %1762 = vmatpush.msra.mxu0 %v323
  %1763 = vmatpush.msra.mxu0 %v315
  %1764 = vmatpush.msra.mxu0 %v307
  %1765 = vmatpush.msra.mxu0 %v299
  %1766 = vmatpush.msra.mxu0 %v291
  %1767 = vmatpush.msra.mxu0 %v283
  %1768 = vmatpush.msra.mxu0 %v275
  %1769 = vmatpush.msra.mxu0 %v267
  %1770 = vmatpush.msra.mxu0 %v259
  %1771 = vmatpush.msra.mxu0 %v251
  %1772 = vmatpush.msra.mxu0 %v243
  %1773 = vmatpush.msra.mxu0 %v235
  %1774 = vmatpush.msra.mxu0 %v227
  %1775 = vmatpush.msra.mxu0 %v219
  %1776 = vmatpush.msra.mxu0 %v211
  %1777 = vmatpush.msra.mxu0 %v203
  %1778 = vmatmul.f32.gmra.mxu0 %v1668
  %v1779 = vpop.f32.mrf.mxu0
  %v1780 = vadd.f32 0.0, %v1779
  %1781 = vmatmul.f32.gmra.mxu0 %v1669
  %v1782 = vpop.f32.mrf.mxu0
  %v1783 = vadd.f32 0.0, %v1782
  %1784 = vdwg.mxu0
  %1785 = vmatpush.msra.mxu0 %v324
  %1786 = vmatpush.msra.mxu0 %v316
  %1787 = vmatpush.msra.mxu0 %v308
  %1788 = vmatpush.msra.mxu0 %v300
  %1789 = vmatpush.msra.mxu0 %v292
  %1790 = vmatpush.msra.mxu0 %v284
  %1791 = vmatpush.msra.mxu0 %v276
  %1792 = vmatpush.msra.mxu0 %v268
  %1793 = vmatpush.msra.mxu0 %v260
  %1794 = vmatpush.msra.mxu0 %v252
  %1795 = vmatpush.msra.mxu0 %v244
  %1796 = vmatpush.msra.mxu0 %v236
  %1797 = vmatpush.msra.mxu0 %v228
  %1798 = vmatpush.msra.mxu0 %v220
  %1799 = vmatpush.msra.mxu0 %v212
  %1800 = vmatpush.msra.mxu0 %v204
  %1801 = vmatmul.f32.gmra.mxu0 %v1668
  %v1802 = vpop.f32.mrf.mxu0
  %v1803 = vadd.f32 0.0, %v1802
  %1804 = vmatmul.f32.gmra.mxu0 %v1669
  %v1805 = vpop.f32.mrf.mxu0
  %v1806 = vadd.f32 0.0, %v1805
  %1807 = vdwg.mxu0
  %1808 = vmatpush.msra.mxu0 %v325
  %1809 = vmatpush.msra.mxu0 %v317
  %1810 = vmatpush.msra.mxu0 %v309
  %1811 = vmatpush.msra.mxu0 %v301
  %1812 = vmatpush.msra.mxu0 %v293
  %1813 = vmatpush.msra.mxu0 %v285
  %1814 = vmatpush.msra.mxu0 %v277
  %1815 = vmatpush.msra.mxu0 %v269
  %1816 = vmatpush.msra.mxu0 %v261
  %1817 = vmatpush.msra.mxu0 %v253
  %1818 = vmatpush.msra.mxu0 %v245
  %1819 = vmatpush.msra.mxu0 %v237
  %1820 = vmatpush.msra.mxu0 %v229
  %1821 = vmatpush.msra.mxu0 %v221
  %1822 = vmatpush.msra.mxu0 %v213
  %1823 = vmatpush.msra.mxu0 %v205
  %1824 = vmatmul.f32.gmra.mxu0 %v1668
  %v1825 = vpop.f32.mrf.mxu0
  %v1826 = vadd.f32 0.0, %v1825
  %1827 = vmatmul.f32.gmra.mxu0 %v1669
  %v1828 = vpop.f32.mrf.mxu0
  %v1829 = vadd.f32 0.0, %v1828
  %1830 = vdwg.mxu0
  %1831 = vmatpush.msra.mxu0 %v326
  %1832 = vmatpush.msra.mxu0 %v318
  %1833 = vmatpush.msra.mxu0 %v310
  %1834 = vmatpush.msra.mxu0 %v302
  %1835 = vmatpush.msra.mxu0 %v294
  %1836 = vmatpush.msra.mxu0 %v286
  %1837 = vmatpush.msra.mxu0 %v278
  %1838 = vmatpush.msra.mxu0 %v270
  %1839 = vmatpush.msra.mxu0 %v262
  %1840 = vmatpush.msra.mxu0 %v254
  %1841 = vmatpush.msra.mxu0 %v246
  %1842 = vmatpush.msra.mxu0 %v238
  %1843 = vmatpush.msra.mxu0 %v230
  %1844 = vmatpush.msra.mxu0 %v222
  %1845 = vmatpush.msra.mxu0 %v214
  %1846 = vmatpush.msra.mxu0 %v206
  %1847 = vmatmul.f32.gmra.mxu0 %v1668
  %v1848 = vpop.f32.mrf.mxu0
  %v1849 = vadd.f32 0.0, %v1848
  %1850 = vmatmul.f32.gmra.mxu0 %v1669
  %v1851 = vpop.f32.mrf.mxu0
  %v1852 = vadd.f32 0.0, %v1851
  %1853 = vdwg.mxu0
  %vm1854 = vcmp.gt.f32.partialorder %v1688, 0.0
  %vm1855 = vcmp.gt.f32.partialorder %v1711, 0.0
  %vm1856 = vcmp.gt.f32.partialorder %v1734, 0.0
  %vm1857 = vcmp.gt.f32.partialorder %v1757, 0.0
  %vm1858 = vcmp.gt.f32.partialorder %v1780, 0.0
  %vm1859 = vcmp.gt.f32.partialorder %v1803, 0.0
  %vm1860 = vcmp.gt.f32.partialorder %v1826, 0.0
  %vm1861 = vcmp.gt.f32.partialorder %v1849, 0.0
  %vm1862 = vcmp.gt.f32.partialorder %v1691, 0.0
  %vm1863 = vcmp.gt.f32.partialorder %v1714, 0.0
  %vm1864 = vcmp.gt.f32.partialorder %v1737, 0.0
  %vm1865 = vcmp.gt.f32.partialorder %v1760, 0.0
  %vm1866 = vcmp.gt.f32.partialorder %v1783, 0.0
  %vm1867 = vcmp.gt.f32.partialorder %v1806, 0.0
  %vm1868 = vcmp.gt.f32.partialorder %v1829, 0.0
  %vm1869 = vcmp.gt.f32.partialorder %v1852, 0.0
  %vm1870 = vcmp.lt.f32.partialorder %v1688, 0.0
  %vm1871 = vcmp.lt.f32.partialorder %v1711, 0.0
  %vm1872 = vcmp.lt.f32.partialorder %v1734, 0.0
  %vm1873 = vcmp.lt.f32.partialorder %v1757, 0.0
  %vm1874 = vcmp.lt.f32.partialorder %v1780, 0.0
  %vm1875 = vcmp.lt.f32.partialorder %v1803, 0.0
  %vm1876 = vcmp.lt.f32.partialorder %v1826, 0.0
  %vm1877 = vcmp.lt.f32.partialorder %v1849, 0.0
  %vm1878 = vcmp.lt.f32.partialorder %v1691, 0.0
  %vm1879 = vcmp.lt.f32.partialorder %v1714, 0.0
  %vm1880 = vcmp.lt.f32.partialorder %v1737, 0.0
  %vm1881 = vcmp.lt.f32.partialorder %v1760, 0.0
  %vm1882 = vcmp.lt.f32.partialorder %v1783, 0.0
  %vm1883 = vcmp.lt.f32.partialorder %v1806, 0.0
  %vm1884 = vcmp.lt.f32.partialorder %v1829, 0.0
  %vm1885 = vcmp.lt.f32.partialorder %v1852, 0.0
  %v1886 = vsel %vm1870, -1.0, 0.0
  %v1887 = vsel %vm1871, -1.0, 0.0
  %v1888 = vsel %vm1872, -1.0, 0.0
  %v1889 = vsel %vm1873, -1.0, 0.0
  %v1890 = vsel %vm1874, -1.0, 0.0
  %v1891 = vsel %vm1875, -1.0, 0.0
  %v1892 = vsel %vm1876, -1.0, 0.0
  %v1893 = vsel %vm1877, -1.0, 0.0
  %v1894 = vsel %vm1878, -1.0, 0.0
  %v1895 = vsel %vm1879, -1.0, 0.0
  %v1896 = vsel %vm1880, -1.0, 0.0
  %v1897 = vsel %vm1881, -1.0, 0.0
  %v1898 = vsel %vm1882, -1.0, 0.0
  %v1899 = vsel %vm1883, -1.0, 0.0
  %v1900 = vsel %vm1884, -1.0, 0.0
  %v1901 = vsel %vm1885, -1.0, 0.0
  %v1902 = vsel %vm1854, 1.0, %v1886
  %v1903 = vsel %vm1855, 1.0, %v1887
  %v1904 = vsel %vm1856, 1.0, %v1888
  %v1905 = vsel %vm1857, 1.0, %v1889
  %v1906 = vsel %vm1858, 1.0, %v1890
  %v1907 = vsel %vm1859, 1.0, %v1891
  %v1908 = vsel %vm1860, 1.0, %v1892
  %v1909 = vsel %vm1861, 1.0, %v1893
  %v1910 = vsel %vm1862, 1.0, %v1894
  %v1911 = vsel %vm1863, 1.0, %v1895
  %v1912 = vsel %vm1864, 1.0, %v1896
  %v1913 = vsel %vm1865, 1.0, %v1897
  %v1914 = vsel %vm1866, 1.0, %v1898
  %v1915 = vsel %vm1867, 1.0, %v1899
  %v1916 = vsel %vm1868, 1.0, %v1900
  %v1917 = vsel %vm1869, 1.0, %v1901
  %v1918 = vmul.f32 %v1902, 0.007843138
  %v1919 = vmul.f32 %v1903, 0.007843138
  %v1920 = vmul.f32 %v1904, 0.007843138
  %v1921 = vmul.f32 %v1905, 0.007843138
  %v1922 = vmul.f32 %v1906, 0.007843138
  %v1923 = vmul.f32 %v1907, 0.007843138
  %v1924 = vmul.f32 %v1908, 0.007843138
  %v1925 = vmul.f32 %v1909, 0.007843138
  %v1926 = vmul.f32 %v1910, 0.007843138
  %v1927 = vmul.f32 %v1911, 0.007843138
  %v1928 = vmul.f32 %v1912, 0.007843138
  %v1929 = vmul.f32 %v1913, 0.007843138
  %v1930 = vmul.f32 %v1914, 0.007843138
  %v1931 = vmul.f32 %v1915, 0.007843138
  %v1932 = vmul.f32 %v1916, 0.007843138
  %v1933 = vmul.f32 %v1917, 0.007843138
  %v1934 = vadd.f32 %v1176, %v1918
  %v1935 = vadd.f32 %v1177, %v1919
  %v1936 = vadd.f32 %v1178, %v1920
  %v1937 = vadd.f32 %v1179, %v1921
  %v1938 = vadd.f32 %v1180, %v1922
  %v1939 = vadd.f32 %v1181, %v1923
  %v1940 = vadd.f32 %v1182, %v1924
  %v1941 = vadd.f32 %v1183, %v1925
  %v1942 = vadd.f32 %v1184, %v1926
  %v1943 = vadd.f32 %v1185, %v1927
  %v1944 = vadd.f32 %v1186, %v1928
  %v1945 = vadd.f32 %v1187, %v1929
  %v1946 = vadd.f32 %v1188, %v1930
  %v1947 = vadd.f32 %v1189, %v1931
  %v1948 = vadd.f32 %v1190, %v1932
  %v1949 = vadd.f32 %v1191, %v1933
  %v1950 = vmax.f32 %v47, %v1934
  %v1951 = vmax.f32 %v48, %v1935
  %v1952 = vmax.f32 %v49, %v1936
  %v1953 = vmax.f32 %v50, %v1937
  %v1954 = vmax.f32 %v51, %v1938
  %v1955 = vmax.f32 %v52, %v1939
  %v1956 = vmax.f32 %v53, %v1940
  %v1957 = vmax.f32 %v54, %v1941
  %v1958 = vmax.f32 %v47, %v1942
  %v1959 = vmax.f32 %v48, %v1943
  %v1960 = vmax.f32 %v49, %v1944
  %v1961 = vmax.f32 %v50, %v1945
  %v1962 = vmax.f32 %v51, %v1946
  %v1963 = vmax.f32 %v52, %v1947
  %v1964 = vmax.f32 %v53, %v1948
  %v1965 = vmax.f32 %v54, %v1949
  %v1966 = vmin.f32 %v63, %v1950
  %v1967 = vmin.f32 %v64, %v1951
  %v1968 = vmin.f32 %v65, %v1952
  %v1969 = vmin.f32 %v66, %v1953
  %v1970 = vmin.f32 %v67, %v1954
  %v1971 = vmin.f32 %v68, %v1955
  %v1972 = vmin.f32 %v69, %v1956
  %v1973 = vmin.f32 %v70, %v1957
  %v1974 = vmin.f32 %v63, %v1958
  %v1975 = vmin.f32 %v64, %v1959
  %v1976 = vmin.f32 %v65, %v1960
  %v1977 = vmin.f32 %v66, %v1961
  %v1978 = vmin.f32 %v67, %v1962
  %v1979 = vmin.f32 %v68, %v1963
  %v1980 = vmin.f32 %v69, %v1964
  %v1981 = vmin.f32 %v70, %v1965
  %v1982 = vadd.f32 %v31, %v1966
  %v1983 = vadd.f32 %v32, %v1967
  %v1984 = vadd.f32 %v33, %v1968
  %v1985 = vadd.f32 %v34, %v1969
  %v1986 = vadd.f32 %v35, %v1970
  %v1987 = vadd.f32 %v36, %v1971
  %v1988 = vadd.f32 %v37, %v1972
  %v1989 = vadd.f32 %v38, %v1973
  %v1990 = vadd.f32 %v31, %v1974
  %v1991 = vadd.f32 %v32, %v1975
  %v1992 = vadd.f32 %v33, %v1976
  %v1993 = vadd.f32 %v34, %v1977
  %v1994 = vadd.f32 %v35, %v1978
  %v1995 = vadd.f32 %v36, %v1979
  %v1996 = vadd.f32 %v37, %v1980
  %v1997 = vadd.f32 %v38, %v1981
  %1998 = vmatpush.msra.mxu0 %v86
  %1999 = vmatpush.msra.mxu0 %v85
  %2000 = vmatpush.msra.mxu0 %v84
  %2001 = vmatpush.msra.mxu0 %v83
  %2002 = vmatpush.msra.mxu0 %v82
  %2003 = vmatpush.msra.mxu0 %v81
  %2004 = vmatpush.msra.mxu0 %v80
  %2005 = vmatpush.msra.mxu0 %v79
  %2006 = vmatpush.msra.mxu0 %v78
  %2007 = vmatpush.msra.mxu0 %v77
  %2008 = vmatpush.msra.mxu0 %v76
  %2009 = vmatpush.msra.mxu0 %v75
  %2010 = vmatpush.msra.mxu0 %v74
  %2011 = vmatpush.msra.mxu0 %v73
  %2012 = vmatpush.msra.mxu0 %v72
  %2013 = vmatpush.msra.mxu0 %v71
  %2014 = vmatmul.f32.gmra.mxu0 %v1982
  %v2015 = vpop.f32.mrf.mxu0
  %v2016 = vadd.f32 0.0, %v2015
  %2017 = vmatmul.f32.gmra.mxu0 %v1990
  %v2018 = vpop.f32.mrf.mxu0
  %v2019 = vadd.f32 0.0, %v2018
  %2020 = vdwg.mxu0
  %2021 = vmatpush.msra.mxu0 %v102
  %2022 = vmatpush.msra.mxu0 %v101
  %2023 = vmatpush.msra.mxu0 %v100
  %2024 = vmatpush.msra.mxu0 %v99
  %2025 = vmatpush.msra.mxu0 %v98
  %2026 = vmatpush.msra.mxu0 %v97
  %2027 = vmatpush.msra.mxu0 %v96
  %2028 = vmatpush.msra.mxu0 %v95
  %2029 = vmatpush.msra.mxu0 %v94
  %2030 = vmatpush.msra.mxu0 %v93
  %2031 = vmatpush.msra.mxu0 %v92
  %2032 = vmatpush.msra.mxu0 %v91
  %2033 = vmatpush.msra.mxu0 %v90
  %2034 = vmatpush.msra.mxu0 %v89
  %2035 = vmatpush.msra.mxu0 %v88
  %2036 = vmatpush.msra.mxu0 %v87
  %2037 = vmatmul.f32.gmra.mxu0 %v1983
  %v2038 = vpop.f32.mrf.mxu0
  %v2039 = vadd.f32 %v2016, %v2038
  %2040 = vmatmul.f32.gmra.mxu0 %v1991
  %v2041 = vpop.f32.mrf.mxu0
  %v2042 = vadd.f32 %v2019, %v2041
  %2043 = vdwg.mxu0
  %2044 = vmatpush.msra.mxu0 %v118
  %2045 = vmatpush.msra.mxu0 %v117
  %2046 = vmatpush.msra.mxu0 %v116
  %2047 = vmatpush.msra.mxu0 %v115
  %2048 = vmatpush.msra.mxu0 %v114
  %2049 = vmatpush.msra.mxu0 %v113
  %2050 = vmatpush.msra.mxu0 %v112
  %2051 = vmatpush.msra.mxu0 %v111
  %2052 = vmatpush.msra.mxu0 %v110
  %2053 = vmatpush.msra.mxu0 %v109
  %2054 = vmatpush.msra.mxu0 %v108
  %2055 = vmatpush.msra.mxu0 %v107
  %2056 = vmatpush.msra.mxu0 %v106
  %2057 = vmatpush.msra.mxu0 %v105
  %2058 = vmatpush.msra.mxu0 %v104
  %2059 = vmatpush.msra.mxu0 %v103
  %2060 = vmatmul.f32.gmra.mxu0 %v1984
  %v2061 = vpop.f32.mrf.mxu0
  %v2062 = vadd.f32 %v2039, %v2061
  %2063 = vmatmul.f32.gmra.mxu0 %v1992
  %v2064 = vpop.f32.mrf.mxu0
  %v2065 = vadd.f32 %v2042, %v2064
  %2066 = vdwg.mxu0
  %2067 = vmatpush.msra.mxu0 %v134
  %2068 = vmatpush.msra.mxu0 %v133
  %2069 = vmatpush.msra.mxu0 %v132
  %2070 = vmatpush.msra.mxu0 %v131
  %2071 = vmatpush.msra.mxu0 %v130
  %2072 = vmatpush.msra.mxu0 %v129
  %2073 = vmatpush.msra.mxu0 %v128
  %2074 = vmatpush.msra.mxu0 %v127
  %2075 = vmatpush.msra.mxu0 %v126
  %2076 = vmatpush.msra.mxu0 %v125
  %2077 = vmatpush.msra.mxu0 %v124
  %2078 = vmatpush.msra.mxu0 %v123
  %2079 = vmatpush.msra.mxu0 %v122
  %2080 = vmatpush.msra.mxu0 %v121
  %2081 = vmatpush.msra.mxu0 %v120
  %2082 = vmatpush.msra.mxu0 %v119
  %2083 = vmatmul.f32.gmra.mxu0 %v1985
  %v2084 = vpop.f32.mrf.mxu0
  %v2085 = vadd.f32 %v2062, %v2084
  %2086 = vmatmul.f32.gmra.mxu0 %v1993
  %v2087 = vpop.f32.mrf.mxu0
  %v2088 = vadd.f32 %v2065, %v2087
  %2089 = vdwg.mxu0
  %2090 = vmatpush.msra.mxu0 %v150
  %2091 = vmatpush.msra.mxu0 %v149
  %2092 = vmatpush.msra.mxu0 %v148
  %2093 = vmatpush.msra.mxu0 %v147
  %2094 = vmatpush.msra.mxu0 %v146
  %2095 = vmatpush.msra.mxu0 %v145
  %2096 = vmatpush.msra.mxu0 %v144
  %2097 = vmatpush.msra.mxu0 %v143
  %2098 = vmatpush.msra.mxu0 %v142
  %2099 = vmatpush.msra.mxu0 %v141
  %2100 = vmatpush.msra.mxu0 %v140
  %2101 = vmatpush.msra.mxu0 %v139
  %2102 = vmatpush.msra.mxu0 %v138
  %2103 = vmatpush.msra.mxu0 %v137
  %2104 = vmatpush.msra.mxu0 %v136
  %2105 = vmatpush.msra.mxu0 %v135
  %2106 = vmatmul.f32.gmra.mxu0 %v1986
  %v2107 = vpop.f32.mrf.mxu0
  %v2108 = vadd.f32 %v2085, %v2107
  %2109 = vmatmul.f32.gmra.mxu0 %v1994
  %v2110 = vpop.f32.mrf.mxu0
  %v2111 = vadd.f32 %v2088, %v2110
  %2112 = vdwg.mxu0
  %2113 = vmatpush.msra.mxu0 %v166
  %2114 = vmatpush.msra.mxu0 %v165
  %2115 = vmatpush.msra.mxu0 %v164
  %2116 = vmatpush.msra.mxu0 %v163
  %2117 = vmatpush.msra.mxu0 %v162
  %2118 = vmatpush.msra.mxu0 %v161
  %2119 = vmatpush.msra.mxu0 %v160
  %2120 = vmatpush.msra.mxu0 %v159
  %2121 = vmatpush.msra.mxu0 %v158
  %2122 = vmatpush.msra.mxu0 %v157
  %2123 = vmatpush.msra.mxu0 %v156
  %2124 = vmatpush.msra.mxu0 %v155
  %2125 = vmatpush.msra.mxu0 %v154
  %2126 = vmatpush.msra.mxu0 %v153
  %2127 = vmatpush.msra.mxu0 %v152
  %2128 = vmatpush.msra.mxu0 %v151
  %2129 = vmatmul.f32.gmra.mxu0 %v1987
  %v2130 = vpop.f32.mrf.mxu0
  %v2131 = vadd.f32 %v2108, %v2130
  %2132 = vmatmul.f32.gmra.mxu0 %v1995
  %v2133 = vpop.f32.mrf.mxu0
  %v2134 = vadd.f32 %v2111, %v2133
  %2135 = vdwg.mxu0
  %2136 = vmatpush.msra.mxu0 %v182
  %2137 = vmatpush.msra.mxu0 %v181
  %2138 = vmatpush.msra.mxu0 %v180
  %2139 = vmatpush.msra.mxu0 %v179
  %2140 = vmatpush.msra.mxu0 %v178
  %2141 = vmatpush.msra.mxu0 %v177
  %2142 = vmatpush.msra.mxu0 %v176
  %2143 = vmatpush.msra.mxu0 %v175
  %2144 = vmatpush.msra.mxu0 %v174
  %2145 = vmatpush.msra.mxu0 %v173
  %2146 = vmatpush.msra.mxu0 %v172
  %2147 = vmatpush.msra.mxu0 %v171
  %2148 = vmatpush.msra.mxu0 %v170
  %2149 = vmatpush.msra.mxu0 %v169
  %2150 = vmatpush.msra.mxu0 %v168
  %2151 = vmatpush.msra.mxu0 %v167
  %2152 = vmatmul.f32.gmra.mxu0 %v1988
  %v2153 = vpop.f32.mrf.mxu0
  %v2154 = vadd.f32 %v2131, %v2153
  %2155 = vmatmul.f32.gmra.mxu0 %v1996
  %v2156 = vpop.f32.mrf.mxu0
  %v2157 = vadd.f32 %v2134, %v2156
  %2158 = vdwg.mxu0
  %2159 = vmatpush.msra.mxu0 %v198
  %2160 = vmatpush.msra.mxu0 %v197
  %2161 = vmatpush.msra.mxu0 %v196
  %2162 = vmatpush.msra.mxu0 %v195
  %2163 = vmatpush.msra.mxu0 %v194
  %2164 = vmatpush.msra.mxu0 %v193
  %2165 = vmatpush.msra.mxu0 %v192
  %2166 = vmatpush.msra.mxu0 %v191
  %2167 = vmatpush.msra.mxu0 %v190
  %2168 = vmatpush.msra.mxu0 %v189
  %2169 = vmatpush.msra.mxu0 %v188
  %2170 = vmatpush.msra.mxu0 %v187
  %2171 = vmatpush.msra.mxu0 %v186
  %2172 = vmatpush.msra.mxu0 %v185
  %2173 = vmatpush.msra.mxu0 %v184
  %2174 = vmatpush.msra.mxu0 %v183
  %2175 = vmatmul.f32.gmra.mxu0 %v1989
  %v2176 = vpop.f32.mrf.mxu0
  %v2177 = vadd.f32 %v2154, %v2176
  %2178 = vmatmul.f32.gmra.mxu0 %v1997
  %v2179 = vpop.f32.mrf.mxu0
  %v2180 = vadd.f32 %v2157, %v2179
  %2181 = vdwg.mxu0
  %2182 = vmatpush.msra.mxu0 %v342
  %2183 = vmatpush.msra.mxu0 %v341
  %2184 = vmatpush.msra.mxu0 %v340
  %2185 = vmatpush.msra.mxu0 %v339
  %2186 = vmatpush.msra.mxu0 %v338
  %2187 = vmatpush.msra.mxu0 %v337
  %2188 = vmatpush.msra.mxu0 %v336
  %2189 = vmatpush.msra.mxu0 %v335
  %2190 = vmatpush.msra.mxu0 %v334
  %2191 = vmatpush.msra.mxu0 %v333
  %2192 = vmatpush.msra.mxu0 %v332
  %2193 = vmatpush.msra.mxu0 %v331
  %2194 = vmatpush.msra.mxu0 %v330
  %2195 = vmatpush.msra.mxu0 %v329
  %2196 = vmatpush.msra.mxu0 %v328
  %2197 = vmatpush.msra.mxu0 %v327
  %2198 = vmatmul.f32.gmra.mxu0 %v2177
  %v2199 = vpop.f32.mrf.mxu0
  %v2200 = vadd.f32 %v378, %v2199
  %2201 = vmatmul.f32.gmra.mxu0 %v2180
  %v2202 = vpop.f32.mrf.mxu0
  %v2203 = vadd.f32 %v378, %v2202
  %2204 = vdwg.mxu0
  %2205 = vmax.xlane.f32.xlu0 %v2200
  %v2206 = vpop.xlane.xlu0 %2205
  %2207 = vmax.xlane.f32.xlu0 %v2203
  %v2208 = vpop.xlane.xlu0 %2207
  %v2209 = vsub.f32 %v2200, %v2206
  %v2210 = vsub.f32 %v2203, %v2208
  %v2211 = vmul.f32 %v2209, 1.442695
  %v2212 = vpow.pop %v2211
  %v2213 = vmul.f32 %v2210, 1.442695
  %v2214 = vpow.pop %v2213
  %v2215 = vmul.f32 %v2212, %v364
  %v2216 = vmul.f32 %v2214, %v364
  %2217 = vadd.xlane.f32.xlu0 %v2215
  %v2218 = vpop.xlane.xlu0 %2217
  %2219 = vadd.xlane.f32.xlu0 %v2216
  %v2220 = vpop.xlane.xlu0 %2219
  %v2221 = vmul.f32 %v2212, %v369
  %v2222 = vmul.f32 %v2214, %v369
  %2223 = vadd.xlane.f32.xlu0 %v2221
  %v2224 = vpop.xlane.xlu0 %2223
  %2225 = vadd.xlane.f32.xlu0 %v2222
  %v2226 = vpop.xlane.xlu0 %2225
  %v2227 = vmul.f32 %v2212, %v374
  %v2228 = vmul.f32 %v2214, %v374
  %2229 = vadd.xlane.f32.xlu0 %v2227
  %v2230 = vpop.xlane.xlu0 %2229
  %2231 = vadd.xlane.f32.xlu0 %v2228
  %v2232 = vpop.xlane.xlu0 %2231
  %v2233 = vmax.f32 %v2218, 1e-30
  %v2234 = vmax.f32 %v2220, 1e-30
  %v2235 = vrcp.pop %v2233
  %v2236 = vmul.f32 %v2233, %v2235
  %v2237 = vsub.f32 1.0, %v2236
  %v2238 = vmul.f32 %v2235, %v2237
  %v2239 = vadd.f32 %v2235, %v2238
  %vm2240 = vweird.f32 %v2233
  %vm2241 = vweird.f32 %v2235
  %vm2242 = vmor %vm2240, %vm2241
  %v2243 = vsel %vm2242, %v2235, %v2239
  %v2244 = vand.u32 2147483647, %v2233
  %vm2245 = vcmp.eq.f32.partialorder %v2244, 8.507059e+37
  %v2246 = vand.u32 %v2233, 2147483648
  %v2247 = vor.u32 1.1754944e-38, %v2246
  %v2248 = vsel %vm2245, %v2247, %v2243
  %v2249 = vmul.f32 1.0, %v2248
  %v2250 = vrcp.pop %v2234
  %v2251 = vmul.f32 %v2234, %v2250
  %v2252 = vsub.f32 1.0, %v2251
  %v2253 = vmul.f32 %v2250, %v2252
  %v2254 = vadd.f32 %v2250, %v2253
  %vm2255 = vweird.f32 %v2234
  %vm2256 = vweird.f32 %v2250
  %vm2257 = vmor %vm2255, %vm2256
  %v2258 = vsel %vm2257, %v2250, %v2254
  %v2259 = vand.u32 2147483647, %v2234
  %vm2260 = vcmp.eq.f32.partialorder %v2259, 8.507059e+37
  %v2261 = vand.u32 %v2234, 2147483648
  %v2262 = vor.u32 1.1754944e-38, %v2261
  %v2263 = vsel %vm2260, %v2262, %v2258
  %v2264 = vmul.f32 1.0, %v2263
  %v2265 = vmax.f32 %v2224, 1e-30
  %v2266 = vmax.f32 %v2226, 1e-30
  %v2267 = vrcp.pop %v2265
  %v2268 = vmul.f32 %v2265, %v2267
  %v2269 = vsub.f32 1.0, %v2268
  %v2270 = vmul.f32 %v2267, %v2269
  %v2271 = vadd.f32 %v2267, %v2270
  %vm2272 = vweird.f32 %v2265
  %vm2273 = vweird.f32 %v2267
  %vm2274 = vmor %vm2272, %vm2273
  %v2275 = vsel %vm2274, %v2267, %v2271
  %v2276 = vand.u32 2147483647, %v2265
  %vm2277 = vcmp.eq.f32.partialorder %v2276, 8.507059e+37
  %v2278 = vand.u32 %v2265, 2147483648
  %v2279 = vor.u32 1.1754944e-38, %v2278
  %v2280 = vsel %vm2277, %v2279, %v2275
  %v2281 = vmul.f32 1.0, %v2280
  %v2282 = vrcp.pop %v2266
  %v2283 = vmul.f32 %v2266, %v2282
  %v2284 = vsub.f32 1.0, %v2283
  %v2285 = vmul.f32 %v2282, %v2284
  %v2286 = vadd.f32 %v2282, %v2285
  %vm2287 = vweird.f32 %v2266
  %vm2288 = vweird.f32 %v2282
  %vm2289 = vmor %vm2287, %vm2288
  %v2290 = vsel %vm2289, %v2282, %v2286
  %v2291 = vand.u32 2147483647, %v2266
  %vm2292 = vcmp.eq.f32.partialorder %v2291, 8.507059e+37
  %v2293 = vand.u32 %v2266, 2147483648
  %v2294 = vor.u32 1.1754944e-38, %v2293
  %v2295 = vsel %vm2292, %v2294, %v2290
  %v2296 = vmul.f32 1.0, %v2295
  %v2297 = vmax.f32 %v2230, 1e-30
  %v2298 = vmax.f32 %v2232, 1e-30
  %v2299 = vrcp.pop %v2297
  %v2300 = vmul.f32 %v2297, %v2299
  %v2301 = vsub.f32 1.0, %v2300
  %v2302 = vmul.f32 %v2299, %v2301
  %v2303 = vadd.f32 %v2299, %v2302
  %vm2304 = vweird.f32 %v2297
  %vm2305 = vweird.f32 %v2299
  %vm2306 = vmor %vm2304, %vm2305
  %v2307 = vsel %vm2306, %v2299, %v2303
  %v2308 = vand.u32 2147483647, %v2297
  %vm2309 = vcmp.eq.f32.partialorder %v2308, 8.507059e+37
  %v2310 = vand.u32 %v2297, 2147483648
  %v2311 = vor.u32 1.1754944e-38, %v2310
  %v2312 = vsel %vm2309, %v2311, %v2307
  %v2313 = vmul.f32 1.0, %v2312
  %v2314 = vrcp.pop %v2298
  %v2315 = vmul.f32 %v2298, %v2314
  %v2316 = vsub.f32 1.0, %v2315
  %v2317 = vmul.f32 %v2314, %v2316
  %v2318 = vadd.f32 %v2314, %v2317
  %vm2319 = vweird.f32 %v2298
  %vm2320 = vweird.f32 %v2314
  %vm2321 = vmor %vm2319, %vm2320
  %v2322 = vsel %vm2321, %v2314, %v2318
  %v2323 = vand.u32 2147483647, %v2298
  %vm2324 = vcmp.eq.f32.partialorder %v2323, 8.507059e+37
  %v2325 = vand.u32 %v2298, 2147483648
  %v2326 = vor.u32 1.1754944e-38, %v2325
  %v2327 = vsel %vm2324, %v2326, %v2322
  %v2328 = vmul.f32 1.0, %v2327
  %v2329 = vmul.f32 %v2249, %v364
  %v2330 = vmul.f32 %v2264, %v364
  %v2331 = vmul.f32 %v2281, %v369
  %v2332 = vmul.f32 %v2296, %v369
  %v2333 = vadd.f32 %v2329, %v2331
  %v2334 = vadd.f32 %v2330, %v2332
  %v2335 = vmul.f32 %v2313, %v374
  %v2336 = vmul.f32 %v2328, %v374
  %v2337 = vadd.f32 %v2333, %v2335
  %v2338 = vadd.f32 %v2334, %v2336
  %v2339 = vmul.f32 %v2212, %v2337
  %v2340 = vmul.f32 %v2214, %v2338
  %v2341 = vsub.f32 %v2339, %v359
  %v2342 = vsub.f32 %v2340, %v359
  %2343 = vmatpush.msra.mxu0 %v358
  %2344 = vmatpush.msra.mxu0 %v357
  %2345 = vmatpush.msra.mxu0 %v356
  %2346 = vmatpush.msra.mxu0 %v355
  %2347 = vmatpush.msra.mxu0 %v354
  %2348 = vmatpush.msra.mxu0 %v353
  %2349 = vmatpush.msra.mxu0 %v352
  %2350 = vmatpush.msra.mxu0 %v351
  %2351 = vmatpush.msra.mxu0 %v350
  %2352 = vmatpush.msra.mxu0 %v349
  %2353 = vmatpush.msra.mxu0 %v348
  %2354 = vmatpush.msra.mxu0 %v347
  %2355 = vmatpush.msra.mxu0 %v346
  %2356 = vmatpush.msra.mxu0 %v345
  %2357 = vmatpush.msra.mxu0 %v344
  %2358 = vmatpush.msra.mxu0 %v343
  %2359 = vmatmul.f32.gmra.mxu0 %v2341
  %v2360 = vpop.f32.mrf.mxu0
  %v2361 = vadd.f32 0.0, %v2360
  %2362 = vmatmul.f32.gmra.mxu0 %v2342
  %v2363 = vpop.f32.mrf.mxu0
  %v2364 = vadd.f32 0.0, %v2363
  %2365 = vdwg.mxu0
  %v2366 = vmul.f32 %v2177, %v2180
  %2367 = vadd.xlane.f32.xlu0 %v2366
  %v2368 = vpop.xlane.xlu0 %2367
  %v2369 = vmul.f32 %v2177, %v2177
  %2370 = vadd.xlane.f32.xlu0 %v2369
  %v2371 = vpop.xlane.xlu0 %2370
  %v2372 = vrsqrt.pop %v2371
  %v2373 = vmul.f32 %v2372, %v2371
  %v2374 = vmul.f32 %v2373, %v2372
  %v2375 = vmul.f32 0.5, %v2374
  %v2376 = vsub.f32 1.5, %v2375
  %v2377 = vmul.f32 %v2372, %v2376
  %v2378 = vmul.f32 %v2371, %v2377
  %vm2379 = vcmp.eq.f32.partialorder %v2371, inf
  %v2380 = vsel %vm2379, %v2371, %v2378
  %vm2381 = vcmp.eq.f32.partialorder %v2371, 0.0
  %v2382 = vand.u32 %v2371, 2147483648
  %v2383 = vsel %vm2381, %v2382, %v2380
  %v2384 = vmax.f32 %v2383, 1e-08
  %v2385 = vmul.f32 %v2180, %v2180
  %2386 = vadd.xlane.f32.xlu0 %v2385
  %v2387 = vpop.xlane.xlu0 %2386
  %v2388 = vrsqrt.pop %v2387
  %v2389 = vmul.f32 %v2388, %v2387
  %v2390 = vmul.f32 %v2389, %v2388
  %v2391 = vmul.f32 0.5, %v2390
  %v2392 = vsub.f32 1.5, %v2391
  %v2393 = vmul.f32 %v2388, %v2392
  %v2394 = vmul.f32 %v2387, %v2393
  %vm2395 = vcmp.eq.f32.partialorder %v2387, inf
  %v2396 = vsel %vm2395, %v2387, %v2394
  %vm2397 = vcmp.eq.f32.partialorder %v2387, 0.0
  %v2398 = vand.u32 %v2387, 2147483648
  %v2399 = vsel %vm2397, %v2398, %v2396
  %v2400 = vmax.f32 %v2399, 1e-08
  %v2401 = vmul.f32 %v2384, %v2400
  %v2402 = vrcp.pop %v2401
  %v2403 = vmul.f32 %v2401, %v2402
  %v2404 = vsub.f32 1.0, %v2403
  %v2405 = vmul.f32 %v2402, %v2404
  %v2406 = vadd.f32 %v2402, %v2405
  %vm2407 = vweird.f32 %v2401
  %vm2408 = vweird.f32 %v2402
  %vm2409 = vmor %vm2407, %vm2408
  %v2410 = vsel %vm2409, %v2402, %v2406
  %v2411 = vand.u32 2147483647, %v2401
  %vm2412 = vcmp.eq.f32.partialorder %v2411, 8.507059e+37
  %v2413 = vand.u32 %v2401, 2147483648
  %v2414 = vor.u32 1.1754944e-38, %v2413
  %v2415 = vsel %vm2412, %v2414, %v2410
  %v2416 = vmul.f32 1.0, %v2415
  %v2417 = vmul.f32 %v2368, %v2416
  %v2418 = vmul.f32 %v2180, %v2416
  %v2419 = vmul.f32 %v2384, %v2384
  %v2420 = vrcp.pop %v2419
  %v2421 = vmul.f32 %v2419, %v2420
  %v2422 = vsub.f32 1.0, %v2421
  %v2423 = vmul.f32 %v2420, %v2422
  %v2424 = vadd.f32 %v2420, %v2423
  %vm2425 = vweird.f32 %v2419
  %vm2426 = vweird.f32 %v2420
  %vm2427 = vmor %vm2425, %vm2426
  %v2428 = vsel %vm2427, %v2420, %v2424
  %v2429 = vand.u32 2147483647, %v2419
  %vm2430 = vcmp.eq.f32.partialorder %v2429, 8.507059e+37
  %v2431 = vand.u32 %v2419, 2147483648
  %v2432 = vor.u32 1.1754944e-38, %v2431
  %v2433 = vsel %vm2430, %v2432, %v2428
  %v2434 = vmul.f32 %v2417, %v2433
  %v2435 = vmul.f32 %v2177, %v2434
  %v2436 = vsub.f32 %v2418, %v2435
  %v2437 = vmul.f32 %v2177, %v2416
  %v2438 = vmul.f32 %v2400, %v2400
  %v2439 = vrcp.pop %v2438
  %v2440 = vmul.f32 %v2438, %v2439
  %v2441 = vsub.f32 1.0, %v2440
  %v2442 = vmul.f32 %v2439, %v2441
  %v2443 = vadd.f32 %v2439, %v2442
  %vm2444 = vweird.f32 %v2438
  %vm2445 = vweird.f32 %v2439
  %vm2446 = vmor %vm2444, %vm2445
  %v2447 = vsel %vm2446, %v2439, %v2443
  %v2448 = vand.u32 2147483647, %v2438
  %vm2449 = vcmp.eq.f32.partialorder %v2448, 8.507059e+37
  %v2450 = vand.u32 %v2438, 2147483648
  %v2451 = vor.u32 1.1754944e-38, %v2450
  %v2452 = vsel %vm2449, %v2451, %v2447
  %v2453 = vmul.f32 %v2417, %v2452
  %v2454 = vmul.f32 %v2180, %v2453
  %v2455 = vsub.f32 %v2437, %v2454
  %v2456 = vmul.f32 %v384, %v2361
  %v2457 = vmul.f32 %v385, %v2364
  %v2458 = vsub.f32 %v2456, %v2436
  %v2459 = vsub.f32 %v2457, %v2455
  %2460 = vmatpush.msra.mxu0 %v319
  %2461 = vmatpush.msra.mxu0 %v311
  %2462 = vmatpush.msra.mxu0 %v303
  %2463 = vmatpush.msra.mxu0 %v295
  %2464 = vmatpush.msra.mxu0 %v287
  %2465 = vmatpush.msra.mxu0 %v279
  %2466 = vmatpush.msra.mxu0 %v271
  %2467 = vmatpush.msra.mxu0 %v263
  %2468 = vmatpush.msra.mxu0 %v255
  %2469 = vmatpush.msra.mxu0 %v247
  %2470 = vmatpush.msra.mxu0 %v239
  %2471 = vmatpush.msra.mxu0 %v231
  %2472 = vmatpush.msra.mxu0 %v223
  %2473 = vmatpush.msra.mxu0 %v215
  %2474 = vmatpush.msra.mxu0 %v207
  %2475 = vmatpush.msra.mxu0 %v199
  %2476 = vmatmul.f32.gmra.mxu0 %v2458
  %v2477 = vpop.f32.mrf.mxu0
  %v2478 = vadd.f32 0.0, %v2477
  %2479 = vmatmul.f32.gmra.mxu0 %v2459
  %v2480 = vpop.f32.mrf.mxu0
  %v2481 = vadd.f32 0.0, %v2480
  %2482 = vdwg.mxu0
  %2483 = vmatpush.msra.mxu0 %v320
  %2484 = vmatpush.msra.mxu0 %v312
  %2485 = vmatpush.msra.mxu0 %v304
  %2486 = vmatpush.msra.mxu0 %v296
  %2487 = vmatpush.msra.mxu0 %v288
  %2488 = vmatpush.msra.mxu0 %v280
  %2489 = vmatpush.msra.mxu0 %v272
  %2490 = vmatpush.msra.mxu0 %v264
  %2491 = vmatpush.msra.mxu0 %v256
  %2492 = vmatpush.msra.mxu0 %v248
  %2493 = vmatpush.msra.mxu0 %v240
  %2494 = vmatpush.msra.mxu0 %v232
  %2495 = vmatpush.msra.mxu0 %v224
  %2496 = vmatpush.msra.mxu0 %v216
  %2497 = vmatpush.msra.mxu0 %v208
  %2498 = vmatpush.msra.mxu0 %v200
  %2499 = vmatmul.f32.gmra.mxu0 %v2458
  %v2500 = vpop.f32.mrf.mxu0
  %v2501 = vadd.f32 0.0, %v2500
  %2502 = vmatmul.f32.gmra.mxu0 %v2459
  %v2503 = vpop.f32.mrf.mxu0
  %v2504 = vadd.f32 0.0, %v2503
  %2505 = vdwg.mxu0
  %2506 = vmatpush.msra.mxu0 %v321
  %2507 = vmatpush.msra.mxu0 %v313
  %2508 = vmatpush.msra.mxu0 %v305
  %2509 = vmatpush.msra.mxu0 %v297
  %2510 = vmatpush.msra.mxu0 %v289
  %2511 = vmatpush.msra.mxu0 %v281
  %2512 = vmatpush.msra.mxu0 %v273
  %2513 = vmatpush.msra.mxu0 %v265
  %2514 = vmatpush.msra.mxu0 %v257
  %2515 = vmatpush.msra.mxu0 %v249
  %2516 = vmatpush.msra.mxu0 %v241
  %2517 = vmatpush.msra.mxu0 %v233
  %2518 = vmatpush.msra.mxu0 %v225
  %2519 = vmatpush.msra.mxu0 %v217
  %2520 = vmatpush.msra.mxu0 %v209
  %2521 = vmatpush.msra.mxu0 %v201
  %2522 = vmatmul.f32.gmra.mxu0 %v2458
  %v2523 = vpop.f32.mrf.mxu0
  %v2524 = vadd.f32 0.0, %v2523
  %2525 = vmatmul.f32.gmra.mxu0 %v2459
  %v2526 = vpop.f32.mrf.mxu0
  %v2527 = vadd.f32 0.0, %v2526
  %2528 = vdwg.mxu0
  %2529 = vmatpush.msra.mxu0 %v322
  %2530 = vmatpush.msra.mxu0 %v314
  %2531 = vmatpush.msra.mxu0 %v306
  %2532 = vmatpush.msra.mxu0 %v298
  %2533 = vmatpush.msra.mxu0 %v290
  %2534 = vmatpush.msra.mxu0 %v282
  %2535 = vmatpush.msra.mxu0 %v274
  %2536 = vmatpush.msra.mxu0 %v266
  %2537 = vmatpush.msra.mxu0 %v258
  %2538 = vmatpush.msra.mxu0 %v250
  %2539 = vmatpush.msra.mxu0 %v242
  %2540 = vmatpush.msra.mxu0 %v234
  %2541 = vmatpush.msra.mxu0 %v226
  %2542 = vmatpush.msra.mxu0 %v218
  %2543 = vmatpush.msra.mxu0 %v210
  %2544 = vmatpush.msra.mxu0 %v202
  %2545 = vmatmul.f32.gmra.mxu0 %v2458
  %v2546 = vpop.f32.mrf.mxu0
  %v2547 = vadd.f32 0.0, %v2546
  %2548 = vmatmul.f32.gmra.mxu0 %v2459
  %v2549 = vpop.f32.mrf.mxu0
  %v2550 = vadd.f32 0.0, %v2549
  %2551 = vdwg.mxu0
  %2552 = vmatpush.msra.mxu0 %v323
  %2553 = vmatpush.msra.mxu0 %v315
  %2554 = vmatpush.msra.mxu0 %v307
  %2555 = vmatpush.msra.mxu0 %v299
  %2556 = vmatpush.msra.mxu0 %v291
  %2557 = vmatpush.msra.mxu0 %v283
  %2558 = vmatpush.msra.mxu0 %v275
  %2559 = vmatpush.msra.mxu0 %v267
  %2560 = vmatpush.msra.mxu0 %v259
  %2561 = vmatpush.msra.mxu0 %v251
  %2562 = vmatpush.msra.mxu0 %v243
  %2563 = vmatpush.msra.mxu0 %v235
  %2564 = vmatpush.msra.mxu0 %v227
  %2565 = vmatpush.msra.mxu0 %v219
  %2566 = vmatpush.msra.mxu0 %v211
  %2567 = vmatpush.msra.mxu0 %v203
  %2568 = vmatmul.f32.gmra.mxu0 %v2458
  %v2569 = vpop.f32.mrf.mxu0
  %v2570 = vadd.f32 0.0, %v2569
  %2571 = vmatmul.f32.gmra.mxu0 %v2459
  %v2572 = vpop.f32.mrf.mxu0
  %v2573 = vadd.f32 0.0, %v2572
  %2574 = vdwg.mxu0
  %2575 = vmatpush.msra.mxu0 %v324
  %2576 = vmatpush.msra.mxu0 %v316
  %2577 = vmatpush.msra.mxu0 %v308
  %2578 = vmatpush.msra.mxu0 %v300
  %2579 = vmatpush.msra.mxu0 %v292
  %2580 = vmatpush.msra.mxu0 %v284
  %2581 = vmatpush.msra.mxu0 %v276
  %2582 = vmatpush.msra.mxu0 %v268
  %2583 = vmatpush.msra.mxu0 %v260
  %2584 = vmatpush.msra.mxu0 %v252
  %2585 = vmatpush.msra.mxu0 %v244
  %2586 = vmatpush.msra.mxu0 %v236
  %2587 = vmatpush.msra.mxu0 %v228
  %2588 = vmatpush.msra.mxu0 %v220
  %2589 = vmatpush.msra.mxu0 %v212
  %2590 = vmatpush.msra.mxu0 %v204
  %2591 = vmatmul.f32.gmra.mxu0 %v2458
  %v2592 = vpop.f32.mrf.mxu0
  %v2593 = vadd.f32 0.0, %v2592
  %2594 = vmatmul.f32.gmra.mxu0 %v2459
  %v2595 = vpop.f32.mrf.mxu0
  %v2596 = vadd.f32 0.0, %v2595
  %2597 = vdwg.mxu0
  %2598 = vmatpush.msra.mxu0 %v325
  %2599 = vmatpush.msra.mxu0 %v317
  %2600 = vmatpush.msra.mxu0 %v309
  %2601 = vmatpush.msra.mxu0 %v301
  %2602 = vmatpush.msra.mxu0 %v293
  %2603 = vmatpush.msra.mxu0 %v285
  %2604 = vmatpush.msra.mxu0 %v277
  %2605 = vmatpush.msra.mxu0 %v269
  %2606 = vmatpush.msra.mxu0 %v261
  %2607 = vmatpush.msra.mxu0 %v253
  %2608 = vmatpush.msra.mxu0 %v245
  %2609 = vmatpush.msra.mxu0 %v237
  %2610 = vmatpush.msra.mxu0 %v229
  %2611 = vmatpush.msra.mxu0 %v221
  %2612 = vmatpush.msra.mxu0 %v213
  %2613 = vmatpush.msra.mxu0 %v205
  %2614 = vmatmul.f32.gmra.mxu0 %v2458
  %v2615 = vpop.f32.mrf.mxu0
  %v2616 = vadd.f32 0.0, %v2615
  %2617 = vmatmul.f32.gmra.mxu0 %v2459
  %v2618 = vpop.f32.mrf.mxu0
  %v2619 = vadd.f32 0.0, %v2618
  %2620 = vdwg.mxu0
  %2621 = vmatpush.msra.mxu0 %v326
  %2622 = vmatpush.msra.mxu0 %v318
  %2623 = vmatpush.msra.mxu0 %v310
  %2624 = vmatpush.msra.mxu0 %v302
  %2625 = vmatpush.msra.mxu0 %v294
  %2626 = vmatpush.msra.mxu0 %v286
  %2627 = vmatpush.msra.mxu0 %v278
  %2628 = vmatpush.msra.mxu0 %v270
  %2629 = vmatpush.msra.mxu0 %v262
  %2630 = vmatpush.msra.mxu0 %v254
  %2631 = vmatpush.msra.mxu0 %v246
  %2632 = vmatpush.msra.mxu0 %v238
  %2633 = vmatpush.msra.mxu0 %v230
  %2634 = vmatpush.msra.mxu0 %v222
  %2635 = vmatpush.msra.mxu0 %v214
  %2636 = vmatpush.msra.mxu0 %v206
  %2637 = vmatmul.f32.gmra.mxu0 %v2458
  %v2638 = vpop.f32.mrf.mxu0
  %v2639 = vadd.f32 0.0, %v2638
  %2640 = vmatmul.f32.gmra.mxu0 %v2459
  %v2641 = vpop.f32.mrf.mxu0
  %v2642 = vadd.f32 0.0, %v2641
  %2643 = vdwg.mxu0
  %vm2644 = vcmp.gt.f32.partialorder %v2478, 0.0
  %vm2645 = vcmp.gt.f32.partialorder %v2501, 0.0
  %vm2646 = vcmp.gt.f32.partialorder %v2524, 0.0
  %vm2647 = vcmp.gt.f32.partialorder %v2547, 0.0
  %vm2648 = vcmp.gt.f32.partialorder %v2570, 0.0
  %vm2649 = vcmp.gt.f32.partialorder %v2593, 0.0
  %vm2650 = vcmp.gt.f32.partialorder %v2616, 0.0
  %vm2651 = vcmp.gt.f32.partialorder %v2639, 0.0
  %vm2652 = vcmp.gt.f32.partialorder %v2481, 0.0
  %vm2653 = vcmp.gt.f32.partialorder %v2504, 0.0
  %vm2654 = vcmp.gt.f32.partialorder %v2527, 0.0
  %vm2655 = vcmp.gt.f32.partialorder %v2550, 0.0
  %vm2656 = vcmp.gt.f32.partialorder %v2573, 0.0
  %vm2657 = vcmp.gt.f32.partialorder %v2596, 0.0
  %vm2658 = vcmp.gt.f32.partialorder %v2619, 0.0
  %vm2659 = vcmp.gt.f32.partialorder %v2642, 0.0
  %vm2660 = vcmp.lt.f32.partialorder %v2478, 0.0
  %vm2661 = vcmp.lt.f32.partialorder %v2501, 0.0
  %vm2662 = vcmp.lt.f32.partialorder %v2524, 0.0
  %vm2663 = vcmp.lt.f32.partialorder %v2547, 0.0
  %vm2664 = vcmp.lt.f32.partialorder %v2570, 0.0
  %vm2665 = vcmp.lt.f32.partialorder %v2593, 0.0
  %vm2666 = vcmp.lt.f32.partialorder %v2616, 0.0
  %vm2667 = vcmp.lt.f32.partialorder %v2639, 0.0
  %vm2668 = vcmp.lt.f32.partialorder %v2481, 0.0
  %vm2669 = vcmp.lt.f32.partialorder %v2504, 0.0
  %vm2670 = vcmp.lt.f32.partialorder %v2527, 0.0
  %vm2671 = vcmp.lt.f32.partialorder %v2550, 0.0
  %vm2672 = vcmp.lt.f32.partialorder %v2573, 0.0
  %vm2673 = vcmp.lt.f32.partialorder %v2596, 0.0
  %vm2674 = vcmp.lt.f32.partialorder %v2619, 0.0
  %vm2675 = vcmp.lt.f32.partialorder %v2642, 0.0
  %v2676 = vsel %vm2660, -1.0, 0.0
  %v2677 = vsel %vm2661, -1.0, 0.0
  %v2678 = vsel %vm2662, -1.0, 0.0
  %v2679 = vsel %vm2663, -1.0, 0.0
  %v2680 = vsel %vm2664, -1.0, 0.0
  %v2681 = vsel %vm2665, -1.0, 0.0
  %v2682 = vsel %vm2666, -1.0, 0.0
  %v2683 = vsel %vm2667, -1.0, 0.0
  %v2684 = vsel %vm2668, -1.0, 0.0
  %v2685 = vsel %vm2669, -1.0, 0.0
  %v2686 = vsel %vm2670, -1.0, 0.0
  %v2687 = vsel %vm2671, -1.0, 0.0
  %v2688 = vsel %vm2672, -1.0, 0.0
  %v2689 = vsel %vm2673, -1.0, 0.0
  %v2690 = vsel %vm2674, -1.0, 0.0
  %v2691 = vsel %vm2675, -1.0, 0.0
  %v2692 = vsel %vm2644, 1.0, %v2676
  %v2693 = vsel %vm2645, 1.0, %v2677
  %v2694 = vsel %vm2646, 1.0, %v2678
  %v2695 = vsel %vm2647, 1.0, %v2679
  %v2696 = vsel %vm2648, 1.0, %v2680
  %v2697 = vsel %vm2649, 1.0, %v2681
  %v2698 = vsel %vm2650, 1.0, %v2682
  %v2699 = vsel %vm2651, 1.0, %v2683
  %v2700 = vsel %vm2652, 1.0, %v2684
  %v2701 = vsel %vm2653, 1.0, %v2685
  %v2702 = vsel %vm2654, 1.0, %v2686
  %v2703 = vsel %vm2655, 1.0, %v2687
  %v2704 = vsel %vm2656, 1.0, %v2688
  %v2705 = vsel %vm2657, 1.0, %v2689
  %v2706 = vsel %vm2658, 1.0, %v2690
  %v2707 = vsel %vm2659, 1.0, %v2691
  %v2708 = vmul.f32 %v2692, 0.007843138
  %v2709 = vmul.f32 %v2693, 0.007843138
  %v2710 = vmul.f32 %v2694, 0.007843138
  %v2711 = vmul.f32 %v2695, 0.007843138
  %v2712 = vmul.f32 %v2696, 0.007843138
  %v2713 = vmul.f32 %v2697, 0.007843138
  %v2714 = vmul.f32 %v2698, 0.007843138
  %v2715 = vmul.f32 %v2699, 0.007843138
  %v2716 = vmul.f32 %v2700, 0.007843138
  %v2717 = vmul.f32 %v2701, 0.007843138
  %v2718 = vmul.f32 %v2702, 0.007843138
  %v2719 = vmul.f32 %v2703, 0.007843138
  %v2720 = vmul.f32 %v2704, 0.007843138
  %v2721 = vmul.f32 %v2705, 0.007843138
  %v2722 = vmul.f32 %v2706, 0.007843138
  %v2723 = vmul.f32 %v2707, 0.007843138
  %v2724 = vadd.f32 %v1966, %v2708
  %v2725 = vadd.f32 %v1967, %v2709
  %v2726 = vadd.f32 %v1968, %v2710
  %v2727 = vadd.f32 %v1969, %v2711
  %v2728 = vadd.f32 %v1970, %v2712
  %v2729 = vadd.f32 %v1971, %v2713
  %v2730 = vadd.f32 %v1972, %v2714
  %v2731 = vadd.f32 %v1973, %v2715
  %v2732 = vadd.f32 %v1974, %v2716
  %v2733 = vadd.f32 %v1975, %v2717
  %v2734 = vadd.f32 %v1976, %v2718
  %v2735 = vadd.f32 %v1977, %v2719
  %v2736 = vadd.f32 %v1978, %v2720
  %v2737 = vadd.f32 %v1979, %v2721
  %v2738 = vadd.f32 %v1980, %v2722
  %v2739 = vadd.f32 %v1981, %v2723
  %v2740 = vmax.f32 %v47, %v2724
  %v2741 = vmax.f32 %v48, %v2725
  %v2742 = vmax.f32 %v49, %v2726
  %v2743 = vmax.f32 %v50, %v2727
  %v2744 = vmax.f32 %v51, %v2728
  %v2745 = vmax.f32 %v52, %v2729
  %v2746 = vmax.f32 %v53, %v2730
  %v2747 = vmax.f32 %v54, %v2731
  %v2748 = vmax.f32 %v47, %v2732
  %v2749 = vmax.f32 %v48, %v2733
  %v2750 = vmax.f32 %v49, %v2734
  %v2751 = vmax.f32 %v50, %v2735
  %v2752 = vmax.f32 %v51, %v2736
  %v2753 = vmax.f32 %v52, %v2737
  %v2754 = vmax.f32 %v53, %v2738
  %v2755 = vmax.f32 %v54, %v2739
  %v2756 = vmin.f32 %v63, %v2740
  %v2757 = vmin.f32 %v64, %v2741
  %v2758 = vmin.f32 %v65, %v2742
  %v2759 = vmin.f32 %v66, %v2743
  %v2760 = vmin.f32 %v67, %v2744
  %v2761 = vmin.f32 %v68, %v2745
  %v2762 = vmin.f32 %v69, %v2746
  %v2763 = vmin.f32 %v70, %v2747
  %v2764 = vmin.f32 %v63, %v2748
  %v2765 = vmin.f32 %v64, %v2749
  %v2766 = vmin.f32 %v65, %v2750
  %v2767 = vmin.f32 %v66, %v2751
  %v2768 = vmin.f32 %v67, %v2752
  %v2769 = vmin.f32 %v68, %v2753
  %v2770 = vmin.f32 %v69, %v2754
  %v2771 = vmin.f32 %v70, %v2755
  %v2772 = vadd.f32 %v31, %v2756
  %v2773 = vadd.f32 %v32, %v2757
  %v2774 = vadd.f32 %v33, %v2758
  %v2775 = vadd.f32 %v34, %v2759
  %v2776 = vadd.f32 %v35, %v2760
  %v2777 = vadd.f32 %v36, %v2761
  %v2778 = vadd.f32 %v37, %v2762
  %v2779 = vadd.f32 %v38, %v2763
  %2780 = vst [vmem:[%s8] sm:$0xff] %v2772
  %2781 = vst [vmem:[%s8 + $0x8] sm:$0xff] %v2773
  %2782 = vst [vmem:[%s8 + $0x10] sm:$0xff] %v2774
  %2783 = vst [vmem:[%s8 + $0x18] sm:$0xff] %v2775
  %2784 = vst [vmem:[%s8 + $0x20] sm:$0xff] %v2776
  %2785 = vst [vmem:[%s8 + $0x28] sm:$0xff] %v2777
  %2786 = vst [vmem:[%s8 + $0x30] sm:$0xff] %v2778
  %2787 = vst [vmem:[%s8 + $0x38] sm:$0xff] %v2779
  %v2788 = vadd.f32 %v31, %v2764
  %v2789 = vadd.f32 %v32, %v2765
  %v2790 = vadd.f32 %v33, %v2766
  %v2791 = vadd.f32 %v34, %v2767
  %v2792 = vadd.f32 %v35, %v2768
  %v2793 = vadd.f32 %v36, %v2769
  %v2794 = vadd.f32 %v37, %v2770
  %v2795 = vadd.f32 %v38, %v2771
  %2796 = vst [vmem:[%s9] sm:$0xff] %v2788
  %2797 = vst [vmem:[%s9 + $0x8] sm:$0xff] %v2789
  %2798 = vst [vmem:[%s9 + $0x10] sm:$0xff] %v2790
  %2799 = vst [vmem:[%s9 + $0x18] sm:$0xff] %v2791
  %2800 = vst [vmem:[%s9 + $0x20] sm:$0xff] %v2792
  %2801 = vst [vmem:[%s9 + $0x28] sm:$0xff] %v2793
  %2802 = vst [vmem:[%s9 + $0x30] sm:$0xff] %v2794
  %2803 = vst [vmem:[%s9 + $0x38] sm:$0xff] %v2795
  // Predicated region
  $region34: #{attack_pgd_prototestadv2.1} parent=0 // pred_check
    _
  $region35: #{attack_pgd_prototestadv2.1} parent=0 // pred_check_branch
    %2805 = sbr.rel (0) target = $region37
  $region36: #{attack_pgd_prototestadv2.1} parent=0 // pred_region
    _
  $region37: #{attack_pgd_prototestadv2.1} parent=0 // pred_fallthru
    _
  // Predicated region
  $region38: #{attack_pgd_prototestadv2.1} parent=0 // pred_check
    _
  $region39: #{attack_pgd_prototestadv2.1} parent=0 // pred_check_branch
    %2807 = sbr.rel (0) target = $region41
  $region40: #{attack_pgd_prototestadv2.1} parent=0 // pred_region
    _
  $region41: #{attack_pgd_prototestadv2.1} parent=0 // pred_fallthru
    _
  // Predicated region
  $region42: #{attack_pgd_prototestadv2.1} parent=0 // pred_check
    _
  $region43: #{attack_pgd_prototestadv2.1} parent=0 // pred_check_branch
    %2809 = sbr.rel (0) target = $region45
  $region44: #{attack_pgd_prototestadv2.1} parent=0 // pred_region
    _
  $region45: #{attack_pgd_prototestadv2.1} parent=0 // pred_fallthru
    _
  // Predicated region
  $region46: #{attack_pgd_prototestadv2.1} parent=0 // pred_check
    _
  $region47: #{attack_pgd_prototestadv2.1} parent=0 // pred_check_branch
    %2811 = sbr.rel (0) target = $region49
  $region48: #{attack_pgd_prototestadv2.1} parent=0 // pred_region
    _
  $region49: #{attack_pgd_prototestadv2.1} parent=0 // pred_fallthru
    _

</llo_original>
